<compile_context>
chip_gen: v5e
topology: v5e:2x2
jax: 0.10.0
libtpu: 0.0.40
codegen_flags: <defaults>
</compile_context>

<pallas_src>
import functools

import jax
import jax.numpy as jnp
import numpy as np
from jax.experimental import pallas as pl
from jax.experimental.pallas import tpu as pltpu

EPS = 1e-5
LANE = 128       # Cout padding granularity (lane width)
WPAD = 16        # W padding granularity (covers the bf16 (16,128) tile)


def _round_up(v, m):
    return (v + m - 1) // m * m


@functools.lru_cache(maxsize=None)
def _device_kind():
    try:
        return jax.devices()[0].device_kind.lower()
    except Exception:
        return ""


def _tile_config(cp):
    """Generation-aware (cout_tile, vmem_limit_bytes)."""
    kind = _device_kind()
    is_v5e = ("v5 lite" in kind) or ("v5e" in kind) or ("v5litepod" in kind)
    is_v7 = ("v7" in kind) or ("tpu7" in kind)
    # v6e/v7x MXUs are 256x256: a 256-wide output tile fills the N dimension.
    # v5e MXUs are 128x128, so widening only raises VMEM pressure there.
    if cp % 256 == 0 and not is_v5e:
        ctile = 256
    else:
        ctile = min(cp, LANE)
    # v5e/v6e have 128 MiB physical VMEM; v7x only 64 MiB.
    vmem_limit = (48 if is_v7 else 100) * 1024 * 1024
    return ctile, vmem_limit


def _conv_bn_relu_kernel(x_ref, w_ref, g_ref, b_ref, o_ref, *, valid_w):
    """Valid 3x3 conv + training-mode BatchNorm + ReLU for one Cout tile.

    x_ref : (N, H, Wp, Cin)   NHWC input block (f32 for layer 1, bf16 for layer 2).
    w_ref : (G, K, Ct) bf16   folded weights; G==1 -> K = 9*Cin (all taps in one
                              contraction), G==3 -> K = 3*Cin per kx.
    g_ref : (1, Ct) f32       BN gamma.       b_ref : (1, Ct) f32  BN beta.
    o_ref : (N, H-2, Wp, Ct)  output tile; columns >= valid_w-2 are padding.
    """
    n, h, wp, cin = x_ref.shape
    ho = h - 2
    rows = n * ho * wp
    ct = o_ref.shape[-1]
    ngrp = w_ref.shape[0]
    valid_w_out = valid_w - 2

    # bf16 MXU operands, cast once up front (no-op for the bf16 layer-2 input).
    x = x_ref[...].astype(jnp.bfloat16)

    def shift_w(kx):
        # Shift left along W by kx, zero-filling the tail: keeps the padded
        # multiple-of-8 width so the row-flattening reshape below stays
        # layout-preserving (no (8,128)-tile-crossing relayout copies).
        if kx == 0:
            return x
        return jnp.concatenate(
            [x[:, :, kx:, :], jnp.zeros((n, h, kx, cin), jnp.bfloat16)], axis=2)

    def ky_taps(kx):
        # The 3 ky taps are H-slices: free views along an untiled axis.
        xs = shift_w(kx)
        return [xs[:, ky:ky + ho] for ky in range(3)]

    # Conv as G MXU matmuls with the taps folded into the contraction,
    # accumulated as a value chain (first tap '=', no scratch, no zero-init).
    acc = None
    for g in range(ngrp):
        if ngrp == 1:
            parts = []
            for kx in range(3):
                parts.extend(ky_taps(kx))
        else:
            parts = ky_taps(g)
        op = jnp.concatenate(parts, axis=-1).reshape(rows, len(parts) * cin)
        d = jnp.dot(op, w_ref[g], preferred_element_type=jnp.float32)
        acc = d if acc is None else acc + d
    acc = acc.reshape(n, ho, wp, ct)

    # Training-mode BN (per-channel over N,H,W) + ReLU.  Columns >= valid_w_out
    # hold shifted-in / width-padding garbage: excluded from the statistics and
    # sliced off by the host wrapper, so no extra output-zeroing pass is needed.
    # Two-pass variance for numerical robustness.
    col = jax.lax.broadcasted_iota(jnp.int32, (1, 1, wp, 1), 2)
    valid = col < valid_w_out
    count = float(n * ho * valid_w_out)
    mean = jnp.sum(jnp.where(valid, acc, 0.0), axis=(0, 1, 2), keepdims=True) / count
    diff = acc - mean
    var = jnp.sum(jnp.where(valid, diff * diff, 0.0),
                  axis=(0, 1, 2), keepdims=True) / count
    gamma = g_ref[...].astype(jnp.float32).reshape(1, 1, 1, ct)
    beta = b_ref[...].astype(jnp.float32).reshape(1, 1, 1, ct)
    scale = gamma * jax.lax.rsqrt(var + EPS)
    shift = beta - mean * scale
    o_ref[...] = jnp.maximum(acc * scale + shift, 0.0).astype(o_ref.dtype)


def _conv_bn_relu(x, wf, gamma, beta, *, valid_w, out_dtype, ctile, vmem_limit):
    """One fused Conv3x3+BN+ReLU layer: parallel grid over Cout tiles."""
    n, h, wp, cin = x.shape
    cp = wf.shape[-1]
    ho = h - 2
    gdim, kdim = wf.shape[0], wf.shape[1]
    nblocks = cp // ctile

    kernel = functools.partial(_conv_bn_relu_kernel, valid_w=valid_w)
    return pl.pallas_call(
        kernel,
        out_shape=jax.ShapeDtypeStruct((n, ho, wp, cp), out_dtype),
        grid_spec=pltpu.PrefetchScalarGridSpec(
            num_scalar_prefetch=0,
            grid=(nblocks,),
            in_specs=[
                # Constant block index: x stays VMEM-resident across Cout tiles.
                pl.BlockSpec((n, h, wp, cin), lambda j: (0, 0, 0, 0)),
                pl.BlockSpec((gdim, kdim, ctile), lambda j: (0, 0, j)),
                pl.BlockSpec((1, ctile), lambda j: (0, j)),
                pl.BlockSpec((1, ctile), lambda j: (0, j)),
            ],
            out_specs=pl.BlockSpec((n, ho, wp, ctile), lambda j: (0, 0, 0, j)),
        ),
        compiler_params=pltpu.CompilerParams(
            # Each Cout tile is self-contained (per-channel BN stats), so the
            # grid axis is truly parallel (v7x megacore shardable).
            dimension_semantics=("parallel",),
            vmem_limit_bytes=vmem_limit),
    )(x, wf, gamma, beta)


def prepare_params(params):
    """One-time parameter prep: fold (kx,ky,Cin) into the MXU contraction,
    pad Cout (and layer-2 Cin) to the lane width, cast weights to bf16.

    Conv biases are dropped: under training-mode BN the batch-mean subtraction
    cancels them exactly, so they are dead work in the kernel.
    """
    w1, b1, g1, be1, w2, b2, g2, be2 = params
    del b1, b2
    cout, cin = w1.shape[0], w1.shape[1]
    cp = _round_up(cout, LANE)

    def prep_w(w, cin_pad):
        o, c = w.shape[0], w.shape[1]
        w = jnp.transpose(w, (3, 2, 1, 0))               # (O,C,ky,kx) -> (kx,ky,C,O)
        w = jnp.pad(w, ((0, 0), (0, 0), (0, cin_pad - c), (0, cp - o)))
        wf = w.reshape(3, 3 * cin_pad, cp)               # K = ky*Cin + c, per kx
        if 9 * cin_pad <= LANE:                          # tiny Cin: single matmul
            wf = wf.reshape(1, 9 * cin_pad, cp)          # K = kx*3Cin + ky*Cin + c
        return wf.astype(jnp.bfloat16)

    vec = lambda v: jnp.pad(v, (0, cp - cout)).reshape(1, cp).astype(jnp.float32)
    return (prep_w(w1, cin), vec(g1), vec(be1),
            prep_w(w2, cp), vec(g2), vec(be2))


@functools.partial(jax.jit, static_argnames=("out_channels",))
def double_conv_pallas(x_nchw, prepped, out_channels):
    """x_nchw: (N, Cin, H, W) f32.  Returns (N, Cout, H-4, W-4) f32."""
    w1f, g1p, be1p, w2f, g2p, be2p = prepped
    n, cin, h, w = x_nchw.shape
    cp = w1f.shape[-1]
    wp = _round_up(w, WPAD)
    ctile, vmem_limit = _tile_config(cp)

    # NCHW -> NHWC at the PyTorch boundary; pad width to the sublane tile.
    x = jnp.transpose(x_nchw, (0, 2, 3, 1))
    if wp != w:
        x = jnp.pad(x, ((0, 0), (0, 0), (0, wp - w), (0, 0)))

    # Layer 1: bf16 activation out (feeds layer 2's MXU directly, half HBM traffic).
    y1 = _conv_bn_relu(x, w1f, g1p, be1p, valid_w=w, out_dtype=jnp.bfloat16,
                       ctile=ctile, vmem_limit=vmem_limit)
    # Layer 2: f32 out.
    y2 = _conv_bn_relu(y1, w2f, g2p, be2p, valid_w=w - 2, out_dtype=jnp.float32,
                       ctile=ctile, vmem_limit=vmem_limit)

    # Drop width/channel padding, back to NCHW.
    out = y2[:, :, :w - 4, :out_channels]
    return jnp.transpose(out, (0, 3, 1, 2))


def _reference(x_nchw, params):
    """Pure-JAX f32 reference mirroring the PyTorch module (training-mode BN,
    conv biases included — they cancel under BN, which the test validates)."""
    w1, b1, g1, be1, w2, b2, g2, be2 = params

    def conv(x, w, b):
        y = jax.lax.conv_general_dilated(
            x, w, window_strides=(1, 1), padding='VALID',
            dimension_numbers=('NCHW', 'OIHW', 'NCHW'))
        return y + b[None, :, None, None]

    def bn_relu(y, g, be):
        mean = jnp.mean(y, axis=(0, 2, 3), keepdims=True)
        var = jnp.mean((y - mean) ** 2, axis=(0, 2, 3), keepdims=True)
        out = (y - mean) * jax.lax.rsqrt(var + EPS)
        out = out * g[None, :, None, None] + be[None, :, None, None]
        return jnp.maximum(out, 0.0)

    y = bn_relu(conv(x_nchw, w1, b1), g1, be1)
    return bn_relu(conv(y, w2, b2), g2, be2)


def make_params(key, in_channels, out_channels):
    k1, k2, k3, k4 = jax.random.split(key, 4)
    w1 = jax.random.normal(k1, (out_channels, in_channels, 3, 3),
                           jnp.float32) / np.sqrt(in_channels * 9)
    b1 = jax.random.normal(k2, (out_channels,), jnp.float32) * 0.01
    w2 = jax.random.normal(k3, (out_channels, out_channels, 3, 3),
                           jnp.float32) / np.sqrt(out_channels * 9)
    b2 = jax.random.normal(k4, (out_channels,), jnp.float32) * 0.01
    g1 = jnp.ones((out_channels,), jnp.float32)    # BatchNorm2d default weight
    be1 = jnp.zeros((out_channels,), jnp.float32)  # BatchNorm2d default bias
    g2 = jnp.ones((out_channels,), jnp.float32)
    be2 = jnp.zeros((out_channels,), jnp.float32)
    return (w1, b1, g1, be1, w2, b2, g2, be2)


if __name__ == "__main__":
    key = jax.random.PRNGKey(0)
    kx0, kp0, kx1, kp1 = jax.random.split(key, 4)

    # Config 1: the module's expected small shapes.
    # Config 2: exercises width padding / valid-column masking (W=15), Cout
    #           channel padding, and the multi-Cout-block path (Cout > 128),
    #           which the review flagged as previously untested.
    configs = [((2, 4, 8, 16, 16), (kx0, kp0)),
               ((1, 5, 160, 12, 15), (kx1, kp1))]

    for (n, cin, cout, h, w), (kx, kp) in configs:
        x = jax.random.normal(kx, (n, cin, h, w), jnp.float32)
        params = make_params(kp, cin, cout)
        prepped = prepare_params(params)

        out = jax.block_until_ready(double_conv_pallas(x, prepped, out_channels=cout))
        ref = jax.block_until_ready(_reference(x, params))

        assert out.shape == (n, cout, h - 4, w - 4), out.shape
        # Tolerance covers bf16 MXU operands + bf16 inter-layer activation vs
        # the full-f32 reference (typical error is far smaller; two-pass BN
        # variance removes the previous one-pass cancellation issue).
        np.testing.assert_allclose(np.asarray(out), np.asarray(ref),
                                   rtol=5e-2, atol=5e-2)
    print("KERNEL_OK")
</pallas_src>

<mosaic_0001>
module attributes {stable_mosaic.version = 11 : i64} {
  func.func @_conv_bn_relu_kernel(%arg0: i32, %arg1: memref<2x16x16x4xf32, #tpu.memory_space<vmem>>, %arg2: memref<1x36x128xbf16, #tpu.memory_space<vmem>>, %arg3: memref<1x128xf32, #tpu.memory_space<vmem>>, %arg4: memref<1x128xf32, #tpu.memory_space<vmem>>, %arg5: memref<2x14x16x128xbf16, #tpu.memory_space<vmem>>) attributes {dimension_semantics = [#tpu.dimension_semantics<parallel>], iteration_bounds = array<i64: 1>, scalar_prefetch = 0 : i64, scratch_operands = 0 : i64, tpu.core_type = #tpu.core_type<tc>, window_params = [{pipeline_mode = #tpu.pipeline_mode<synchronous>, transform_indices = @transform_0, window_bounds = array<i64: 2, 16, 16, 4>}, {transform_indices = @transform_1, window_bounds = array<i64: 1, 36, 128>}, {transform_indices = @transform_2, window_bounds = array<i64: 1, 128>}, {transform_indices = @transform_3, window_bounds = array<i64: 1, 128>}, {transform_indices = @transform_4, window_bounds = array<i64: 2, 14, 16, 128>}]} {
    %c0 = arith.constant 0 : index
    %c0_0 = arith.constant 0 : index
    %c0_1 = arith.constant 0 : index
    %c0_2 = arith.constant 0 : index
    %0 = vector.load %arg1[%c0, %c0_0, %c0_1, %c0_2] : memref<2x16x16x4xf32, #tpu.memory_space<vmem>>, vector<2x16x16x4xf32>
    %1 = arith.truncf %0 : vector<2x16x16x4xf32> to vector<2x16x16x4xbf16>
    %2 = vector.extract_strided_slice %1 {offsets = [0, 0, 0, 0], sizes = [2, 14, 16, 4], strides = [1, 1, 1, 1]} : vector<2x16x16x4xbf16> to vector<2x14x16x4xbf16>
    %3 = vector.extract_strided_slice %1 {offsets = [0, 1, 0, 0], sizes = [2, 14, 16, 4], strides = [1, 1, 1, 1]} : vector<2x16x16x4xbf16> to vector<2x14x16x4xbf16>
    %4 = vector.extract_strided_slice %1 {offsets = [0, 2, 0, 0], sizes = [2, 14, 16, 4], strides = [1, 1, 1, 1]} : vector<2x16x16x4xbf16> to vector<2x14x16x4xbf16>
    %5 = vector.extract_strided_slice %1 {offsets = [0, 0, 1, 0], sizes = [2, 16, 15, 4], strides = [1, 1, 1, 1]} : vector<2x16x16x4xbf16> to vector<2x16x15x4xbf16>
    %cst = arith.constant 0.000000e+00 : bf16
    %6 = vector.broadcast %cst : bf16 to vector<2x16x1x4xbf16>
    %7 = tpu.concatenate %5, %6 in 2 : vector<2x16x15x4xbf16>, vector<2x16x1x4xbf16> -> vector<2x16x16x4xbf16>
    %8 = vector.extract_strided_slice %7 {offsets = [0, 0, 0, 0], sizes = [2, 14, 16, 4], strides = [1, 1, 1, 1]} : vector<2x16x16x4xbf16> to vector<2x14x16x4xbf16>
    %9 = vector.extract_strided_slice %7 {offsets = [0, 1, 0, 0], sizes = [2, 14, 16, 4], strides = [1, 1, 1, 1]} : vector<2x16x16x4xbf16> to vector<2x14x16x4xbf16>
    %10 = vector.extract_strided_slice %7 {offsets = [0, 2, 0, 0], sizes = [2, 14, 16, 4], strides = [1, 1, 1, 1]} : vector<2x16x16x4xbf16> to vector<2x14x16x4xbf16>
    %11 = vector.extract_strided_slice %1 {offsets = [0, 0, 2, 0], sizes = [2, 16, 14, 4], strides = [1, 1, 1, 1]} : vector<2x16x16x4xbf16> to vector<2x16x14x4xbf16>
    %cst_3 = arith.constant 0.000000e+00 : bf16
    %12 = vector.broadcast %cst_3 : bf16 to vector<2x16x2x4xbf16>
    %13 = tpu.concatenate %11, %12 in 2 : vector<2x16x14x4xbf16>, vector<2x16x2x4xbf16> -> vector<2x16x16x4xbf16>
    %14 = vector.extract_strided_slice %13 {offsets = [0, 0, 0, 0], sizes = [2, 14, 16, 4], strides = [1, 1, 1, 1]} : vector<2x16x16x4xbf16> to vector<2x14x16x4xbf16>
    %15 = vector.extract_strided_slice %13 {offsets = [0, 1, 0, 0], sizes = [2, 14, 16, 4], strides = [1, 1, 1, 1]} : vector<2x16x16x4xbf16> to vector<2x14x16x4xbf16>
    %16 = vector.extract_strided_slice %13 {offsets = [0, 2, 0, 0], sizes = [2, 14, 16, 4], strides = [1, 1, 1, 1]} : vector<2x16x16x4xbf16> to vector<2x14x16x4xbf16>
    %17 = tpu.concatenate %2, %3, %4, %8, %9, %10, %14, %15, %16 in 3 : vector<2x14x16x4xbf16>, vector<2x14x16x4xbf16>, vector<2x14x16x4xbf16>, vector<2x14x16x4xbf16>, vector<2x14x16x4xbf16>, vector<2x14x16x4xbf16>, vector<2x14x16x4xbf16>, vector<2x14x16x4xbf16>, vector<2x14x16x4xbf16> -> vector<2x14x16x36xbf16>
    %18 = vector.shape_cast %17 : vector<2x14x16x36xbf16> to vector<448x36xbf16>
    %c0_4 = arith.constant 0 : index
    %c0_5 = arith.constant 0 : index
    %c0_6 = arith.constant 0 : index
    %19 = vector.load %arg2[%c0_4, %c0_5, %c0_6] : memref<1x36x128xbf16, #tpu.memory_space<vmem>>, vector<1x36x128xbf16>
    %20 = vector.shape_cast %19 : vector<1x36x128xbf16> to vector<36x128xbf16>
    %cst_7 = arith.constant dense<0.000000e+00> : vector<448x128xf32>
    %21 = tpu.matmul %18, %20, %cst_7 {dimension_numbers = #tpu.dot_dimension_numbers<[1], [0], [0], [1], [0, 0, 1, 1], [], []>} : vector<448x36xbf16>, vector<36x128xbf16>, vector<448x128xf32> -> vector<448x128xf32>
    %22 = vector.shape_cast %21 : vector<448x128xf32> to vector<2x14x16x128xf32>
    %23 = tpu.iota {dimensions = array<i32: 2>} : vector<1x1x16x1xi32>
    %c14_i32 = arith.constant 14 : i32
    %24 = vector.broadcast %c14_i32 : i32 to vector<1x1x16x1xi32>
    %25 = arith.cmpi slt, %23, %24 : vector<1x1x16x1xi32>
    %cst_8 = arith.constant 0.000000e+00 : f32
    %26 = vector.shape_cast %25 : vector<1x1x16x1xi1> to vector<1x1x16x1xi1>
    %27 = vector.broadcast %26 : vector<1x1x16x1xi1> to vector<2x14x16x128xi1>
    %28 = vector.broadcast %cst_8 : f32 to vector<2x14x16x128xf32>
    %29 = arith.select %27, %22, %28 : vector<2x14x16x128xi1>, vector<2x14x16x128xf32>
    %cst_9 = arith.constant dense<0.000000e+00> : vector<128xf32>
    %30 = vector.multi_reduction <add>, %29, %cst_9 [0, 1, 2] : vector<2x14x16x128xf32> to vector<128xf32>
    %31 = vector.shape_cast %30 : vector<128xf32> to vector<1x1x1x128xf32>
    %cst_10 = arith.constant 3.920000e+02 : f32
    %32 = vector.broadcast %cst_10 : f32 to vector<1x1x1x128xf32>
    %33 = arith.divf %31, %32 : vector<1x1x1x128xf32>
    %34 = vector.broadcast %33 : vector<1x1x1x128xf32> to vector<2x14x16x128xf32>
    %35 = arith.subf %22, %34 : vector<2x14x16x128xf32>
    %36 = arith.mulf %35, %35 : vector<2x14x16x128xf32>
    %cst_11 = arith.constant 0.000000e+00 : f32
    %37 = vector.shape_cast %25 : vector<1x1x16x1xi1> to vector<1x1x16x1xi1>
    %38 = vector.broadcast %37 : vector<1x1x16x1xi1> to vector<2x14x16x128xi1>
    %39 = vector.broadcast %cst_11 : f32 to vector<2x14x16x128xf32>
    %40 = arith.select %38, %36, %39 : vector<2x14x16x128xi1>, vector<2x14x16x128xf32>
    %cst_12 = arith.constant dense<0.000000e+00> : vector<128xf32>
    %41 = vector.multi_reduction <add>, %40, %cst_12 [0, 1, 2] : vector<2x14x16x128xf32> to vector<128xf32>
    %42 = vector.shape_cast %41 : vector<128xf32> to vector<1x1x1x128xf32>
    %cst_13 = arith.constant 3.920000e+02 : f32
    %43 = vector.broadcast %cst_13 : f32 to vector<1x1x1x128xf32>
    %44 = arith.divf %42, %43 : vector<1x1x1x128xf32>
    %c0_14 = arith.constant 0 : index
    %c0_15 = arith.constant 0 : index
    %45 = vector.load %arg3[%c0_14, %c0_15] : memref<1x128xf32, #tpu.memory_space<vmem>>, vector<1x128xf32>
    %46 = vector.shape_cast %45 : vector<1x128xf32> to vector<1x1x1x128xf32>
    %c0_16 = arith.constant 0 : index
    %c0_17 = arith.constant 0 : index
    %47 = vector.load %arg4[%c0_16, %c0_17] : memref<1x128xf32, #tpu.memory_space<vmem>>, vector<1x128xf32>
    %48 = vector.shape_cast %47 : vector<1x128xf32> to vector<1x1x1x128xf32>
    %cst_18 = arith.constant 9.99999974E-6 : f32
    %49 = vector.broadcast %cst_18 : f32 to vector<1x1x1x128xf32>
    %50 = arith.addf %44, %49 : vector<1x1x1x128xf32>
    %51 = math.rsqrt %50 : vector<1x1x1x128xf32>
    %52 = arith.mulf %46, %51 : vector<1x1x1x128xf32>
    %53 = arith.mulf %33, %52 : vector<1x1x1x128xf32>
    %54 = arith.subf %48, %53 : vector<1x1x1x128xf32>
    %55 = vector.broadcast %52 : vector<1x1x1x128xf32> to vector<2x14x16x128xf32>
    %56 = arith.mulf %22, %55 : vector<2x14x16x128xf32>
    %57 = vector.broadcast %54 : vector<1x1x1x128xf32> to vector<2x14x16x128xf32>
    %58 = arith.addf %56, %57 : vector<2x14x16x128xf32>
    %cst_19 = arith.constant 0.000000e+00 : f32
    %59 = vector.broadcast %cst_19 : f32 to vector<2x14x16x128xf32>
    %60 = arith.maximumf %58, %59 : vector<2x14x16x128xf32>
    %61 = arith.truncf %60 : vector<2x14x16x128xf32> to vector<2x14x16x128xbf16>
    %c0_20 = arith.constant 0 : index
    %c0_21 = arith.constant 0 : index
    %c0_22 = arith.constant 0 : index
    %c0_23 = arith.constant 0 : index
    %62 = vector.load %arg5[%c0_20, %c0_21, %c0_22, %c0_23] : memref<2x14x16x128xbf16, #tpu.memory_space<vmem>>, vector<2x14x16x128xbf16>
    tpu.vector_store %arg5[%c0_20, %c0_21, %c0_22, %c0_23], %61 {strides = array<i32>} : memref<2x14x16x128xbf16, #tpu.memory_space<vmem>>, vector<2x14x16x128xbf16>,
    return
  }
  func.func @transform_0(%arg0: i32) -> (i32, i32, i32, i32) {
    %c0_i32 = arith.constant 0 : i32
    %c0_i32_0 = arith.constant 0 : i32
    %c0_i32_1 = arith.constant 0 : i32
    %c0_i32_2 = arith.constant 0 : i32
    %c0_i32_3 = arith.constant 0 : i32
    return %c0_i32, %c0_i32_0, %c0_i32_1, %c0_i32_2 : i32, i32, i32, i32
  }
  func.func @transform_1(%arg0: i32) -> (i32, i32, i32) {
    %c0_i32 = arith.constant 0 : i32
    %c0_i32_0 = arith.constant 0 : i32
    %c0_i32_1 = arith.constant 0 : i32
    return %c0_i32, %c0_i32_0, %arg0 : i32, i32, i32
  }
  func.func @transform_2(%arg0: i32) -> (i32, i32) {
    %c0_i32 = arith.constant 0 : i32
    %c0_i32_0 = arith.constant 0 : i32
    return %c0_i32, %arg0 : i32, i32
  }
  func.func @transform_3(%arg0: i32) -> (i32, i32) {
    %c0_i32 = arith.constant 0 : i32
    %c0_i32_0 = arith.constant 0 : i32
    return %c0_i32, %arg0 : i32, i32
  }
  func.func @transform_4(%arg0: i32) -> (i32, i32, i32, i32) {
    %c0_i32 = arith.constant 0 : i32
    %c0_i32_0 = arith.constant 0 : i32
    %c0_i32_1 = arith.constant 0 : i32
    %c0_i32_2 = arith.constant 0 : i32
    return %c0_i32, %c0_i32_0, %c0_i32_1, %arg0 : i32, i32, i32, i32
  }
}

module attributes {stable_mosaic.version = 11 : i64} {
  func.func @_conv_bn_relu_kernel(%arg0: i32, %arg1: memref<2x14x16x128xbf16, #tpu.memory_space<vmem>>, %arg2: memref<3x384x128xbf16, #tpu.memory_space<vmem>>, %arg3: memref<1x128xf32, #tpu.memory_space<vmem>>, %arg4: memref<1x128xf32, #tpu.memory_space<vmem>>, %arg5: memref<2x12x16x128xf32, #tpu.memory_space<vmem>>) attributes {dimension_semantics = [#tpu.dimension_semantics<parallel>], iteration_bounds = array<i64: 1>, scalar_prefetch = 0 : i64, scratch_operands = 0 : i64, tpu.core_type = #tpu.core_type<tc>, window_params = [{pipeline_mode = #tpu.pipeline_mode<synchronous>, transform_indices = @transform_0, window_bounds = array<i64: 2, 14, 16, 128>}, {transform_indices = @transform_1, window_bounds = array<i64: 3, 384, 128>}, {transform_indices = @transform_2, window_bounds = array<i64: 1, 128>}, {transform_indices = @transform_3, window_bounds = array<i64: 1, 128>}, {transform_indices = @transform_4, window_bounds = array<i64: 2, 12, 16, 128>}]} {
    %c0 = arith.constant 0 : index
    %c0_0 = arith.constant 0 : index
    %c0_1 = arith.constant 0 : index
    %c0_2 = arith.constant 0 : index
    %0 = vector.load %arg1[%c0, %c0_0, %c0_1, %c0_2] : memref<2x14x16x128xbf16, #tpu.memory_space<vmem>>, vector<2x14x16x128xbf16>
    %1 = vector.extract_strided_slice %0 {offsets = [0, 0, 0, 0], sizes = [2, 12, 16, 128], strides = [1, 1, 1, 1]} : vector<2x14x16x128xbf16> to vector<2x12x16x128xbf16>
    %2 = vector.extract_strided_slice %0 {offsets = [0, 1, 0, 0], sizes = [2, 12, 16, 128], strides = [1, 1, 1, 1]} : vector<2x14x16x128xbf16> to vector<2x12x16x128xbf16>
    %3 = vector.extract_strided_slice %0 {offsets = [0, 2, 0, 0], sizes = [2, 12, 16, 128], strides = [1, 1, 1, 1]} : vector<2x14x16x128xbf16> to vector<2x12x16x128xbf16>
    %4 = tpu.concatenate %1, %2, %3 in 3 : vector<2x12x16x128xbf16>, vector<2x12x16x128xbf16>, vector<2x12x16x128xbf16> -> vector<2x12x16x384xbf16>
    %5 = vector.shape_cast %4 : vector<2x12x16x384xbf16> to vector<384x384xbf16>
    %c0_3 = arith.constant 0 : index
    %c0_4 = arith.constant 0 : index
    %c0_5 = arith.constant 0 : index
    %6 = vector.load %arg2[%c0_3, %c0_4, %c0_5] : memref<3x384x128xbf16, #tpu.memory_space<vmem>>, vector<1x384x128xbf16>
    %7 = vector.shape_cast %6 : vector<1x384x128xbf16> to vector<384x128xbf16>
    %cst = arith.constant dense<0.000000e+00> : vector<384x128xf32>
    %8 = tpu.matmul %5, %7, %cst {dimension_numbers = #tpu.dot_dimension_numbers<[1], [0], [0], [1], [0, 0, 1, 1], [], []>} : vector<384x384xbf16>, vector<384x128xbf16>, vector<384x128xf32> -> vector<384x128xf32>
    %9 = vector.extract_strided_slice %0 {offsets = [0, 0, 1, 0], sizes = [2, 14, 15, 128], strides = [1, 1, 1, 1]} : vector<2x14x16x128xbf16> to vector<2x14x15x128xbf16>
    %cst_6 = arith.constant 0.000000e+00 : bf16
    %10 = vector.broadcast %cst_6 : bf16 to vector<2x14x1x128xbf16>
    %11 = tpu.concatenate %9, %10 in 2 : vector<2x14x15x128xbf16>, vector<2x14x1x128xbf16> -> vector<2x14x16x128xbf16>
    %12 = vector.extract_strided_slice %11 {offsets = [0, 0, 0, 0], sizes = [2, 12, 16, 128], strides = [1, 1, 1, 1]} : vector<2x14x16x128xbf16> to vector<2x12x16x128xbf16>
    %13 = vector.extract_strided_slice %11 {offsets = [0, 1, 0, 0], sizes = [2, 12, 16, 128], strides = [1, 1, 1, 1]} : vector<2x14x16x128xbf16> to vector<2x12x16x128xbf16>
    %14 = vector.extract_strided_slice %11 {offsets = [0, 2, 0, 0], sizes = [2, 12, 16, 128], strides = [1, 1, 1, 1]} : vector<2x14x16x128xbf16> to vector<2x12x16x128xbf16>
    %15 = tpu.concatenate %12, %13, %14 in 3 : vector<2x12x16x128xbf16>, vector<2x12x16x128xbf16>, vector<2x12x16x128xbf16> -> vector<2x12x16x384xbf16>
    %16 = vector.shape_cast %15 : vector<2x12x16x384xbf16> to vector<384x384xbf16>
    %c1 = arith.constant 1 : index
    %c0_7 = arith.constant 0 : index
    %c0_8 = arith.constant 0 : index
    %17 = vector.load %arg2[%c1, %c0_7, %c0_8] : memref<3x384x128xbf16, #tpu.memory_space<vmem>>, vector<1x384x128xbf16>
    %18 = vector.shape_cast %17 : vector<1x384x128xbf16> to vector<384x128xbf16>
    %cst_9 = arith.constant dense<0.000000e+00> : vector<384x128xf32>
    %19 = tpu.matmul %16, %18, %cst_9 {dimension_numbers = #tpu.dot_dimension_numbers<[1], [0], [0], [1], [0, 0, 1, 1], [], []>} : vector<384x384xbf16>, vector<384x128xbf16>, vector<384x128xf32> -> vector<384x128xf32>
    %20 = arith.addf %8, %19 : vector<384x128xf32>
    %21 = vector.extract_strided_slice %0 {offsets = [0, 0, 2, 0], sizes = [2, 14, 14, 128], strides = [1, 1, 1, 1]} : vector<2x14x16x128xbf16> to vector<2x14x14x128xbf16>
    %cst_10 = arith.constant 0.000000e+00 : bf16
    %22 = vector.broadcast %cst_10 : bf16 to vector<2x14x2x128xbf16>
    %23 = tpu.concatenate %21, %22 in 2 : vector<2x14x14x128xbf16>, vector<2x14x2x128xbf16> -> vector<2x14x16x128xbf16>
    %24 = vector.extract_strided_slice %23 {offsets = [0, 0, 0, 0], sizes = [2, 12, 16, 128], strides = [1, 1, 1, 1]} : vector<2x14x16x128xbf16> to vector<2x12x16x128xbf16>
    %25 = vector.extract_strided_slice %23 {offsets = [0, 1, 0, 0], sizes = [2, 12, 16, 128], strides = [1, 1, 1, 1]} : vector<2x14x16x128xbf16> to vector<2x12x16x128xbf16>
    %26 = vector.extract_strided_slice %23 {offsets = [0, 2, 0, 0], sizes = [2, 12, 16, 128], strides = [1, 1, 1, 1]} : vector<2x14x16x128xbf16> to vector<2x12x16x128xbf16>
    %27 = tpu.concatenate %24, %25, %26 in 3 : vector<2x12x16x128xbf16>, vector<2x12x16x128xbf16>, vector<2x12x16x128xbf16> -> vector<2x12x16x384xbf16>
    %28 = vector.shape_cast %27 : vector<2x12x16x384xbf16> to vector<384x384xbf16>
    %c2 = arith.constant 2 : index
    %c0_11 = arith.constant 0 : index
    %c0_12 = arith.constant 0 : index
    %29 = vector.load %arg2[%c2, %c0_11, %c0_12] : memref<3x384x128xbf16, #tpu.memory_space<vmem>>, vector<1x384x128xbf16>
    %30 = vector.shape_cast %29 : vector<1x384x128xbf16> to vector<384x128xbf16>
    %cst_13 = arith.constant dense<0.000000e+00> : vector<384x128xf32>
    %31 = tpu.matmul %28, %30, %cst_13 {dimension_numbers = #tpu.dot_dimension_numbers<[1], [0], [0], [1], [0, 0, 1, 1], [], []>} : vector<384x384xbf16>, vector<384x128xbf16>, vector<384x128xf32> -> vector<384x128xf32>
    %32 = arith.addf %20, %31 : vector<384x128xf32>
    %33 = vector.shape_cast %32 : vector<384x128xf32> to vector<2x12x16x128xf32>
    %34 = tpu.iota {dimensions = array<i32: 2>} : vector<1x1x16x1xi32>
    %c12_i32 = arith.constant 12 : i32
    %35 = vector.broadcast %c12_i32 : i32 to vector<1x1x16x1xi32>
    %36 = arith.cmpi slt, %34, %35 : vector<1x1x16x1xi32>
    %cst_14 = arith.constant 0.000000e+00 : f32
    %37 = vector.shape_cast %36 : vector<1x1x16x1xi1> to vector<1x1x16x1xi1>
    %38 = vector.broadcast %37 : vector<1x1x16x1xi1> to vector<2x12x16x128xi1>
    %39 = vector.broadcast %cst_14 : f32 to vector<2x12x16x128xf32>
    %40 = arith.select %38, %33, %39 : vector<2x12x16x128xi1>, vector<2x12x16x128xf32>
    %cst_15 = arith.constant dense<0.000000e+00> : vector<128xf32>
    %41 = vector.multi_reduction <add>, %40, %cst_15 [0, 1, 2] : vector<2x12x16x128xf32> to vector<128xf32>
    %42 = vector.shape_cast %41 : vector<128xf32> to vector<1x1x1x128xf32>
    %cst_16 = arith.constant 2.880000e+02 : f32
    %43 = vector.broadcast %cst_16 : f32 to vector<1x1x1x128xf32>
    %44 = arith.divf %42, %43 : vector<1x1x1x128xf32>
    %45 = vector.broadcast %44 : vector<1x1x1x128xf32> to vector<2x12x16x128xf32>
    %46 = arith.subf %33, %45 : vector<2x12x16x128xf32>
    %47 = arith.mulf %46, %46 : vector<2x12x16x128xf32>
    %cst_17 = arith.constant 0.000000e+00 : f32
    %48 = vector.shape_cast %36 : vector<1x1x16x1xi1> to vector<1x1x16x1xi1>
    %49 = vector.broadcast %48 : vector<1x1x16x1xi1> to vector<2x12x16x128xi1>
    %50 = vector.broadcast %cst_17 : f32 to vector<2x12x16x128xf32>
    %51 = arith.select %49, %47, %50 : vector<2x12x16x128xi1>, vector<2x12x16x128xf32>
    %cst_18 = arith.constant dense<0.000000e+00> : vector<128xf32>
    %52 = vector.multi_reduction <add>, %51, %cst_18 [0, 1, 2] : vector<2x12x16x128xf32> to vector<128xf32>
    %53 = vector.shape_cast %52 : vector<128xf32> to vector<1x1x1x128xf32>
    %cst_19 = arith.constant 2.880000e+02 : f32
    %54 = vector.broadcast %cst_19 : f32 to vector<1x1x1x128xf32>
    %55 = arith.divf %53, %54 : vector<1x1x1x128xf32>
    %c0_20 = arith.constant 0 : index
    %c0_21 = arith.constant 0 : index
    %56 = vector.load %arg3[%c0_20, %c0_21] : memref<1x128xf32, #tpu.memory_space<vmem>>, vector<1x128xf32>
    %57 = vector.shape_cast %56 : vector<1x128xf32> to vector<1x1x1x128xf32>
    %c0_22 = arith.constant 0 : index
    %c0_23 = arith.constant 0 : index
    %58 = vector.load %arg4[%c0_22, %c0_23] : memref<1x128xf32, #tpu.memory_space<vmem>>, vector<1x128xf32>
    %59 = vector.shape_cast %58 : vector<1x128xf32> to vector<1x1x1x128xf32>
    %cst_24 = arith.constant 9.99999974E-6 : f32
    %60 = vector.broadcast %cst_24 : f32 to vector<1x1x1x128xf32>
    %61 = arith.addf %55, %60 : vector<1x1x1x128xf32>
    %62 = math.rsqrt %61 : vector<1x1x1x128xf32>
    %63 = arith.mulf %57, %62 : vector<1x1x1x128xf32>
    %64 = arith.mulf %44, %63 : vector<1x1x1x128xf32>
    %65 = arith.subf %59, %64 : vector<1x1x1x128xf32>
    %66 = vector.broadcast %63 : vector<1x1x1x128xf32> to vector<2x12x16x128xf32>
    %67 = arith.mulf %33, %66 : vector<2x12x16x128xf32>
    %68 = vector.broadcast %65 : vector<1x1x1x128xf32> to vector<2x12x16x128xf32>
    %69 = arith.addf %67, %68 : vector<2x12x16x128xf32>
    %cst_25 = arith.constant 0.000000e+00 : f32
    %70 = vector.broadcast %cst_25 : f32 to vector<2x12x16x128xf32>
    %71 = arith.maximumf %69, %70 : vector<2x12x16x128xf32>
    %c0_26 = arith.constant 0 : index
    %c0_27 = arith.constant 0 : index
    %c0_28 = arith.constant 0 : index
    %c0_29 = arith.constant 0 : index
    %72 = vector.load %arg5[%c0_26, %c0_27, %c0_28, %c0_29] : memref<2x12x16x128xf32, #tpu.memory_space<vmem>>, vector<2x12x16x128xf32>
    tpu.vector_store %arg5[%c0_26, %c0_27, %c0_28, %c0_29], %71 {strides = array<i32>} : memref<2x12x16x128xf32, #tpu.memory_space<vmem>>, vector<2x12x16x128xf32>,
    return
  }
  func.func @transform_0(%arg0: i32) -> (i32, i32, i32, i32) {
    %c0_i32 = arith.constant 0 : i32
    %c0_i32_0 = arith.constant 0 : i32
    %c0_i32_1 = arith.constant 0 : i32
    %c0_i32_2 = arith.constant 0 : i32
    %c0_i32_3 = arith.constant 0 : i32
    return %c0_i32, %c0_i32_0, %c0_i32_1, %c0_i32_2 : i32, i32, i32, i32
  }
  func.func @transform_1(%arg0: i32) -> (i32, i32, i32) {
    %c0_i32 = arith.constant 0 : i32
    %c0_i32_0 = arith.constant 0 : i32
    %c0_i32_1 = arith.constant 0 : i32
    return %c0_i32, %c0_i32_0, %arg0 : i32, i32, i32
  }
  func.func @transform_2(%arg0: i32) -> (i32, i32) {
    %c0_i32 = arith.constant 0 : i32
    %c0_i32_0 = arith.constant 0 : i32
    return %c0_i32, %arg0 : i32, i32
  }
  func.func @transform_3(%arg0: i32) -> (i32, i32) {
    %c0_i32 = arith.constant 0 : i32
    %c0_i32_0 = arith.constant 0 : i32
    return %c0_i32, %arg0 : i32, i32
  }
  func.func @transform_4(%arg0: i32) -> (i32, i32, i32, i32) {
    %c0_i32 = arith.constant 0 : i32
    %c0_i32_0 = arith.constant 0 : i32
    %c0_i32_1 = arith.constant 0 : i32
    %c0_i32_2 = arith.constant 0 : i32
    return %c0_i32, %c0_i32_0, %c0_i32_1, %arg0 : i32, i32, i32, i32
  }
}

</mosaic_0001>

<llo_original>
// kernel: double_conv_pallas.2
$region0: #{double_conv_pallas.2}
  #allocation0 [shape = 'u32[]', space=smem, size = 0x4, offset = 0x4, fixed_abs, tag = 'smem constant byte address 0x4 - core index']
  #allocation1 [shape = 'u32[72,128]{1,0:T(1,128)}', space=vmem, size = 0x9000, scoped, tag = 'internal scratch']
  %s0 = inlined_call_operand.vmem [shape: f32[2,16,16,4], index: 0, kind: input, shape index: {}]
  %s1 = inlined_call_operand.vmem [shape: bf16[1,36,128], index: 1, kind: input, shape index: {}]
  %s2 = inlined_call_operand.vmem [shape: f32[1,128], index: 2, kind: input, shape index: {}]
  %s3 = inlined_call_operand.vmem [shape: f32[1,128], index: 3, kind: input, shape index: {}]
  %s4 = inlined_call_operand.vmem [shape: bf16[2,14,16,128], index: 4, kind: output, shape index: {}]
  %s5 = sld [smem:[#allocation0]]
  $region26: #{double_conv_pallas.2} parent=0
    _
  %s7 = ssub.s32 1, %s5
  %s8 = scalar_select 0, %s7, %s5
  // Predicated region
  $region2: #{double_conv_pallas.2} parent=0 // pred_check
    _
  $region3: #{double_conv_pallas.2} parent=0 // pred_check_branch
    %10 = sbr.rel (0) target = $region5
  $region4: #{double_conv_pallas.2} parent=0 // pred_region
    _
  $region5: #{double_conv_pallas.2} parent=0 // pred_fallthru
    _
  // Predicated region
  $region6: #{double_conv_pallas.2} parent=0 // pred_check
    _
  $region7: #{double_conv_pallas.2} parent=0 // pred_check_branch
    %12 = sbr.rel (0) target = $region9
  $region8: #{double_conv_pallas.2} parent=0 // pred_region
    _
  $region9: #{double_conv_pallas.2} parent=0 // pred_fallthru
    _
  // Predicated region
  $region10: #{double_conv_pallas.2} parent=0 // pred_check
    _
  $region11: #{double_conv_pallas.2} parent=0 // pred_check_branch
    %14 = sbr.rel (0) target = $region13
  $region12: #{double_conv_pallas.2} parent=0 // pred_region
    _
  $region13: #{double_conv_pallas.2} parent=0 // pred_fallthru
    _
  // Predicated region
  $region14: #{double_conv_pallas.2} parent=0 // pred_check
    _
  $region15: #{double_conv_pallas.2} parent=0 // pred_check_branch
    %16 = sbr.rel (0) target = $region17
  $region16: #{double_conv_pallas.2} parent=0 // pred_region
    _
  $region17: #{double_conv_pallas.2} parent=0 // pred_fallthru
    _
  %v18 = vld [vmem:[%s0] sm:$0xff]
  %v19 = vld [vmem:[%s0 + $0x8] sm:$0xff]
  %v20 = vld [vmem:[%s0 + $0x10] sm:$0xff]
  %v21 = vld [vmem:[%s0 + $0x18] sm:$0xff]
  %v22 = vld [vmem:[%s0 + $0x20] sm:$0xff]
  %v23 = vld [vmem:[%s0 + $0x28] sm:$0xff]
  %v24 = vld [vmem:[%s0 + $0x30] sm:$0xff]
  %v25 = vld [vmem:[%s0 + $0x38] sm:$0xff]
  %v26 = vld [vmem:[%s0 + $0x40] sm:$0xff]
  %v27 = vld [vmem:[%s0 + $0x48] sm:$0xff]
  %v28 = vld [vmem:[%s0 + $0x50] sm:$0xff]
  %v29 = vld [vmem:[%s0 + $0x58] sm:$0xff]
  %v30 = vld [vmem:[%s0 + $0x60] sm:$0xff]
  %v31 = vld [vmem:[%s0 + $0x68] sm:$0xff]
  %v32 = vld [vmem:[%s0 + $0x70] sm:$0xff]
  %v33 = vld [vmem:[%s0 + $0x78] sm:$0xff]
  %v34 = vld [vmem:[%s0 + $0x80] sm:$0xff]
  %v35 = vld [vmem:[%s0 + $0x88] sm:$0xff]
  %v36 = vld [vmem:[%s0 + $0x90] sm:$0xff]
  %v37 = vld [vmem:[%s0 + $0x98] sm:$0xff]
  %v38 = vld [vmem:[%s0 + $0xa0] sm:$0xff]
  %v39 = vld [vmem:[%s0 + $0xa8] sm:$0xff]
  %v40 = vld [vmem:[%s0 + $0xb0] sm:$0xff]
  %v41 = vld [vmem:[%s0 + $0xb8] sm:$0xff]
  %v42 = vld [vmem:[%s0 + $0xc0] sm:$0xff]
  %v43 = vld [vmem:[%s0 + $0xc8] sm:$0xff]
  %v44 = vld [vmem:[%s0 + $0xd0] sm:$0xff]
  %v45 = vld [vmem:[%s0 + $0xd8] sm:$0xff]
  %v46 = vld [vmem:[%s0 + $0xe0] sm:$0xff]
  %v47 = vld [vmem:[%s0 + $0xe8] sm:$0xff]
  %v48 = vld [vmem:[%s0 + $0xf0] sm:$0xff]
  %v49 = vld [vmem:[%s0 + $0xf8] sm:$0xff]
  %v50 = vld [vmem:[%s0 + $0x100] sm:$0xff]
  %v51 = vld [vmem:[%s0 + $0x108] sm:$0xff]
  %v52 = vld [vmem:[%s0 + $0x110] sm:$0xff]
  %v53 = vld [vmem:[%s0 + $0x118] sm:$0xff]
  %v54 = vld [vmem:[%s0 + $0x120] sm:$0xff]
  %v55 = vld [vmem:[%s0 + $0x128] sm:$0xff]
  %v56 = vld [vmem:[%s0 + $0x130] sm:$0xff]
  %v57 = vld [vmem:[%s0 + $0x138] sm:$0xff]
  %v58 = vld [vmem:[%s0 + $0x140] sm:$0xff]
  %v59 = vld [vmem:[%s0 + $0x148] sm:$0xff]
  %v60 = vld [vmem:[%s0 + $0x150] sm:$0xff]
  %v61 = vld [vmem:[%s0 + $0x158] sm:$0xff]
  %v62 = vld [vmem:[%s0 + $0x160] sm:$0xff]
  %v63 = vld [vmem:[%s0 + $0x168] sm:$0xff]
  %v64 = vld [vmem:[%s0 + $0x170] sm:$0xff]
  %v65 = vld [vmem:[%s0 + $0x178] sm:$0xff]
  %v66 = vld [vmem:[%s0 + $0x180] sm:$0xff]
  %v67 = vld [vmem:[%s0 + $0x188] sm:$0xff]
  %v68 = vld [vmem:[%s0 + $0x190] sm:$0xff]
  %v69 = vld [vmem:[%s0 + $0x198] sm:$0xff]
  %v70 = vld [vmem:[%s0 + $0x1a0] sm:$0xff]
  %v71 = vld [vmem:[%s0 + $0x1a8] sm:$0xff]
  %v72 = vld [vmem:[%s0 + $0x1b0] sm:$0xff]
  %v73 = vld [vmem:[%s0 + $0x1b8] sm:$0xff]
  %v74 = vld [vmem:[%s0 + $0x1c0] sm:$0xff]
  %v75 = vld [vmem:[%s0 + $0x1c8] sm:$0xff]
  %v76 = vld [vmem:[%s0 + $0x1d0] sm:$0xff]
  %v77 = vld [vmem:[%s0 + $0x1d8] sm:$0xff]
  %v78 = vld [vmem:[%s0 + $0x1e0] sm:$0xff]
  %v79 = vld [vmem:[%s0 + $0x1e8] sm:$0xff]
  %v80 = vld [vmem:[%s0 + $0x1f0] sm:$0xff]
  %v81 = vld [vmem:[%s0 + $0x1f8] sm:$0xff]
  %v82 = vpack.c.bf16 %v18, %v18
  %v83 = vpack.c.bf16 %v19, %v19
  %v84 = vpack.c.bf16 %v20, %v20
  %v85 = vpack.c.bf16 %v21, %v21
  %v86 = vpack.c.bf16 %v22, %v22
  %v87 = vpack.c.bf16 %v23, %v23
  %v88 = vpack.c.bf16 %v24, %v24
  %v89 = vpack.c.bf16 %v25, %v25
  %v90 = vpack.c.bf16 %v26, %v26
  %v91 = vpack.c.bf16 %v27, %v27
  %v92 = vpack.c.bf16 %v28, %v28
  %v93 = vpack.c.bf16 %v29, %v29
  %v94 = vpack.c.bf16 %v30, %v30
  %v95 = vpack.c.bf16 %v31, %v31
  %v96 = vpack.c.bf16 %v32, %v32
  %v97 = vpack.c.bf16 %v33, %v33
  %v98 = vpack.c.bf16 %v34, %v34
  %v99 = vpack.c.bf16 %v35, %v35
  %v100 = vpack.c.bf16 %v36, %v36
  %v101 = vpack.c.bf16 %v37, %v37
  %v102 = vpack.c.bf16 %v38, %v38
  %v103 = vpack.c.bf16 %v39, %v39
  %v104 = vpack.c.bf16 %v40, %v40
  %v105 = vpack.c.bf16 %v41, %v41
  %v106 = vpack.c.bf16 %v42, %v42
  %v107 = vpack.c.bf16 %v43, %v43
  %v108 = vpack.c.bf16 %v44, %v44
  %v109 = vpack.c.bf16 %v45, %v45
  %v110 = vpack.c.bf16 %v46, %v46
  %v111 = vpack.c.bf16 %v47, %v47
  %v112 = vpack.c.bf16 %v48, %v48
  %v113 = vpack.c.bf16 %v49, %v49
  %v114 = vpack.c.bf16 %v50, %v50
  %v115 = vpack.c.bf16 %v51, %v51
  %v116 = vpack.c.bf16 %v52, %v52
  %v117 = vpack.c.bf16 %v53, %v53
  %v118 = vpack.c.bf16 %v54, %v54
  %v119 = vpack.c.bf16 %v55, %v55
  %v120 = vpack.c.bf16 %v56, %v56
  %v121 = vpack.c.bf16 %v57, %v57
  %v122 = vpack.c.bf16 %v58, %v58
  %v123 = vpack.c.bf16 %v59, %v59
  %v124 = vpack.c.bf16 %v60, %v60
  %v125 = vpack.c.bf16 %v61, %v61
  %v126 = vpack.c.bf16 %v62, %v62
  %v127 = vpack.c.bf16 %v63, %v63
  %v128 = vpack.c.bf16 %v64, %v64
  %v129 = vpack.c.bf16 %v65, %v65
  %v130 = vpack.c.bf16 %v66, %v66
  %v131 = vpack.c.bf16 %v67, %v67
  %v132 = vpack.c.bf16 %v68, %v68
  %v133 = vpack.c.bf16 %v69, %v69
  %v134 = vpack.c.bf16 %v70, %v70
  %v135 = vpack.c.bf16 %v71, %v71
  %v136 = vpack.c.bf16 %v72, %v72
  %v137 = vpack.c.bf16 %v73, %v73
  %v138 = vpack.c.bf16 %v74, %v74
  %v139 = vpack.c.bf16 %v75, %v75
  %v140 = vpack.c.bf16 %v76, %v76
  %v141 = vpack.c.bf16 %v77, %v77
  %v142 = vpack.c.bf16 %v78, %v78
  %v143 = vpack.c.bf16 %v79, %v79
  %v144 = vpack.c.bf16 %v80, %v80
  %v145 = vpack.c.bf16 %v81, %v81
  %v210 = vunpack.c.l.b16 %v82
  %v211 = vunpack.c.l.b16 %v83
  %v212 = vunpack.c.l.b16 %v84
  %v213 = vunpack.c.l.b16 %v85
  %v214 = vunpack.c.l.b16 %v86
  %v215 = vunpack.c.l.b16 %v87
  %v216 = vunpack.c.l.b16 %v88
  %v217 = vunpack.c.l.b16 %v89
  %v218 = vunpack.c.l.b16 %v90
  %v219 = vunpack.c.l.b16 %v91
  %v220 = vunpack.c.l.b16 %v92
  %v221 = vunpack.c.l.b16 %v93
  %v222 = vunpack.c.l.b16 %v94
  %v223 = vunpack.c.l.b16 %v95
  %v224 = vunpack.c.l.b16 %v96
  %v225 = vunpack.c.l.b16 %v97
  %v226 = vunpack.c.l.b16 %v98
  %v227 = vunpack.c.l.b16 %v99
  %v228 = vunpack.c.l.b16 %v100
  %v229 = vunpack.c.l.b16 %v101
  %v230 = vunpack.c.l.b16 %v102
  %v231 = vunpack.c.l.b16 %v103
  %v232 = vunpack.c.l.b16 %v104
  %v233 = vunpack.c.l.b16 %v105
  %v234 = vunpack.c.l.b16 %v106
  %v235 = vunpack.c.l.b16 %v107
  %v236 = vunpack.c.l.b16 %v108
  %v237 = vunpack.c.l.b16 %v109
  %v238 = vunpack.c.l.b16 %v110
  %v239 = vunpack.c.l.b16 %v111
  %v240 = vunpack.c.l.b16 %v112
  %v241 = vunpack.c.l.b16 %v113
  %v242 = vunpack.c.l.b16 %v114
  %v243 = vunpack.c.l.b16 %v115
  %v244 = vunpack.c.l.b16 %v116
  %v245 = vunpack.c.l.b16 %v117
  %v246 = vunpack.c.l.b16 %v118
  %v247 = vunpack.c.l.b16 %v119
  %v248 = vunpack.c.l.b16 %v120
  %v249 = vunpack.c.l.b16 %v121
  %v250 = vunpack.c.l.b16 %v122
  %v251 = vunpack.c.l.b16 %v123
  %v252 = vunpack.c.l.b16 %v124
  %v253 = vunpack.c.l.b16 %v125
  %v254 = vunpack.c.l.b16 %v126
  %v255 = vunpack.c.l.b16 %v127
  %v256 = vunpack.c.l.b16 %v128
  %v257 = vunpack.c.l.b16 %v129
  %v258 = vunpack.c.l.b16 %v130
  %v259 = vunpack.c.l.b16 %v131
  %v260 = vunpack.c.l.b16 %v132
  %v261 = vunpack.c.l.b16 %v133
  %v262 = vunpack.c.l.b16 %v134
  %v263 = vunpack.c.l.b16 %v135
  %v264 = vunpack.c.l.b16 %v136
  %v265 = vunpack.c.l.b16 %v137
  %v266 = vunpack.c.l.b16 %v138
  %v267 = vunpack.c.l.b16 %v139
  %v268 = vunpack.c.l.b16 %v140
  %v269 = vunpack.c.l.b16 %v141
  %v270 = vunpack.c.l.b16 %v142
  %v271 = vunpack.c.l.b16 %v143
  %v272 = vunpack.c.l.b16 %v144
  %v273 = vunpack.c.l.b16 %v145
  %v274 = vpack.c.b16 %v211, %v210
  %v275 = vpack.c.b16 %v213, %v212
  %v276 = vpack.c.b16 %v215, %v214
  %v277 = vpack.c.b16 %v217, %v216
  %v278 = vpack.c.b16 %v219, %v218
  %v279 = vpack.c.b16 %v221, %v220
  %v280 = vpack.c.b16 %v223, %v222
  %v281 = vpack.c.b16 %v225, %v224
  %v282 = vpack.c.b16 %v227, %v226
  %v283 = vpack.c.b16 %v229, %v228
  %v284 = vpack.c.b16 %v231, %v230
  %v285 = vpack.c.b16 %v233, %v232
  %v286 = vpack.c.b16 %v235, %v234
  %v287 = vpack.c.b16 %v237, %v236
  %v288 = vpack.c.b16 %v239, %v238
  %v289 = vpack.c.b16 %v241, %v240
  %v290 = vpack.c.b16 %v243, %v242
  %v291 = vpack.c.b16 %v245, %v244
  %v292 = vpack.c.b16 %v247, %v246
  %v293 = vpack.c.b16 %v249, %v248
  %v294 = vpack.c.b16 %v251, %v250
  %v295 = vpack.c.b16 %v253, %v252
  %v296 = vpack.c.b16 %v255, %v254
  %v297 = vpack.c.b16 %v257, %v256
  %v298 = vpack.c.b16 %v259, %v258
  %v299 = vpack.c.b16 %v261, %v260
  %v300 = vpack.c.b16 %v263, %v262
  %v301 = vpack.c.b16 %v265, %v264
  %v302 = vpack.c.b16 %v267, %v266
  %v303 = vpack.c.b16 %v269, %v268
  %v304 = vpack.c.b16 %v271, %v270
  %v305 = vpack.c.b16 %v273, %v272
  %v307 = vshrl.u32 %v274, 16
  %v309 = vshll.u32 %v274, 16
  %v311 = vrot.slane %v309, 1
  %v312 = vor.u32 %v307, %v311
  %v314 = vshrl.u32 %v275, 16
  %v316 = vshll.u32 %v275, 16
  %v318 = vrot.slane %v316, 1
  %v319 = vor.u32 %v314, %v318
  %v321 = vshrl.u32 %v276, 16
  %v323 = vshll.u32 %v276, 16
  %v325 = vrot.slane %v323, 1
  %v326 = vor.u32 %v321, %v325
  %v328 = vshrl.u32 %v277, 16
  %v330 = vshll.u32 %v277, 16
  %v332 = vrot.slane %v330, 1
  %v333 = vor.u32 %v328, %v332
  %v335 = vshrl.u32 %v278, 16
  %v337 = vshll.u32 %v278, 16
  %v339 = vrot.slane %v337, 1
  %v340 = vor.u32 %v335, %v339
  %v342 = vshrl.u32 %v279, 16
  %v344 = vshll.u32 %v279, 16
  %v346 = vrot.slane %v344, 1
  %v347 = vor.u32 %v342, %v346
  %v349 = vshrl.u32 %v280, 16
  %v351 = vshll.u32 %v280, 16
  %v353 = vrot.slane %v351, 1
  %v354 = vor.u32 %v349, %v353
  %v356 = vshrl.u32 %v281, 16
  %v358 = vshll.u32 %v281, 16
  %v360 = vrot.slane %v358, 1
  %v361 = vor.u32 %v356, %v360
  %v363 = vshrl.u32 %v282, 16
  %v365 = vshll.u32 %v282, 16
  %v367 = vrot.slane %v365, 1
  %v368 = vor.u32 %v363, %v367
  %v370 = vshrl.u32 %v283, 16
  %v372 = vshll.u32 %v283, 16
  %v374 = vrot.slane %v372, 1
  %v375 = vor.u32 %v370, %v374
  %v377 = vshrl.u32 %v284, 16
  %v379 = vshll.u32 %v284, 16
  %v381 = vrot.slane %v379, 1
  %v382 = vor.u32 %v377, %v381
  %v384 = vshrl.u32 %v285, 16
  %v386 = vshll.u32 %v285, 16
  %v388 = vrot.slane %v386, 1
  %v389 = vor.u32 %v384, %v388
  %v391 = vshrl.u32 %v286, 16
  %v393 = vshll.u32 %v286, 16
  %v395 = vrot.slane %v393, 1
  %v396 = vor.u32 %v391, %v395
  %v398 = vshrl.u32 %v287, 16
  %v400 = vshll.u32 %v287, 16
  %v402 = vrot.slane %v400, 1
  %v403 = vor.u32 %v398, %v402
  %v405 = vshrl.u32 %v288, 16
  %v407 = vshll.u32 %v288, 16
  %v409 = vrot.slane %v407, 1
  %v410 = vor.u32 %v405, %v409
  %v412 = vshrl.u32 %v289, 16
  %v414 = vshll.u32 %v289, 16
  %v416 = vrot.slane %v414, 1
  %v417 = vor.u32 %v412, %v416
  %v419 = vshrl.u32 %v290, 16
  %v421 = vshll.u32 %v290, 16
  %v423 = vrot.slane %v421, 1
  %v424 = vor.u32 %v419, %v423
  %v426 = vshrl.u32 %v291, 16
  %v428 = vshll.u32 %v291, 16
  %v430 = vrot.slane %v428, 1
  %v431 = vor.u32 %v426, %v430
  %v433 = vshrl.u32 %v292, 16
  %v435 = vshll.u32 %v292, 16
  %v437 = vrot.slane %v435, 1
  %v438 = vor.u32 %v433, %v437
  %v440 = vshrl.u32 %v293, 16
  %v442 = vshll.u32 %v293, 16
  %v444 = vrot.slane %v442, 1
  %v445 = vor.u32 %v440, %v444
  %v447 = vshrl.u32 %v294, 16
  %v449 = vshll.u32 %v294, 16
  %v451 = vrot.slane %v449, 1
  %v452 = vor.u32 %v447, %v451
  %v454 = vshrl.u32 %v295, 16
  %v456 = vshll.u32 %v295, 16
  %v458 = vrot.slane %v456, 1
  %v459 = vor.u32 %v454, %v458
  %v461 = vshrl.u32 %v296, 16
  %v463 = vshll.u32 %v296, 16
  %v465 = vrot.slane %v463, 1
  %v466 = vor.u32 %v461, %v465
  %v468 = vshrl.u32 %v297, 16
  %v470 = vshll.u32 %v297, 16
  %v472 = vrot.slane %v470, 1
  %v473 = vor.u32 %v468, %v472
  %v475 = vshrl.u32 %v298, 16
  %v477 = vshll.u32 %v298, 16
  %v479 = vrot.slane %v477, 1
  %v480 = vor.u32 %v475, %v479
  %v482 = vshrl.u32 %v299, 16
  %v484 = vshll.u32 %v299, 16
  %v486 = vrot.slane %v484, 1
  %v487 = vor.u32 %v482, %v486
  %v489 = vshrl.u32 %v300, 16
  %v491 = vshll.u32 %v300, 16
  %v493 = vrot.slane %v491, 1
  %v494 = vor.u32 %v489, %v493
  %v496 = vshrl.u32 %v301, 16
  %v498 = vshll.u32 %v301, 16
  %v500 = vrot.slane %v498, 1
  %v501 = vor.u32 %v496, %v500
  %v503 = vshrl.u32 %v302, 16
  %v505 = vshll.u32 %v302, 16
  %v507 = vrot.slane %v505, 1
  %v508 = vor.u32 %v503, %v507
  %v510 = vshrl.u32 %v303, 16
  %v512 = vshll.u32 %v303, 16
  %v514 = vrot.slane %v512, 1
  %v515 = vor.u32 %v510, %v514
  %v517 = vshrl.u32 %v304, 16
  %v519 = vshll.u32 %v304, 16
  %v521 = vrot.slane %v519, 1
  %v522 = vor.u32 %v517, %v521
  %v524 = vshrl.u32 %v305, 16
  %v526 = vshll.u32 %v305, 16
  %v528 = vrot.slane %v526, 1
  %v529 = vor.u32 %v524, %v528
  %vm562 = vcmask 1047552
  %vm563 = vsmask.f32 7424
  %vm564 = vmand %vm562, %vm563
  %v565 = vsel %vm564, %v312, 0
  %v566 = vsel %vm564, %v319, 0
  %v567 = vsel %vm564, %v326, 0
  %v568 = vsel %vm564, %v333, 0
  %v569 = vsel %vm564, %v340, 0
  %v570 = vsel %vm564, %v347, 0
  %v571 = vsel %vm564, %v354, 0
  %v572 = vsel %vm564, %v361, 0
  %v573 = vsel %vm564, %v368, 0
  %v574 = vsel %vm564, %v375, 0
  %v575 = vsel %vm564, %v382, 0
  %v576 = vsel %vm564, %v389, 0
  %v577 = vsel %vm564, %v396, 0
  %v578 = vsel %vm564, %v403, 0
  %v579 = vsel %vm564, %v410, 0
  %v580 = vsel %vm564, %v417, 0
  %v581 = vsel %vm564, %v424, 0
  %v582 = vsel %vm564, %v431, 0
  %v583 = vsel %vm564, %v438, 0
  %v584 = vsel %vm564, %v445, 0
  %v585 = vsel %vm564, %v452, 0
  %v586 = vsel %vm564, %v459, 0
  %v587 = vsel %vm564, %v466, 0
  %v588 = vsel %vm564, %v473, 0
  %v589 = vsel %vm564, %v480, 0
  %v590 = vsel %vm564, %v487, 0
  %v591 = vsel %vm564, %v494, 0
  %v592 = vsel %vm564, %v501, 0
  %v593 = vsel %vm564, %v508, 0
  %v594 = vsel %vm564, %v515, 0
  %v595 = vsel %vm564, %v522, 0
  %v596 = vsel %vm564, %v529, 0
  %v597 = vrot.slane %v274, 1
  %v598 = vrot.slane %v275, 1
  %v599 = vrot.slane %v276, 1
  %v600 = vrot.slane %v277, 1
  %v601 = vrot.slane %v278, 1
  %v602 = vrot.slane %v279, 1
  %v603 = vrot.slane %v280, 1
  %v604 = vrot.slane %v281, 1
  %v605 = vrot.slane %v282, 1
  %v606 = vrot.slane %v283, 1
  %v607 = vrot.slane %v284, 1
  %v608 = vrot.slane %v285, 1
  %v609 = vrot.slane %v286, 1
  %v610 = vrot.slane %v287, 1
  %v611 = vrot.slane %v288, 1
  %v612 = vrot.slane %v289, 1
  %v613 = vrot.slane %v290, 1
  %v614 = vrot.slane %v291, 1
  %v615 = vrot.slane %v292, 1
  %v616 = vrot.slane %v293, 1
  %v617 = vrot.slane %v294, 1
  %v618 = vrot.slane %v295, 1
  %v619 = vrot.slane %v296, 1
  %v620 = vrot.slane %v297, 1
  %v621 = vrot.slane %v298, 1
  %v622 = vrot.slane %v299, 1
  %v623 = vrot.slane %v300, 1
  %v624 = vrot.slane %v301, 1
  %v625 = vrot.slane %v302, 1
  %v626 = vrot.slane %v303, 1
  %v627 = vrot.slane %v304, 1
  %v628 = vrot.slane %v305, 1
  %vm629 = vcmask 1046528
  %v632 = vsel %vm629, %v597, 0
  %v634 = vsel %vm629, %v598, 0
  %v636 = vsel %vm629, %v599, 0
  %v638 = vsel %vm629, %v600, 0
  %v640 = vsel %vm629, %v601, 0
  %v642 = vsel %vm629, %v602, 0
  %v644 = vsel %vm629, %v603, 0
  %v646 = vsel %vm629, %v604, 0
  %v648 = vsel %vm629, %v605, 0
  %v650 = vsel %vm629, %v606, 0
  %v652 = vsel %vm629, %v607, 0
  %v654 = vsel %vm629, %v608, 0
  %v656 = vsel %vm629, %v609, 0
  %v658 = vsel %vm629, %v610, 0
  %v660 = vsel %vm629, %v611, 0
  %v662 = vsel %vm629, %v612, 0
  %v664 = vsel %vm629, %v613, 0
  %v666 = vsel %vm629, %v614, 0
  %v668 = vsel %vm629, %v615, 0
  %v670 = vsel %vm629, %v616, 0
  %v672 = vsel %vm629, %v617, 0
  %v674 = vsel %vm629, %v618, 0
  %v676 = vsel %vm629, %v619, 0
  %v678 = vsel %vm629, %v620, 0
  %v680 = vsel %vm629, %v621, 0
  %v682 = vsel %vm629, %v622, 0
  %v684 = vsel %vm629, %v623, 0
  %v686 = vsel %vm629, %v624, 0
  %v688 = vsel %vm629, %v625, 0
  %v690 = vsel %vm629, %v626, 0
  %v692 = vsel %vm629, %v627, 0
  %v694 = vsel %vm629, %v628, 0
  %695 = vrot.lane.b32.xlu0 %v275, 4
  %v696 = vpop.permute.xlu0 %695
  %697 = vrot.lane.b32.xlu0 %v276, 4
  %v698 = vpop.permute.xlu0 %697
  %699 = vrot.lane.b32.xlu0 %v277, 4
  %v700 = vpop.permute.xlu0 %699
  %701 = vrot.lane.b32.xlu0 %v278, 4
  %v702 = vpop.permute.xlu0 %701
  %703 = vrot.lane.b32.xlu0 %v279, 4
  %v704 = vpop.permute.xlu0 %703
  %705 = vrot.lane.b32.xlu0 %v280, 4
  %v706 = vpop.permute.xlu0 %705
  %707 = vrot.lane.b32.xlu0 %v281, 4
  %v708 = vpop.permute.xlu0 %707
  %709 = vrot.lane.b32.xlu0 %v282, 4
  %v710 = vpop.permute.xlu0 %709
  %711 = vrot.lane.b32.xlu0 %v283, 4
  %v712 = vpop.permute.xlu0 %711
  %713 = vrot.lane.b32.xlu0 %v284, 4
  %v714 = vpop.permute.xlu0 %713
  %715 = vrot.lane.b32.xlu0 %v285, 4
  %v716 = vpop.permute.xlu0 %715
  %717 = vrot.lane.b32.xlu0 %v286, 4
  %v718 = vpop.permute.xlu0 %717
  %719 = vrot.lane.b32.xlu0 %v287, 4
  %v720 = vpop.permute.xlu0 %719
  %721 = vrot.lane.b32.xlu0 %v288, 4
  %v722 = vpop.permute.xlu0 %721
  %723 = vrot.lane.b32.xlu0 %v291, 4
  %v724 = vpop.permute.xlu0 %723
  %725 = vrot.lane.b32.xlu0 %v292, 4
  %v726 = vpop.permute.xlu0 %725
  %727 = vrot.lane.b32.xlu0 %v293, 4
  %v728 = vpop.permute.xlu0 %727
  %729 = vrot.lane.b32.xlu0 %v294, 4
  %v730 = vpop.permute.xlu0 %729
  %731 = vrot.lane.b32.xlu0 %v295, 4
  %v732 = vpop.permute.xlu0 %731
  %733 = vrot.lane.b32.xlu0 %v296, 4
  %v734 = vpop.permute.xlu0 %733
  %735 = vrot.lane.b32.xlu0 %v297, 4
  %v736 = vpop.permute.xlu0 %735
  %737 = vrot.lane.b32.xlu0 %v298, 4
  %v738 = vpop.permute.xlu0 %737
  %739 = vrot.lane.b32.xlu0 %v299, 4
  %v740 = vpop.permute.xlu0 %739
  %741 = vrot.lane.b32.xlu0 %v300, 4
  %v742 = vpop.permute.xlu0 %741
  %743 = vrot.lane.b32.xlu0 %v301, 4
  %v744 = vpop.permute.xlu0 %743
  %745 = vrot.lane.b32.xlu0 %v302, 4
  %v746 = vpop.permute.xlu0 %745
  %747 = vrot.lane.b32.xlu0 %v303, 4
  %v748 = vpop.permute.xlu0 %747
  %749 = vrot.lane.b32.xlu0 %v304, 4
  %v750 = vpop.permute.xlu0 %749
  %751 = vrot.lane.b32.xlu0 %v276, 8
  %v752 = vpop.permute.xlu0 %751
  %753 = vrot.lane.b32.xlu0 %v277, 8
  %v754 = vpop.permute.xlu0 %753
  %755 = vrot.lane.b32.xlu0 %v278, 8
  %v756 = vpop.permute.xlu0 %755
  %757 = vrot.lane.b32.xlu0 %v279, 8
  %v758 = vpop.permute.xlu0 %757
  %759 = vrot.lane.b32.xlu0 %v280, 8
  %v760 = vpop.permute.xlu0 %759
  %761 = vrot.lane.b32.xlu0 %v281, 8
  %v762 = vpop.permute.xlu0 %761
  %763 = vrot.lane.b32.xlu0 %v282, 8
  %v764 = vpop.permute.xlu0 %763
  %765 = vrot.lane.b32.xlu0 %v283, 8
  %v766 = vpop.permute.xlu0 %765
  %767 = vrot.lane.b32.xlu0 %v284, 8
  %v768 = vpop.permute.xlu0 %767
  %769 = vrot.lane.b32.xlu0 %v285, 8
  %v770 = vpop.permute.xlu0 %769
  %771 = vrot.lane.b32.xlu0 %v286, 8
  %v772 = vpop.permute.xlu0 %771
  %773 = vrot.lane.b32.xlu0 %v287, 8
  %v774 = vpop.permute.xlu0 %773
  %775 = vrot.lane.b32.xlu0 %v288, 8
  %v776 = vpop.permute.xlu0 %775
  %777 = vrot.lane.b32.xlu0 %v289, 8
  %v778 = vpop.permute.xlu0 %777
  %779 = vrot.lane.b32.xlu0 %v292, 8
  %v780 = vpop.permute.xlu0 %779
  %781 = vrot.lane.b32.xlu0 %v293, 8
  %v782 = vpop.permute.xlu0 %781
  %783 = vrot.lane.b32.xlu0 %v294, 8
  %v784 = vpop.permute.xlu0 %783
  %785 = vrot.lane.b32.xlu0 %v295, 8
  %v786 = vpop.permute.xlu0 %785
  %787 = vrot.lane.b32.xlu0 %v296, 8
  %v788 = vpop.permute.xlu0 %787
  %789 = vrot.lane.b32.xlu0 %v297, 8
  %v790 = vpop.permute.xlu0 %789
  %791 = vrot.lane.b32.xlu0 %v298, 8
  %v792 = vpop.permute.xlu0 %791
  %793 = vrot.lane.b32.xlu0 %v299, 8
  %v794 = vpop.permute.xlu0 %793
  %795 = vrot.lane.b32.xlu0 %v300, 8
  %v796 = vpop.permute.xlu0 %795
  %797 = vrot.lane.b32.xlu0 %v301, 8
  %v798 = vpop.permute.xlu0 %797
  %799 = vrot.lane.b32.xlu0 %v302, 8
  %v800 = vpop.permute.xlu0 %799
  %801 = vrot.lane.b32.xlu0 %v303, 8
  %v802 = vpop.permute.xlu0 %801
  %803 = vrot.lane.b32.xlu0 %v304, 8
  %v804 = vpop.permute.xlu0 %803
  %805 = vrot.lane.b32.xlu0 %v305, 8
  %v806 = vpop.permute.xlu0 %805
  %835 = vrot.lane.b32.xlu0 %v565, 12
  %v836 = vpop.permute.xlu0 %835
  %837 = vrot.lane.b32.xlu0 %v566, 12
  %v838 = vpop.permute.xlu0 %837
  %839 = vrot.lane.b32.xlu0 %v567, 12
  %v840 = vpop.permute.xlu0 %839
  %841 = vrot.lane.b32.xlu0 %v568, 12
  %v842 = vpop.permute.xlu0 %841
  %843 = vrot.lane.b32.xlu0 %v569, 12
  %v844 = vpop.permute.xlu0 %843
  %845 = vrot.lane.b32.xlu0 %v570, 12
  %v846 = vpop.permute.xlu0 %845
  %847 = vrot.lane.b32.xlu0 %v571, 12
  %v848 = vpop.permute.xlu0 %847
  %849 = vrot.lane.b32.xlu0 %v572, 12
  %v850 = vpop.permute.xlu0 %849
  %851 = vrot.lane.b32.xlu0 %v573, 12
  %v852 = vpop.permute.xlu0 %851
  %853 = vrot.lane.b32.xlu0 %v574, 12
  %v854 = vpop.permute.xlu0 %853
  %855 = vrot.lane.b32.xlu0 %v575, 12
  %v856 = vpop.permute.xlu0 %855
  %857 = vrot.lane.b32.xlu0 %v576, 12
  %v858 = vpop.permute.xlu0 %857
  %859 = vrot.lane.b32.xlu0 %v577, 12
  %v860 = vpop.permute.xlu0 %859
  %861 = vrot.lane.b32.xlu0 %v578, 12
  %v862 = vpop.permute.xlu0 %861
  %863 = vrot.lane.b32.xlu0 %v581, 12
  %v864 = vpop.permute.xlu0 %863
  %865 = vrot.lane.b32.xlu0 %v582, 12
  %v866 = vpop.permute.xlu0 %865
  %867 = vrot.lane.b32.xlu0 %v583, 12
  %v868 = vpop.permute.xlu0 %867
  %869 = vrot.lane.b32.xlu0 %v584, 12
  %v870 = vpop.permute.xlu0 %869
  %871 = vrot.lane.b32.xlu0 %v585, 12
  %v872 = vpop.permute.xlu0 %871
  %873 = vrot.lane.b32.xlu0 %v586, 12
  %v874 = vpop.permute.xlu0 %873
  %875 = vrot.lane.b32.xlu0 %v587, 12
  %v876 = vpop.permute.xlu0 %875
  %877 = vrot.lane.b32.xlu0 %v588, 12
  %v878 = vpop.permute.xlu0 %877
  %879 = vrot.lane.b32.xlu0 %v589, 12
  %v880 = vpop.permute.xlu0 %879
  %881 = vrot.lane.b32.xlu0 %v590, 12
  %v882 = vpop.permute.xlu0 %881
  %883 = vrot.lane.b32.xlu0 %v591, 12
  %v884 = vpop.permute.xlu0 %883
  %885 = vrot.lane.b32.xlu0 %v592, 12
  %v886 = vpop.permute.xlu0 %885
  %887 = vrot.lane.b32.xlu0 %v593, 12
  %v888 = vpop.permute.xlu0 %887
  %889 = vrot.lane.b32.xlu0 %v594, 12
  %v890 = vpop.permute.xlu0 %889
  %893 = vrot.lane.b32.xlu0 %v566, 16
  %v894 = vpop.permute.xlu0 %893
  %895 = vrot.lane.b32.xlu0 %v567, 16
  %v896 = vpop.permute.xlu0 %895
  %897 = vrot.lane.b32.xlu0 %v568, 16
  %v898 = vpop.permute.xlu0 %897
  %899 = vrot.lane.b32.xlu0 %v569, 16
  %v900 = vpop.permute.xlu0 %899
  %901 = vrot.lane.b32.xlu0 %v570, 16
  %v902 = vpop.permute.xlu0 %901
  %903 = vrot.lane.b32.xlu0 %v571, 16
  %v904 = vpop.permute.xlu0 %903
  %905 = vrot.lane.b32.xlu0 %v572, 16
  %v906 = vpop.permute.xlu0 %905
  %907 = vrot.lane.b32.xlu0 %v573, 16
  %v908 = vpop.permute.xlu0 %907
  %909 = vrot.lane.b32.xlu0 %v574, 16
  %v910 = vpop.permute.xlu0 %909
  %911 = vrot.lane.b32.xlu0 %v575, 16
  %v912 = vpop.permute.xlu0 %911
  %913 = vrot.lane.b32.xlu0 %v576, 16
  %v914 = vpop.permute.xlu0 %913
  %915 = vrot.lane.b32.xlu0 %v577, 16
  %v916 = vpop.permute.xlu0 %915
  %917 = vrot.lane.b32.xlu0 %v578, 16
  %v918 = vpop.permute.xlu0 %917
  %919 = vrot.lane.b32.xlu0 %v579, 16
  %v920 = vpop.permute.xlu0 %919
  %921 = vrot.lane.b32.xlu0 %v582, 16
  %v922 = vpop.permute.xlu0 %921
  %923 = vrot.lane.b32.xlu0 %v583, 16
  %v924 = vpop.permute.xlu0 %923
  %925 = vrot.lane.b32.xlu0 %v584, 16
  %v926 = vpop.permute.xlu0 %925
  %927 = vrot.lane.b32.xlu0 %v585, 16
  %v928 = vpop.permute.xlu0 %927
  %929 = vrot.lane.b32.xlu0 %v586, 16
  %v930 = vpop.permute.xlu0 %929
  %931 = vrot.lane.b32.xlu0 %v587, 16
  %v932 = vpop.permute.xlu0 %931
  %933 = vrot.lane.b32.xlu0 %v588, 16
  %v934 = vpop.permute.xlu0 %933
  %935 = vrot.lane.b32.xlu0 %v589, 16
  %v936 = vpop.permute.xlu0 %935
  %937 = vrot.lane.b32.xlu0 %v590, 16
  %v938 = vpop.permute.xlu0 %937
  %939 = vrot.lane.b32.xlu0 %v591, 16
  %v940 = vpop.permute.xlu0 %939
  %941 = vrot.lane.b32.xlu0 %v592, 16
  %v942 = vpop.permute.xlu0 %941
  %943 = vrot.lane.b32.xlu0 %v593, 16
  %v944 = vpop.permute.xlu0 %943
  %945 = vrot.lane.b32.xlu0 %v594, 16
  %v946 = vpop.permute.xlu0 %945
  %947 = vrot.lane.b32.xlu0 %v595, 16
  %v948 = vpop.permute.xlu0 %947
  %951 = vrot.lane.b32.xlu0 %v567, 20
  %v952 = vpop.permute.xlu0 %951
  %953 = vrot.lane.b32.xlu0 %v568, 20
  %v954 = vpop.permute.xlu0 %953
  %955 = vrot.lane.b32.xlu0 %v569, 20
  %v956 = vpop.permute.xlu0 %955
  %957 = vrot.lane.b32.xlu0 %v570, 20
  %v958 = vpop.permute.xlu0 %957
  %959 = vrot.lane.b32.xlu0 %v571, 20
  %v960 = vpop.permute.xlu0 %959
  %961 = vrot.lane.b32.xlu0 %v572, 20
  %v962 = vpop.permute.xlu0 %961
  %963 = vrot.lane.b32.xlu0 %v573, 20
  %v964 = vpop.permute.xlu0 %963
  %965 = vrot.lane.b32.xlu0 %v574, 20
  %v966 = vpop.permute.xlu0 %965
  %967 = vrot.lane.b32.xlu0 %v575, 20
  %v968 = vpop.permute.xlu0 %967
  %969 = vrot.lane.b32.xlu0 %v576, 20
  %v970 = vpop.permute.xlu0 %969
  %971 = vrot.lane.b32.xlu0 %v577, 20
  %v972 = vpop.permute.xlu0 %971
  %973 = vrot.lane.b32.xlu0 %v578, 20
  %v974 = vpop.permute.xlu0 %973
  %975 = vrot.lane.b32.xlu0 %v579, 20
  %v976 = vpop.permute.xlu0 %975
  %977 = vrot.lane.b32.xlu0 %v580, 20
  %v978 = vpop.permute.xlu0 %977
  %979 = vrot.lane.b32.xlu0 %v583, 20
  %v980 = vpop.permute.xlu0 %979
  %981 = vrot.lane.b32.xlu0 %v584, 20
  %v982 = vpop.permute.xlu0 %981
  %983 = vrot.lane.b32.xlu0 %v585, 20
  %v984 = vpop.permute.xlu0 %983
  %985 = vrot.lane.b32.xlu0 %v586, 20
  %v986 = vpop.permute.xlu0 %985
  %987 = vrot.lane.b32.xlu0 %v587, 20
  %v988 = vpop.permute.xlu0 %987
  %989 = vrot.lane.b32.xlu0 %v588, 20
  %v990 = vpop.permute.xlu0 %989
  %991 = vrot.lane.b32.xlu0 %v589, 20
  %v992 = vpop.permute.xlu0 %991
  %993 = vrot.lane.b32.xlu0 %v590, 20
  %v994 = vpop.permute.xlu0 %993
  %995 = vrot.lane.b32.xlu0 %v591, 20
  %v996 = vpop.permute.xlu0 %995
  %997 = vrot.lane.b32.xlu0 %v592, 20
  %v998 = vpop.permute.xlu0 %997
  %999 = vrot.lane.b32.xlu0 %v593, 20
  %v1000 = vpop.permute.xlu0 %999
  %1001 = vrot.lane.b32.xlu0 %v594, 20
  %v1002 = vpop.permute.xlu0 %1001
  %1003 = vrot.lane.b32.xlu0 %v595, 20
  %v1004 = vpop.permute.xlu0 %1003
  %1005 = vrot.lane.b32.xlu0 %v596, 20
  %v1006 = vpop.permute.xlu0 %1005
  %1035 = vrot.lane.b32.xlu0 %v632, 24
  %v1036 = vpop.permute.xlu0 %1035
  %1037 = vrot.lane.b32.xlu0 %v634, 24
  %v1038 = vpop.permute.xlu0 %1037
  %1039 = vrot.lane.b32.xlu0 %v636, 24
  %v1040 = vpop.permute.xlu0 %1039
  %1041 = vrot.lane.b32.xlu0 %v638, 24
  %v1042 = vpop.permute.xlu0 %1041
  %1043 = vrot.lane.b32.xlu0 %v640, 24
  %v1044 = vpop.permute.xlu0 %1043
  %1045 = vrot.lane.b32.xlu0 %v642, 24
  %v1046 = vpop.permute.xlu0 %1045
  %1047 = vrot.lane.b32.xlu0 %v644, 24
  %v1048 = vpop.permute.xlu0 %1047
  %1049 = vrot.lane.b32.xlu0 %v646, 24
  %v1050 = vpop.permute.xlu0 %1049
  %1051 = vrot.lane.b32.xlu0 %v648, 24
  %v1052 = vpop.permute.xlu0 %1051
  %1053 = vrot.lane.b32.xlu0 %v650, 24
  %v1054 = vpop.permute.xlu0 %1053
  %1055 = vrot.lane.b32.xlu0 %v652, 24
  %v1056 = vpop.permute.xlu0 %1055
  %1057 = vrot.lane.b32.xlu0 %v654, 24
  %v1058 = vpop.permute.xlu0 %1057
  %1059 = vrot.lane.b32.xlu0 %v656, 24
  %v1060 = vpop.permute.xlu0 %1059
  %1061 = vrot.lane.b32.xlu0 %v658, 24
  %v1062 = vpop.permute.xlu0 %1061
  %1063 = vrot.lane.b32.xlu0 %v664, 24
  %v1064 = vpop.permute.xlu0 %1063
  %1065 = vrot.lane.b32.xlu0 %v666, 24
  %v1066 = vpop.permute.xlu0 %1065
  %1067 = vrot.lane.b32.xlu0 %v668, 24
  %v1068 = vpop.permute.xlu0 %1067
  %1069 = vrot.lane.b32.xlu0 %v670, 24
  %v1070 = vpop.permute.xlu0 %1069
  %1071 = vrot.lane.b32.xlu0 %v672, 24
  %v1072 = vpop.permute.xlu0 %1071
  %1073 = vrot.lane.b32.xlu0 %v674, 24
  %v1074 = vpop.permute.xlu0 %1073
  %1075 = vrot.lane.b32.xlu0 %v676, 24
  %v1076 = vpop.permute.xlu0 %1075
  %1077 = vrot.lane.b32.xlu0 %v678, 24
  %v1078 = vpop.permute.xlu0 %1077
  %1079 = vrot.lane.b32.xlu0 %v680, 24
  %v1080 = vpop.permute.xlu0 %1079
  %1081 = vrot.lane.b32.xlu0 %v682, 24
  %v1082 = vpop.permute.xlu0 %1081
  %1083 = vrot.lane.b32.xlu0 %v684, 24
  %v1084 = vpop.permute.xlu0 %1083
  %1085 = vrot.lane.b32.xlu0 %v686, 24
  %v1086 = vpop.permute.xlu0 %1085
  %1087 = vrot.lane.b32.xlu0 %v688, 24
  %v1088 = vpop.permute.xlu0 %1087
  %1089 = vrot.lane.b32.xlu0 %v690, 24
  %v1090 = vpop.permute.xlu0 %1089
  %1093 = vrot.lane.b32.xlu0 %v634, 28
  %v1094 = vpop.permute.xlu0 %1093
  %1095 = vrot.lane.b32.xlu0 %v636, 28
  %v1096 = vpop.permute.xlu0 %1095
  %1097 = vrot.lane.b32.xlu0 %v638, 28
  %v1098 = vpop.permute.xlu0 %1097
  %1099 = vrot.lane.b32.xlu0 %v640, 28
  %v1100 = vpop.permute.xlu0 %1099
  %1101 = vrot.lane.b32.xlu0 %v642, 28
  %v1102 = vpop.permute.xlu0 %1101
  %1103 = vrot.lane.b32.xlu0 %v644, 28
  %v1104 = vpop.permute.xlu0 %1103
  %1105 = vrot.lane.b32.xlu0 %v646, 28
  %v1106 = vpop.permute.xlu0 %1105
  %1107 = vrot.lane.b32.xlu0 %v648, 28
  %v1108 = vpop.permute.xlu0 %1107
  %1109 = vrot.lane.b32.xlu0 %v650, 28
  %v1110 = vpop.permute.xlu0 %1109
  %1111 = vrot.lane.b32.xlu0 %v652, 28
  %v1112 = vpop.permute.xlu0 %1111
  %1113 = vrot.lane.b32.xlu0 %v654, 28
  %v1114 = vpop.permute.xlu0 %1113
  %1115 = vrot.lane.b32.xlu0 %v656, 28
  %v1116 = vpop.permute.xlu0 %1115
  %1117 = vrot.lane.b32.xlu0 %v658, 28
  %v1118 = vpop.permute.xlu0 %1117
  %1119 = vrot.lane.b32.xlu0 %v660, 28
  %v1120 = vpop.permute.xlu0 %1119
  %1121 = vrot.lane.b32.xlu0 %v666, 28
  %v1122 = vpop.permute.xlu0 %1121
  %1123 = vrot.lane.b32.xlu0 %v668, 28
  %v1124 = vpop.permute.xlu0 %1123
  %1125 = vrot.lane.b32.xlu0 %v670, 28
  %v1126 = vpop.permute.xlu0 %1125
  %1127 = vrot.lane.b32.xlu0 %v672, 28
  %v1128 = vpop.permute.xlu0 %1127
  %1129 = vrot.lane.b32.xlu0 %v674, 28
  %v1130 = vpop.permute.xlu0 %1129
  %1131 = vrot.lane.b32.xlu0 %v676, 28
  %v1132 = vpop.permute.xlu0 %1131
  %1133 = vrot.lane.b32.xlu0 %v678, 28
  %v1134 = vpop.permute.xlu0 %1133
  %1135 = vrot.lane.b32.xlu0 %v680, 28
  %v1136 = vpop.permute.xlu0 %1135
  %1137 = vrot.lane.b32.xlu0 %v682, 28
  %v1138 = vpop.permute.xlu0 %1137
  %1139 = vrot.lane.b32.xlu0 %v684, 28
  %v1140 = vpop.permute.xlu0 %1139
  %1141 = vrot.lane.b32.xlu0 %v686, 28
  %v1142 = vpop.permute.xlu0 %1141
  %1143 = vrot.lane.b32.xlu0 %v688, 28
  %v1144 = vpop.permute.xlu0 %1143
  %1145 = vrot.lane.b32.xlu0 %v690, 28
  %v1146 = vpop.permute.xlu0 %1145
  %1147 = vrot.lane.b32.xlu0 %v692, 28
  %v1148 = vpop.permute.xlu0 %1147
  %1151 = vrot.lane.b32.xlu0 %v636, 32
  %v1152 = vpop.permute.xlu0 %1151
  %1153 = vrot.lane.b32.xlu0 %v638, 32
  %v1154 = vpop.permute.xlu0 %1153
  %1155 = vrot.lane.b32.xlu0 %v640, 32
  %v1156 = vpop.permute.xlu0 %1155
  %1157 = vrot.lane.b32.xlu0 %v642, 32
  %v1158 = vpop.permute.xlu0 %1157
  %1159 = vrot.lane.b32.xlu0 %v644, 32
  %v1160 = vpop.permute.xlu0 %1159
  %1161 = vrot.lane.b32.xlu0 %v646, 32
  %v1162 = vpop.permute.xlu0 %1161
  %1163 = vrot.lane.b32.xlu0 %v648, 32
  %v1164 = vpop.permute.xlu0 %1163
  %1165 = vrot.lane.b32.xlu0 %v650, 32
  %v1166 = vpop.permute.xlu0 %1165
  %1167 = vrot.lane.b32.xlu0 %v652, 32
  %v1168 = vpop.permute.xlu0 %1167
  %1169 = vrot.lane.b32.xlu0 %v654, 32
  %v1170 = vpop.permute.xlu0 %1169
  %1171 = vrot.lane.b32.xlu0 %v656, 32
  %v1172 = vpop.permute.xlu0 %1171
  %1173 = vrot.lane.b32.xlu0 %v658, 32
  %v1174 = vpop.permute.xlu0 %1173
  %1175 = vrot.lane.b32.xlu0 %v660, 32
  %v1176 = vpop.permute.xlu0 %1175
  %1177 = vrot.lane.b32.xlu0 %v662, 32
  %v1178 = vpop.permute.xlu0 %1177
  %1179 = vrot.lane.b32.xlu0 %v668, 32
  %v1180 = vpop.permute.xlu0 %1179
  %1181 = vrot.lane.b32.xlu0 %v670, 32
  %v1182 = vpop.permute.xlu0 %1181
  %1183 = vrot.lane.b32.xlu0 %v672, 32
  %v1184 = vpop.permute.xlu0 %1183
  %1185 = vrot.lane.b32.xlu0 %v674, 32
  %v1186 = vpop.permute.xlu0 %1185
  %1187 = vrot.lane.b32.xlu0 %v676, 32
  %v1188 = vpop.permute.xlu0 %1187
  %1189 = vrot.lane.b32.xlu0 %v678, 32
  %v1190 = vpop.permute.xlu0 %1189
  %1191 = vrot.lane.b32.xlu0 %v680, 32
  %v1192 = vpop.permute.xlu0 %1191
  %1193 = vrot.lane.b32.xlu0 %v682, 32
  %v1194 = vpop.permute.xlu0 %1193
  %1195 = vrot.lane.b32.xlu0 %v684, 32
  %v1196 = vpop.permute.xlu0 %1195
  %1197 = vrot.lane.b32.xlu0 %v686, 32
  %v1198 = vpop.permute.xlu0 %1197
  %1199 = vrot.lane.b32.xlu0 %v688, 32
  %v1200 = vpop.permute.xlu0 %1199
  %1201 = vrot.lane.b32.xlu0 %v690, 32
  %v1202 = vpop.permute.xlu0 %1201
  %1203 = vrot.lane.b32.xlu0 %v692, 32
  %v1204 = vpop.permute.xlu0 %1203
  %1205 = vrot.lane.b32.xlu0 %v694, 32
  %v1206 = vpop.permute.xlu0 %1205
  %vm1207 = vcmask 31744
  %v1209 = vsel %vm1207, %v274, %v696
  %v1211 = vsel %vm1207, %v275, %v698
  %v1213 = vsel %vm1207, %v276, %v700
  %v1215 = vsel %vm1207, %v277, %v702
  %v1217 = vsel %vm1207, %v278, %v704
  %v1219 = vsel %vm1207, %v279, %v706
  %v1221 = vsel %vm1207, %v280, %v708
  %v1223 = vsel %vm1207, %v281, %v710
  %v1225 = vsel %vm1207, %v282, %v712
  %v1227 = vsel %vm1207, %v283, %v714
  %v1229 = vsel %vm1207, %v284, %v716
  %v1231 = vsel %vm1207, %v285, %v718
  %v1233 = vsel %vm1207, %v286, %v720
  %v1235 = vsel %vm1207, %v287, %v722
  %v1237 = vsel %vm1207, %v290, %v724
  %v1239 = vsel %vm1207, %v291, %v726
  %v1241 = vsel %vm1207, %v292, %v728
  %v1243 = vsel %vm1207, %v293, %v730
  %v1245 = vsel %vm1207, %v294, %v732
  %v1247 = vsel %vm1207, %v295, %v734
  %v1249 = vsel %vm1207, %v296, %v736
  %v1251 = vsel %vm1207, %v297, %v738
  %v1253 = vsel %vm1207, %v298, %v740
  %v1255 = vsel %vm1207, %v299, %v742
  %v1257 = vsel %vm1207, %v300, %v744
  %v1259 = vsel %vm1207, %v301, %v746
  %v1261 = vsel %vm1207, %v302, %v748
  %v1263 = vsel %vm1207, %v303, %v750
  %vm1264 = vcmask 64512
  %v1266 = vsel %vm1264, %v1209, %v752
  %v1268 = vsel %vm1264, %v1211, %v754
  %v1270 = vsel %vm1264, %v1213, %v756
  %v1272 = vsel %vm1264, %v1215, %v758
  %v1274 = vsel %vm1264, %v1217, %v760
  %v1276 = vsel %vm1264, %v1219, %v762
  %v1278 = vsel %vm1264, %v1221, %v764
  %v1280 = vsel %vm1264, %v1223, %v766
  %v1282 = vsel %vm1264, %v1225, %v768
  %v1284 = vsel %vm1264, %v1227, %v770
  %v1286 = vsel %vm1264, %v1229, %v772
  %v1288 = vsel %vm1264, %v1231, %v774
  %v1290 = vsel %vm1264, %v1233, %v776
  %v1292 = vsel %vm1264, %v1235, %v778
  %v1294 = vsel %vm1264, %v1237, %v780
  %v1296 = vsel %vm1264, %v1239, %v782
  %v1298 = vsel %vm1264, %v1241, %v784
  %v1300 = vsel %vm1264, %v1243, %v786
  %v1302 = vsel %vm1264, %v1245, %v788
  %v1304 = vsel %vm1264, %v1247, %v790
  %v1306 = vsel %vm1264, %v1249, %v792
  %v1308 = vsel %vm1264, %v1251, %v794
  %v1310 = vsel %vm1264, %v1253, %v796
  %v1312 = vsel %vm1264, %v1255, %v798
  %v1314 = vsel %vm1264, %v1257, %v800
  %v1316 = vsel %vm1264, %v1259, %v802
  %v1318 = vsel %vm1264, %v1261, %v804
  %v1320 = vsel %vm1264, %v1263, %v806
  %vm1321 = vcmask 97280
  %v1323 = vsel %vm1321, %v1266, %v836
  %v1325 = vsel %vm1321, %v1268, %v838
  %v1327 = vsel %vm1321, %v1270, %v840
  %v1329 = vsel %vm1321, %v1272, %v842
  %v1331 = vsel %vm1321, %v1274, %v844
  %v1333 = vsel %vm1321, %v1276, %v846
  %v1335 = vsel %vm1321, %v1278, %v848
  %v1337 = vsel %vm1321, %v1280, %v850
  %v1339 = vsel %vm1321, %v1282, %v852
  %v1341 = vsel %vm1321, %v1284, %v854
  %v1343 = vsel %vm1321, %v1286, %v856
  %v1345 = vsel %vm1321, %v1288, %v858
  %v1347 = vsel %vm1321, %v1290, %v860
  %v1349 = vsel %vm1321, %v1292, %v862
  %v1351 = vsel %vm1321, %v1294, %v864
  %v1353 = vsel %vm1321, %v1296, %v866
  %v1355 = vsel %vm1321, %v1298, %v868
  %v1357 = vsel %vm1321, %v1300, %v870
  %v1359 = vsel %vm1321, %v1302, %v872
  %v1361 = vsel %vm1321, %v1304, %v874
  %v1363 = vsel %vm1321, %v1306, %v876
  %v1365 = vsel %vm1321, %v1308, %v878
  %v1367 = vsel %vm1321, %v1310, %v880
  %v1369 = vsel %vm1321, %v1312, %v882
  %v1371 = vsel %vm1321, %v1314, %v884
  %v1373 = vsel %vm1321, %v1316, %v886
  %v1375 = vsel %vm1321, %v1318, %v888
  %v1377 = vsel %vm1321, %v1320, %v890
  %vm1378 = vcmask 130048
  %v1380 = vsel %vm1378, %v1323, %v894
  %v1382 = vsel %vm1378, %v1325, %v896
  %v1384 = vsel %vm1378, %v1327, %v898
  %v1386 = vsel %vm1378, %v1329, %v900
  %v1388 = vsel %vm1378, %v1331, %v902
  %v1390 = vsel %vm1378, %v1333, %v904
  %v1392 = vsel %vm1378, %v1335, %v906
  %v1394 = vsel %vm1378, %v1337, %v908
  %v1396 = vsel %vm1378, %v1339, %v910
  %v1398 = vsel %vm1378, %v1341, %v912
  %v1400 = vsel %vm1378, %v1343, %v914
  %v1402 = vsel %vm1378, %v1345, %v916
  %v1404 = vsel %vm1378, %v1347, %v918
  %v1406 = vsel %vm1378, %v1349, %v920
  %v1408 = vsel %vm1378, %v1351, %v922
  %v1410 = vsel %vm1378, %v1353, %v924
  %v1412 = vsel %vm1378, %v1355, %v926
  %v1414 = vsel %vm1378, %v1357, %v928
  %v1416 = vsel %vm1378, %v1359, %v930
  %v1418 = vsel %vm1378, %v1361, %v932
  %v1420 = vsel %vm1378, %v1363, %v934
  %v1422 = vsel %vm1378, %v1365, %v936
  %v1424 = vsel %vm1378, %v1367, %v938
  %v1426 = vsel %vm1378, %v1369, %v940
  %v1428 = vsel %vm1378, %v1371, %v942
  %v1430 = vsel %vm1378, %v1373, %v944
  %v1432 = vsel %vm1378, %v1375, %v946
  %v1434 = vsel %vm1378, %v1377, %v948
  %vm1435 = vcmask 162816
  %v1437 = vsel %vm1435, %v1380, %v952
  %v1439 = vsel %vm1435, %v1382, %v954
  %v1441 = vsel %vm1435, %v1384, %v956
  %v1443 = vsel %vm1435, %v1386, %v958
  %v1445 = vsel %vm1435, %v1388, %v960
  %v1447 = vsel %vm1435, %v1390, %v962
  %v1449 = vsel %vm1435, %v1392, %v964
  %v1451 = vsel %vm1435, %v1394, %v966
  %v1453 = vsel %vm1435, %v1396, %v968
  %v1455 = vsel %vm1435, %v1398, %v970
  %v1457 = vsel %vm1435, %v1400, %v972
  %v1459 = vsel %vm1435, %v1402, %v974
  %v1461 = vsel %vm1435, %v1404, %v976
  %v1463 = vsel %vm1435, %v1406, %v978
  %v1465 = vsel %vm1435, %v1408, %v980
  %v1467 = vsel %vm1435, %v1410, %v982
  %v1469 = vsel %vm1435, %v1412, %v984
  %v1471 = vsel %vm1435, %v1414, %v986
  %v1473 = vsel %vm1435, %v1416, %v988
  %v1475 = vsel %vm1435, %v1418, %v990
  %v1477 = vsel %vm1435, %v1420, %v992
  %v1479 = vsel %vm1435, %v1422, %v994
  %v1481 = vsel %vm1435, %v1424, %v996
  %v1483 = vsel %vm1435, %v1426, %v998
  %v1485 = vsel %vm1435, %v1428, %v1000
  %v1487 = vsel %vm1435, %v1430, %v1002
  %v1489 = vsel %vm1435, %v1432, %v1004
  %v1491 = vsel %vm1435, %v1434, %v1006
  %vm1492 = vcmask 195584
  %v1494 = vsel %vm1492, %v1437, %v1036
  %v1496 = vsel %vm1492, %v1439, %v1038
  %v1498 = vsel %vm1492, %v1441, %v1040
  %v1500 = vsel %vm1492, %v1443, %v1042
  %v1502 = vsel %vm1492, %v1445, %v1044
  %v1504 = vsel %vm1492, %v1447, %v1046
  %v1506 = vsel %vm1492, %v1449, %v1048
  %v1508 = vsel %vm1492, %v1451, %v1050
  %v1510 = vsel %vm1492, %v1453, %v1052
  %v1512 = vsel %vm1492, %v1455, %v1054
  %v1514 = vsel %vm1492, %v1457, %v1056
  %v1516 = vsel %vm1492, %v1459, %v1058
  %v1518 = vsel %vm1492, %v1461, %v1060
  %v1520 = vsel %vm1492, %v1463, %v1062
  %v1522 = vsel %vm1492, %v1465, %v1064
  %v1524 = vsel %vm1492, %v1467, %v1066
  %v1526 = vsel %vm1492, %v1469, %v1068
  %v1528 = vsel %vm1492, %v1471, %v1070
  %v1530 = vsel %vm1492, %v1473, %v1072
  %v1532 = vsel %vm1492, %v1475, %v1074
  %v1534 = vsel %vm1492, %v1477, %v1076
  %v1536 = vsel %vm1492, %v1479, %v1078
  %v1538 = vsel %vm1492, %v1481, %v1080
  %v1540 = vsel %vm1492, %v1483, %v1082
  %v1542 = vsel %vm1492, %v1485, %v1084
  %v1544 = vsel %vm1492, %v1487, %v1086
  %v1546 = vsel %vm1492, %v1489, %v1088
  %v1548 = vsel %vm1492, %v1491, %v1090
  %vm1549 = vcmask 228352
  %v1551 = vsel %vm1549, %v1494, %v1094
  %v1553 = vsel %vm1549, %v1496, %v1096
  %v1555 = vsel %vm1549, %v1498, %v1098
  %v1557 = vsel %vm1549, %v1500, %v1100
  %v1559 = vsel %vm1549, %v1502, %v1102
  %v1561 = vsel %vm1549, %v1504, %v1104
  %v1563 = vsel %vm1549, %v1506, %v1106
  %v1565 = vsel %vm1549, %v1508, %v1108
  %v1567 = vsel %vm1549, %v1510, %v1110
  %v1569 = vsel %vm1549, %v1512, %v1112
  %v1571 = vsel %vm1549, %v1514, %v1114
  %v1573 = vsel %vm1549, %v1516, %v1116
  %v1575 = vsel %vm1549, %v1518, %v1118
  %v1577 = vsel %vm1549, %v1520, %v1120
  %v1579 = vsel %vm1549, %v1522, %v1122
  %v1581 = vsel %vm1549, %v1524, %v1124
  %v1583 = vsel %vm1549, %v1526, %v1126
  %v1585 = vsel %vm1549, %v1528, %v1128
  %v1587 = vsel %vm1549, %v1530, %v1130
  %v1589 = vsel %vm1549, %v1532, %v1132
  %v1591 = vsel %vm1549, %v1534, %v1134
  %v1593 = vsel %vm1549, %v1536, %v1136
  %v1595 = vsel %vm1549, %v1538, %v1138
  %v1597 = vsel %vm1549, %v1540, %v1140
  %v1599 = vsel %vm1549, %v1542, %v1142
  %v1601 = vsel %vm1549, %v1544, %v1144
  %v1603 = vsel %vm1549, %v1546, %v1146
  %v1605 = vsel %vm1549, %v1548, %v1148
  %vm1606 = vcmask 261120
  %v1608 = vsel %vm1606, %v1551, %v1152
  %v1610 = vsel %vm1606, %v1553, %v1154
  %v1612 = vsel %vm1606, %v1555, %v1156
  %v1614 = vsel %vm1606, %v1557, %v1158
  %v1616 = vsel %vm1606, %v1559, %v1160
  %v1618 = vsel %vm1606, %v1561, %v1162
  %v1620 = vsel %vm1606, %v1563, %v1164
  %v1622 = vsel %vm1606, %v1565, %v1166
  %v1624 = vsel %vm1606, %v1567, %v1168
  %v1626 = vsel %vm1606, %v1569, %v1170
  %v1628 = vsel %vm1606, %v1571, %v1172
  %v1630 = vsel %vm1606, %v1573, %v1174
  %v1632 = vsel %vm1606, %v1575, %v1176
  %v1634 = vsel %vm1606, %v1577, %v1178
  %v1636 = vsel %vm1606, %v1579, %v1180
  %v1638 = vsel %vm1606, %v1581, %v1182
  %v1640 = vsel %vm1606, %v1583, %v1184
  %v1642 = vsel %vm1606, %v1585, %v1186
  %v1644 = vsel %vm1606, %v1587, %v1188
  %v1646 = vsel %vm1606, %v1589, %v1190
  %v1648 = vsel %vm1606, %v1591, %v1192
  %v1650 = vsel %vm1606, %v1593, %v1194
  %v1652 = vsel %vm1606, %v1595, %v1196
  %v1654 = vsel %vm1606, %v1597, %v1198
  %v1656 = vsel %vm1606, %v1599, %v1200
  %v1658 = vsel %vm1606, %v1601, %v1202
  %v1660 = vsel %vm1606, %v1603, %v1204
  %v1662 = vsel %vm1606, %v1605, %v1206
  %v1663 = vld [vmem:[%s1] sm:$0xf]
  %v1664 = vld [vmem:[%s1 + $0x4] sm:$0xf]
  %v1665 = vld [vmem:[%s1 + $0x8] sm:$0xf]
  %v1666 = vld [vmem:[%s1 + $0xc] sm:$0xf]
  %v1667 = vld [vmem:[%s1 + $0x10] sm:$0x3]
  %v1673 = vunpack.c.l.b16 %v1663
  %v1674 = vunpack.c.l.b16 %v1664
  %v1675 = vunpack.c.l.b16 %v1665
  %v1676 = vunpack.c.l.b16 %v1666
  %v1677 = vunpack.c.l.b16 %v1667
  %v1678 = vpack.c.b16 %v1674, %v1673
  %v1679 = vpack.c.b16 %v1676, %v1675
  %v1680 = vpack.c.b16 %v1677, %v1677
  %vm1683 = vcmask 293888
  %v1684 = vsel %vm1683, %v1608, 0
  %v1686 = vsel %vm1683, %v1610, 0
  %v1688 = vsel %vm1683, %v1612, 0
  %v1690 = vsel %vm1683, %v1614, 0
  %v1692 = vsel %vm1683, %v1616, 0
  %v1694 = vsel %vm1683, %v1618, 0
  %v1696 = vsel %vm1683, %v1620, 0
  %v1698 = vsel %vm1683, %v1622, 0
  %v1700 = vsel %vm1683, %v1624, 0
  %v1702 = vsel %vm1683, %v1626, 0
  %v1704 = vsel %vm1683, %v1628, 0
  %v1706 = vsel %vm1683, %v1630, 0
  %v1708 = vsel %vm1683, %v1632, 0
  %v1710 = vsel %vm1683, %v1634, 0
  %v1712 = vsel %vm1683, %v1636, 0
  %v1714 = vsel %vm1683, %v1638, 0
  %v1716 = vsel %vm1683, %v1640, 0
  %v1718 = vsel %vm1683, %v1642, 0
  %v1720 = vsel %vm1683, %v1644, 0
  %v1722 = vsel %vm1683, %v1646, 0
  %v1724 = vsel %vm1683, %v1648, 0
  %v1726 = vsel %vm1683, %v1650, 0
  %v1728 = vsel %vm1683, %v1652, 0
  %v1730 = vsel %vm1683, %v1654, 0
  %v1732 = vsel %vm1683, %v1656, 0
  %v1734 = vsel %vm1683, %v1658, 0
  %v1736 = vsel %vm1683, %v1660, 0
  %v1738 = vsel %vm1683, %v1662, 0
  %vm1740 = vcmask 1041408
  %v1742 = vsel %vm1740, %v1680, 0
  %1744 = vmatpush.bf16.msra.mxu0 0
  %1745 = vmatpush.bf16.msra.mxu0 0
  %1746 = vmatpush.bf16.msra.mxu0 0
  %1747 = vmatpush.bf16.msra.mxu0 0
  %1748 = vmatpush.bf16.msra.mxu0 0
  %1749 = vmatpush.bf16.msra.mxu0 %v1742
  %1750 = vmatpush.bf16.msra.mxu0 %v1679
  %1751 = vmatpush.bf16.msra.mxu0 %v1678
  %1752 = vmatmul.bf16.gmra.mxu0 %v1684
  %v1753 = vpop.f32.mrf.mxu0
  %v1754 = vadd.f32 0.0, %v1753
  %v1755 = vpop.f32.mrf.mxu0
  %v1756 = vadd.f32 0.0, %v1755
  %1757 = vmatmul.bf16.gmra.mxu0 %v1686
  %v1758 = vpop.f32.mrf.mxu0
  %v1759 = vadd.f32 0.0, %v1758
  %v1760 = vpop.f32.mrf.mxu0
  %v1761 = vadd.f32 0.0, %v1760
  %1762 = vmatmul.bf16.gmra.mxu0 %v1688
  %v1763 = vpop.f32.mrf.mxu0
  %v1764 = vadd.f32 0.0, %v1763
  %v1765 = vpop.f32.mrf.mxu0
  %v1766 = vadd.f32 0.0, %v1765
  %1767 = vmatmul.bf16.gmra.mxu0 %v1690
  %v1768 = vpop.f32.mrf.mxu0
  %v1769 = vadd.f32 0.0, %v1768
  %v1770 = vpop.f32.mrf.mxu0
  %v1771 = vadd.f32 0.0, %v1770
  %1772 = vmatmul.bf16.gmra.mxu0 %v1692
  %v1773 = vpop.f32.mrf.mxu0
  %v1774 = vadd.f32 0.0, %v1773
  %v1775 = vpop.f32.mrf.mxu0
  %v1776 = vadd.f32 0.0, %v1775
  %1777 = vmatmul.bf16.gmra.mxu0 %v1694
  %v1778 = vpop.f32.mrf.mxu0
  %v1779 = vadd.f32 0.0, %v1778
  %v1780 = vpop.f32.mrf.mxu0
  %v1781 = vadd.f32 0.0, %v1780
  %1782 = vmatmul.bf16.gmra.mxu0 %v1696
  %v1783 = vpop.f32.mrf.mxu0
  %v1784 = vadd.f32 0.0, %v1783
  %v1785 = vpop.f32.mrf.mxu0
  %v1786 = vadd.f32 0.0, %v1785
  %1787 = vmatmul.bf16.gmra.mxu0 %v1698
  %v1788 = vpop.f32.mrf.mxu0
  %v1789 = vadd.f32 0.0, %v1788
  %v1790 = vpop.f32.mrf.mxu0
  %v1791 = vadd.f32 0.0, %v1790
  %1792 = vmatmul.bf16.gmra.mxu0 %v1700
  %v1793 = vpop.f32.mrf.mxu0
  %v1794 = vadd.f32 0.0, %v1793
  %v1795 = vpop.f32.mrf.mxu0
  %v1796 = vadd.f32 0.0, %v1795
  %1797 = vmatmul.bf16.gmra.mxu0 %v1702
  %v1798 = vpop.f32.mrf.mxu0
  %v1799 = vadd.f32 0.0, %v1798
  %v1800 = vpop.f32.mrf.mxu0
  %v1801 = vadd.f32 0.0, %v1800
  %1802 = vmatmul.bf16.gmra.mxu0 %v1704
  %v1803 = vpop.f32.mrf.mxu0
  %v1804 = vadd.f32 0.0, %v1803
  %v1805 = vpop.f32.mrf.mxu0
  %v1806 = vadd.f32 0.0, %v1805
  %1807 = vmatmul.bf16.gmra.mxu0 %v1706
  %v1808 = vpop.f32.mrf.mxu0
  %v1809 = vadd.f32 0.0, %v1808
  %v1810 = vpop.f32.mrf.mxu0
  %v1811 = vadd.f32 0.0, %v1810
  %1812 = vmatmul.bf16.gmra.mxu0 %v1708
  %v1813 = vpop.f32.mrf.mxu0
  %v1814 = vadd.f32 0.0, %v1813
  %v1815 = vpop.f32.mrf.mxu0
  %v1816 = vadd.f32 0.0, %v1815
  %1817 = vmatmul.bf16.gmra.mxu0 %v1710
  %v1818 = vpop.f32.mrf.mxu0
  %v1819 = vadd.f32 0.0, %v1818
  %v1820 = vpop.f32.mrf.mxu0
  %v1821 = vadd.f32 0.0, %v1820
  %1822 = vmatmul.bf16.gmra.mxu0 %v1712
  %v1823 = vpop.f32.mrf.mxu0
  %v1824 = vadd.f32 0.0, %v1823
  %v1825 = vpop.f32.mrf.mxu0
  %v1826 = vadd.f32 0.0, %v1825
  %1827 = vmatmul.bf16.gmra.mxu0 %v1714
  %v1828 = vpop.f32.mrf.mxu0
  %v1829 = vadd.f32 0.0, %v1828
  %v1830 = vpop.f32.mrf.mxu0
  %v1831 = vadd.f32 0.0, %v1830
  %1832 = vmatmul.bf16.gmra.mxu0 %v1716
  %v1833 = vpop.f32.mrf.mxu0
  %v1834 = vadd.f32 0.0, %v1833
  %v1835 = vpop.f32.mrf.mxu0
  %v1836 = vadd.f32 0.0, %v1835
  %1837 = vmatmul.bf16.gmra.mxu0 %v1718
  %v1838 = vpop.f32.mrf.mxu0
  %v1839 = vadd.f32 0.0, %v1838
  %v1840 = vpop.f32.mrf.mxu0
  %v1841 = vadd.f32 0.0, %v1840
  %1842 = vmatmul.bf16.gmra.mxu0 %v1720
  %v1843 = vpop.f32.mrf.mxu0
  %v1844 = vadd.f32 0.0, %v1843
  %v1845 = vpop.f32.mrf.mxu0
  %v1846 = vadd.f32 0.0, %v1845
  %1847 = vmatmul.bf16.gmra.mxu0 %v1722
  %v1848 = vpop.f32.mrf.mxu0
  %v1849 = vadd.f32 0.0, %v1848
  %v1850 = vpop.f32.mrf.mxu0
  %v1851 = vadd.f32 0.0, %v1850
  %1852 = vmatmul.bf16.gmra.mxu0 %v1724
  %v1853 = vpop.f32.mrf.mxu0
  %v1854 = vadd.f32 0.0, %v1853
  %v1855 = vpop.f32.mrf.mxu0
  %v1856 = vadd.f32 0.0, %v1855
  %1857 = vmatmul.bf16.gmra.mxu0 %v1726
  %v1858 = vpop.f32.mrf.mxu0
  %v1859 = vadd.f32 0.0, %v1858
  %v1860 = vpop.f32.mrf.mxu0
  %v1861 = vadd.f32 0.0, %v1860
  %1862 = vmatmul.bf16.gmra.mxu0 %v1728
  %v1863 = vpop.f32.mrf.mxu0
  %v1864 = vadd.f32 0.0, %v1863
  %v1865 = vpop.f32.mrf.mxu0
  %v1866 = vadd.f32 0.0, %v1865
  %1867 = vmatmul.bf16.gmra.mxu0 %v1730
  %v1868 = vpop.f32.mrf.mxu0
  %v1869 = vadd.f32 0.0, %v1868
  %v1870 = vpop.f32.mrf.mxu0
  %v1871 = vadd.f32 0.0, %v1870
  %1872 = vmatmul.bf16.gmra.mxu0 %v1732
  %v1873 = vpop.f32.mrf.mxu0
  %v1874 = vadd.f32 0.0, %v1873
  %v1875 = vpop.f32.mrf.mxu0
  %v1876 = vadd.f32 0.0, %v1875
  %1877 = vmatmul.bf16.gmra.mxu0 %v1734
  %v1878 = vpop.f32.mrf.mxu0
  %v1879 = vadd.f32 0.0, %v1878
  %v1880 = vpop.f32.mrf.mxu0
  %v1881 = vadd.f32 0.0, %v1880
  %1882 = vmatmul.bf16.gmra.mxu0 %v1736
  %v1883 = vpop.f32.mrf.mxu0
  %v1884 = vadd.f32 0.0, %v1883
  %v1885 = vpop.f32.mrf.mxu0
  %v1886 = vadd.f32 0.0, %v1885
  %1887 = vmatmul.bf16.gmra.mxu0 %v1738
  %v1888 = vpop.f32.mrf.mxu0
  %v1889 = vadd.f32 0.0, %v1888
  %v1890 = vpop.f32.mrf.mxu0
  %v1891 = vadd.f32 0.0, %v1890
  %1892 = vdwg.mxu0
  %v1893 = vlaneseq
  %v1894 = vshrl.u32 %v1893, 7
  %v1895 = vadd.s32 %v1894, 8
  %vm1896 = vcmp.lt.s32.totalorder %v1894, 14
  %vm1897 = vcmp.lt.s32.totalorder %v1895, 14
  %v1898 = vsel %vm1896, 1, 0
  %v1899 = vsel %vm1897, 1, 0
  %vm1900 = vcmp.eq.s32.totalorder %v1898, 1
  %vm1901 = vcmp.eq.s32.totalorder %v1899, 1
  %v1902 = vsel %vm1900, %v1754, 0.0
  %v1903 = vsel %vm1901, %v1756, 0.0
  %v1904 = vsel %vm1900, %v1759, 0.0
  %v1905 = vsel %vm1901, %v1761, 0.0
  %v1906 = vsel %vm1900, %v1764, 0.0
  %v1907 = vsel %vm1901, %v1766, 0.0
  %v1908 = vsel %vm1900, %v1769, 0.0
  %v1909 = vsel %vm1901, %v1771, 0.0
  %v1910 = vsel %vm1900, %v1774, 0.0
  %v1911 = vsel %vm1901, %v1776, 0.0
  %v1912 = vsel %vm1900, %v1779, 0.0
  %v1913 = vsel %vm1901, %v1781, 0.0
  %v1914 = vsel %vm1900, %v1784, 0.0
  %v1915 = vsel %vm1901, %v1786, 0.0
  %v1916 = vsel %vm1900, %v1789, 0.0
  %v1917 = vsel %vm1901, %v1791, 0.0
  %v1918 = vsel %vm1900, %v1794, 0.0
  %v1919 = vsel %vm1901, %v1796, 0.0
  %v1920 = vsel %vm1900, %v1799, 0.0
  %v1921 = vsel %vm1901, %v1801, 0.0
  %v1922 = vsel %vm1900, %v1804, 0.0
  %v1923 = vsel %vm1901, %v1806, 0.0
  %v1924 = vsel %vm1900, %v1809, 0.0
  %v1925 = vsel %vm1901, %v1811, 0.0
  %v1926 = vsel %vm1900, %v1814, 0.0
  %v1927 = vsel %vm1901, %v1816, 0.0
  %v1928 = vsel %vm1900, %v1819, 0.0
  %v1929 = vsel %vm1901, %v1821, 0.0
  %v1930 = vsel %vm1900, %v1824, 0.0
  %v1931 = vsel %vm1901, %v1826, 0.0
  %v1932 = vsel %vm1900, %v1829, 0.0
  %v1933 = vsel %vm1901, %v1831, 0.0
  %v1934 = vsel %vm1900, %v1834, 0.0
  %v1935 = vsel %vm1901, %v1836, 0.0
  %v1936 = vsel %vm1900, %v1839, 0.0
  %v1937 = vsel %vm1901, %v1841, 0.0
  %v1938 = vsel %vm1900, %v1844, 0.0
  %v1939 = vsel %vm1901, %v1846, 0.0
  %v1940 = vsel %vm1900, %v1849, 0.0
  %v1941 = vsel %vm1901, %v1851, 0.0
  %v1942 = vsel %vm1900, %v1854, 0.0
  %v1943 = vsel %vm1901, %v1856, 0.0
  %v1944 = vsel %vm1900, %v1859, 0.0
  %v1945 = vsel %vm1901, %v1861, 0.0
  %v1946 = vsel %vm1900, %v1864, 0.0
  %v1947 = vsel %vm1901, %v1866, 0.0
  %v1948 = vsel %vm1900, %v1869, 0.0
  %v1949 = vsel %vm1901, %v1871, 0.0
  %v1950 = vsel %vm1900, %v1874, 0.0
  %v1951 = vsel %vm1901, %v1876, 0.0
  %v1952 = vsel %vm1900, %v1879, 0.0
  %v1953 = vsel %vm1901, %v1881, 0.0
  %v1954 = vsel %vm1900, %v1884, 0.0
  %v1955 = vsel %vm1901, %v1886, 0.0
  %v1956 = vsel %vm1900, %v1889, 0.0
  %v1957 = vsel %vm1901, %v1891, 0.0
  %v1958 = vadd.f32 %v1902, %v1903
  %v1959 = vadd.f32 %v1958, %v1904
  %v1960 = vadd.f32 %v1959, %v1905
  %v1961 = vadd.f32 %v1960, %v1906
  %v1962 = vadd.f32 %v1961, %v1907
  %v1963 = vadd.f32 %v1962, %v1908
  %v1964 = vadd.f32 %v1963, %v1909
  %v1965 = vadd.f32 %v1964, %v1910
  %v1966 = vadd.f32 %v1965, %v1911
  %v1967 = vadd.f32 %v1966, %v1912
  %v1968 = vadd.f32 %v1967, %v1913
  %v1969 = vadd.f32 %v1968, %v1914
  %v1970 = vadd.f32 %v1969, %v1915
  %v1971 = vadd.f32 %v1970, %v1916
  %v1972 = vadd.f32 %v1971, %v1917
  %v1973 = vadd.f32 %v1972, %v1918
  %v1974 = vadd.f32 %v1973, %v1919
  %v1975 = vadd.f32 %v1974, %v1920
  %v1976 = vadd.f32 %v1975, %v1921
  %v1977 = vadd.f32 %v1976, %v1922
  %v1978 = vadd.f32 %v1977, %v1923
  %v1979 = vadd.f32 %v1978, %v1924
  %v1980 = vadd.f32 %v1979, %v1925
  %v1981 = vadd.f32 %v1980, %v1926
  %v1982 = vadd.f32 %v1981, %v1927
  %v1983 = vadd.f32 %v1982, %v1928
  %v1984 = vadd.f32 %v1983, %v1929
  %v1985 = vadd.f32 %v1984, %v1930
  %v1986 = vadd.f32 %v1985, %v1931
  %v1987 = vadd.f32 %v1986, %v1932
  %v1988 = vadd.f32 %v1987, %v1933
  %v1989 = vadd.f32 %v1988, %v1934
  %v1990 = vadd.f32 %v1989, %v1935
  %v1991 = vadd.f32 %v1990, %v1936
  %v1992 = vadd.f32 %v1991, %v1937
  %v1993 = vadd.f32 %v1992, %v1938
  %v1994 = vadd.f32 %v1993, %v1939
  %v1995 = vadd.f32 %v1994, %v1940
  %v1996 = vadd.f32 %v1995, %v1941
  %v1997 = vadd.f32 %v1996, %v1942
  %v1998 = vadd.f32 %v1997, %v1943
  %v1999 = vadd.f32 %v1998, %v1944
  %v2000 = vadd.f32 %v1999, %v1945
  %v2001 = vadd.f32 %v2000, %v1946
  %v2002 = vadd.f32 %v2001, %v1947
  %v2003 = vadd.f32 %v2002, %v1948
  %v2004 = vadd.f32 %v2003, %v1949
  %v2005 = vadd.f32 %v2004, %v1950
  %v2006 = vadd.f32 %v2005, %v1951
  %v2007 = vadd.f32 %v2006, %v1952
  %v2008 = vadd.f32 %v2007, %v1953
  %v2009 = vadd.f32 %v2008, %v1954
  %v2010 = vadd.f32 %v2009, %v1955
  %v2011 = vadd.f32 %v2010, %v1956
  %v2012 = vadd.f32 %v2011, %v1957
  %v2013 = vrot.slane %v2012, 4
  %v2014 = vadd.f32 %v2012, %v2013
  %v2015 = vrot.slane %v2014, 2
  %v2016 = vadd.f32 %v2014, %v2015
  %v2017 = vrot.slane %v2016, 1
  %v2018 = vadd.f32 %v2016, %v2017
  %v2019 = vrcp.pop 392.0
  %v2020 = vmul.f32 392.0, %v2019
  %v2021 = vsub.f32 1.0, %v2020
  %v2022 = vmul.f32 %v2019, %v2021
  %v2023 = vadd.f32 %v2019, %v2022
  %vm2024 = vweird.f32 %v2019
  %v2025 = vsel %vm2024, %v2019, %v2023
  %v2026 = vmul.f32 %v2018, %v2025
  %v2027 = vsub.f32 %v1754, %v2026
  %v2028 = vsub.f32 %v1756, %v2026
  %v2029 = vsub.f32 %v1759, %v2026
  %v2030 = vsub.f32 %v1761, %v2026
  %v2031 = vsub.f32 %v1764, %v2026
  %v2032 = vsub.f32 %v1766, %v2026
  %v2033 = vsub.f32 %v1769, %v2026
  %v2034 = vsub.f32 %v1771, %v2026
  %v2035 = vsub.f32 %v1774, %v2026
  %v2036 = vsub.f32 %v1776, %v2026
  %v2037 = vsub.f32 %v1779, %v2026
  %v2038 = vsub.f32 %v1781, %v2026
  %v2039 = vsub.f32 %v1784, %v2026
  %v2040 = vsub.f32 %v1786, %v2026
  %v2041 = vsub.f32 %v1789, %v2026
  %v2042 = vsub.f32 %v1791, %v2026
  %v2043 = vsub.f32 %v1794, %v2026
  %v2044 = vsub.f32 %v1796, %v2026
  %v2045 = vsub.f32 %v1799, %v2026
  %v2046 = vsub.f32 %v1801, %v2026
  %v2047 = vsub.f32 %v1804, %v2026
  %v2048 = vsub.f32 %v1806, %v2026
  %v2049 = vsub.f32 %v1809, %v2026
  %v2050 = vsub.f32 %v1811, %v2026
  %v2051 = vsub.f32 %v1814, %v2026
  %v2052 = vsub.f32 %v1816, %v2026
  %v2053 = vsub.f32 %v1819, %v2026
  %v2054 = vsub.f32 %v1821, %v2026
  %v2055 = vsub.f32 %v1824, %v2026
  %v2056 = vsub.f32 %v1826, %v2026
  %v2057 = vsub.f32 %v1829, %v2026
  %v2058 = vsub.f32 %v1831, %v2026
  %v2059 = vsub.f32 %v1834, %v2026
  %v2060 = vsub.f32 %v1836, %v2026
  %v2061 = vsub.f32 %v1839, %v2026
  %v2062 = vsub.f32 %v1841, %v2026
  %v2063 = vsub.f32 %v1844, %v2026
  %v2064 = vsub.f32 %v1846, %v2026
  %v2065 = vsub.f32 %v1849, %v2026
  %v2066 = vsub.f32 %v1851, %v2026
  %v2067 = vsub.f32 %v1854, %v2026
  %v2068 = vsub.f32 %v1856, %v2026
  %v2069 = vsub.f32 %v1859, %v2026
  %v2070 = vsub.f32 %v1861, %v2026
  %v2071 = vsub.f32 %v1864, %v2026
  %v2072 = vsub.f32 %v1866, %v2026
  %v2073 = vsub.f32 %v1869, %v2026
  %v2074 = vsub.f32 %v1871, %v2026
  %v2075 = vsub.f32 %v1874, %v2026
  %v2076 = vsub.f32 %v1876, %v2026
  %v2077 = vsub.f32 %v1879, %v2026
  %v2078 = vsub.f32 %v1881, %v2026
  %v2079 = vsub.f32 %v1884, %v2026
  %v2080 = vsub.f32 %v1886, %v2026
  %v2081 = vsub.f32 %v1889, %v2026
  %v2082 = vsub.f32 %v1891, %v2026
  %v2083 = vmul.f32 %v2027, %v2027
  %v2084 = vmul.f32 %v2028, %v2028
  %v2085 = vmul.f32 %v2029, %v2029
  %v2086 = vmul.f32 %v2030, %v2030
  %v2087 = vmul.f32 %v2031, %v2031
  %v2088 = vmul.f32 %v2032, %v2032
  %v2089 = vmul.f32 %v2033, %v2033
  %v2090 = vmul.f32 %v2034, %v2034
  %v2091 = vmul.f32 %v2035, %v2035
  %v2092 = vmul.f32 %v2036, %v2036
  %v2093 = vmul.f32 %v2037, %v2037
  %v2094 = vmul.f32 %v2038, %v2038
  %v2095 = vmul.f32 %v2039, %v2039
  %v2096 = vmul.f32 %v2040, %v2040
  %v2097 = vmul.f32 %v2041, %v2041
  %v2098 = vmul.f32 %v2042, %v2042
  %v2099 = vmul.f32 %v2043, %v2043
  %v2100 = vmul.f32 %v2044, %v2044
  %v2101 = vmul.f32 %v2045, %v2045
  %v2102 = vmul.f32 %v2046, %v2046
  %v2103 = vmul.f32 %v2047, %v2047
  %v2104 = vmul.f32 %v2048, %v2048
  %v2105 = vmul.f32 %v2049, %v2049
  %v2106 = vmul.f32 %v2050, %v2050
  %v2107 = vmul.f32 %v2051, %v2051
  %v2108 = vmul.f32 %v2052, %v2052
  %v2109 = vmul.f32 %v2053, %v2053
  %v2110 = vmul.f32 %v2054, %v2054
  %v2111 = vmul.f32 %v2055, %v2055
  %v2112 = vmul.f32 %v2056, %v2056
  %v2113 = vmul.f32 %v2057, %v2057
  %v2114 = vmul.f32 %v2058, %v2058
  %v2115 = vmul.f32 %v2059, %v2059
  %v2116 = vmul.f32 %v2060, %v2060
  %v2117 = vmul.f32 %v2061, %v2061
  %v2118 = vmul.f32 %v2062, %v2062
  %v2119 = vmul.f32 %v2063, %v2063
  %v2120 = vmul.f32 %v2064, %v2064
  %v2121 = vmul.f32 %v2065, %v2065
  %v2122 = vmul.f32 %v2066, %v2066
  %v2123 = vmul.f32 %v2067, %v2067
  %v2124 = vmul.f32 %v2068, %v2068
  %v2125 = vmul.f32 %v2069, %v2069
  %v2126 = vmul.f32 %v2070, %v2070
  %v2127 = vmul.f32 %v2071, %v2071
  %v2128 = vmul.f32 %v2072, %v2072
  %v2129 = vmul.f32 %v2073, %v2073
  %v2130 = vmul.f32 %v2074, %v2074
  %v2131 = vmul.f32 %v2075, %v2075
  %v2132 = vmul.f32 %v2076, %v2076
  %v2133 = vmul.f32 %v2077, %v2077
  %v2134 = vmul.f32 %v2078, %v2078
  %v2135 = vmul.f32 %v2079, %v2079
  %v2136 = vmul.f32 %v2080, %v2080
  %v2137 = vmul.f32 %v2081, %v2081
  %v2138 = vmul.f32 %v2082, %v2082
  %v2139 = vsel %vm1900, %v2083, 0.0
  %v2140 = vsel %vm1901, %v2084, 0.0
  %v2141 = vsel %vm1900, %v2085, 0.0
  %v2142 = vsel %vm1901, %v2086, 0.0
  %v2143 = vsel %vm1900, %v2087, 0.0
  %v2144 = vsel %vm1901, %v2088, 0.0
  %v2145 = vsel %vm1900, %v2089, 0.0
  %v2146 = vsel %vm1901, %v2090, 0.0
  %v2147 = vsel %vm1900, %v2091, 0.0
  %v2148 = vsel %vm1901, %v2092, 0.0
  %v2149 = vsel %vm1900, %v2093, 0.0
  %v2150 = vsel %vm1901, %v2094, 0.0
  %v2151 = vsel %vm1900, %v2095, 0.0
  %v2152 = vsel %vm1901, %v2096, 0.0
  %v2153 = vsel %vm1900, %v2097, 0.0
  %v2154 = vsel %vm1901, %v2098, 0.0
  %v2155 = vsel %vm1900, %v2099, 0.0
  %v2156 = vsel %vm1901, %v2100, 0.0
  %v2157 = vsel %vm1900, %v2101, 0.0
  %v2158 = vsel %vm1901, %v2102, 0.0
  %v2159 = vsel %vm1900, %v2103, 0.0
  %v2160 = vsel %vm1901, %v2104, 0.0
  %v2161 = vsel %vm1900, %v2105, 0.0
  %v2162 = vsel %vm1901, %v2106, 0.0
  %v2163 = vsel %vm1900, %v2107, 0.0
  %v2164 = vsel %vm1901, %v2108, 0.0
  %v2165 = vsel %vm1900, %v2109, 0.0
  %v2166 = vsel %vm1901, %v2110, 0.0
  %v2167 = vsel %vm1900, %v2111, 0.0
  %v2168 = vsel %vm1901, %v2112, 0.0
  %v2169 = vsel %vm1900, %v2113, 0.0
  %v2170 = vsel %vm1901, %v2114, 0.0
  %v2171 = vsel %vm1900, %v2115, 0.0
  %v2172 = vsel %vm1901, %v2116, 0.0
  %v2173 = vsel %vm1900, %v2117, 0.0
  %v2174 = vsel %vm1901, %v2118, 0.0
  %v2175 = vsel %vm1900, %v2119, 0.0
  %v2176 = vsel %vm1901, %v2120, 0.0
  %v2177 = vsel %vm1900, %v2121, 0.0
  %v2178 = vsel %vm1901, %v2122, 0.0
  %v2179 = vsel %vm1900, %v2123, 0.0
  %v2180 = vsel %vm1901, %v2124, 0.0
  %v2181 = vsel %vm1900, %v2125, 0.0
  %v2182 = vsel %vm1901, %v2126, 0.0
  %v2183 = vsel %vm1900, %v2127, 0.0
  %v2184 = vsel %vm1901, %v2128, 0.0
  %v2185 = vsel %vm1900, %v2129, 0.0
  %v2186 = vsel %vm1901, %v2130, 0.0
  %v2187 = vsel %vm1900, %v2131, 0.0
  %v2188 = vsel %vm1901, %v2132, 0.0
  %v2189 = vsel %vm1900, %v2133, 0.0
  %v2190 = vsel %vm1901, %v2134, 0.0
  %v2191 = vsel %vm1900, %v2135, 0.0
  %v2192 = vsel %vm1901, %v2136, 0.0
  %v2193 = vsel %vm1900, %v2137, 0.0
  %v2194 = vsel %vm1901, %v2138, 0.0
  %v2195 = vadd.f32 %v2139, %v2140
  %v2196 = vadd.f32 %v2195, %v2141
  %v2197 = vadd.f32 %v2196, %v2142
  %v2198 = vadd.f32 %v2197, %v2143
  %v2199 = vadd.f32 %v2198, %v2144
  %v2200 = vadd.f32 %v2199, %v2145
  %v2201 = vadd.f32 %v2200, %v2146
  %v2202 = vadd.f32 %v2201, %v2147
  %v2203 = vadd.f32 %v2202, %v2148
  %v2204 = vadd.f32 %v2203, %v2149
  %v2205 = vadd.f32 %v2204, %v2150
  %v2206 = vadd.f32 %v2205, %v2151
  %v2207 = vadd.f32 %v2206, %v2152
  %v2208 = vadd.f32 %v2207, %v2153
  %v2209 = vadd.f32 %v2208, %v2154
  %v2210 = vadd.f32 %v2209, %v2155
  %v2211 = vadd.f32 %v2210, %v2156
  %v2212 = vadd.f32 %v2211, %v2157
  %v2213 = vadd.f32 %v2212, %v2158
  %v2214 = vadd.f32 %v2213, %v2159
  %v2215 = vadd.f32 %v2214, %v2160
  %v2216 = vadd.f32 %v2215, %v2161
  %v2217 = vadd.f32 %v2216, %v2162
  %v2218 = vadd.f32 %v2217, %v2163
  %v2219 = vadd.f32 %v2218, %v2164
  %v2220 = vadd.f32 %v2219, %v2165
  %v2221 = vadd.f32 %v2220, %v2166
  %v2222 = vadd.f32 %v2221, %v2167
  %v2223 = vadd.f32 %v2222, %v2168
  %v2224 = vadd.f32 %v2223, %v2169
  %v2225 = vadd.f32 %v2224, %v2170
  %v2226 = vadd.f32 %v2225, %v2171
  %v2227 = vadd.f32 %v2226, %v2172
  %v2228 = vadd.f32 %v2227, %v2173
  %v2229 = vadd.f32 %v2228, %v2174
  %v2230 = vadd.f32 %v2229, %v2175
  %v2231 = vadd.f32 %v2230, %v2176
  %v2232 = vadd.f32 %v2231, %v2177
  %v2233 = vadd.f32 %v2232, %v2178
  %v2234 = vadd.f32 %v2233, %v2179
  %v2235 = vadd.f32 %v2234, %v2180
  %v2236 = vadd.f32 %v2235, %v2181
  %v2237 = vadd.f32 %v2236, %v2182
  %v2238 = vadd.f32 %v2237, %v2183
  %v2239 = vadd.f32 %v2238, %v2184
  %v2240 = vadd.f32 %v2239, %v2185
  %v2241 = vadd.f32 %v2240, %v2186
  %v2242 = vadd.f32 %v2241, %v2187
  %v2243 = vadd.f32 %v2242, %v2188
  %v2244 = vadd.f32 %v2243, %v2189
  %v2245 = vadd.f32 %v2244, %v2190
  %v2246 = vadd.f32 %v2245, %v2191
  %v2247 = vadd.f32 %v2246, %v2192
  %v2248 = vadd.f32 %v2247, %v2193
  %v2249 = vadd.f32 %v2248, %v2194
  %v2250 = vrot.slane %v2249, 4
  %v2251 = vadd.f32 %v2249, %v2250
  %v2252 = vrot.slane %v2251, 2
  %v2253 = vadd.f32 %v2251, %v2252
  %v2254 = vrot.slane %v2253, 1
  %v2255 = vadd.f32 %v2253, %v2254
  %v2256 = vmul.f32 %v2255, %v2025
  %v2257 = vld [vmem:[%s2] sm:$0x1]
  %v2258 = vld [vmem:[%s3] sm:$0x1]
  %v2259 = vadd.f32 %v2256, 1e-05
  %v2260 = vrsqrt.pop %v2259
  %v2261 = vmul.f32 %v2260, %v2259
  %v2262 = vmul.f32 %v2261, %v2260
  %v2263 = vmul.f32 0.5, %v2262
  %v2264 = vsub.f32 1.5, %v2263
  %v2265 = vmul.f32 %v2260, %v2264
  %vm2266 = vweird.f32 %v2259
  %vm2267 = vweird.f32 %v2260
  %vm2268 = vmor %vm2266, %vm2267
  %v2269 = vsel %vm2268, %v2260, %v2265
  %v2270 = vmul.f32 %v2257, %v2269
  %v2271 = vmul.f32 %v2026, %v2270
  %v2272 = vsub.f32 %v2258, %v2271
  %v2274 = vperm.slane %v2270, 0
  %v2276 = vmul.f32 %v1754, %v2274
  %v2277 = vmul.f32 %v1756, %v2274
  %v2278 = vmul.f32 %v1759, %v2274
  %v2279 = vmul.f32 %v1761, %v2274
  %v2280 = vmul.f32 %v1764, %v2274
  %v2281 = vmul.f32 %v1766, %v2274
  %v2282 = vmul.f32 %v1769, %v2274
  %v2283 = vmul.f32 %v1771, %v2274
  %v2284 = vmul.f32 %v1774, %v2274
  %v2285 = vmul.f32 %v1776, %v2274
  %v2286 = vmul.f32 %v1779, %v2274
  %v2287 = vmul.f32 %v1781, %v2274
  %v2288 = vmul.f32 %v1784, %v2274
  %v2289 = vmul.f32 %v1786, %v2274
  %v2290 = vmul.f32 %v1789, %v2274
  %v2291 = vmul.f32 %v1791, %v2274
  %v2292 = vmul.f32 %v1794, %v2274
  %v2293 = vmul.f32 %v1796, %v2274
  %v2294 = vmul.f32 %v1799, %v2274
  %v2295 = vmul.f32 %v1801, %v2274
  %v2296 = vmul.f32 %v1804, %v2274
  %v2297 = vmul.f32 %v1806, %v2274
  %v2298 = vmul.f32 %v1809, %v2274
  %v2299 = vmul.f32 %v1811, %v2274
  %v2300 = vmul.f32 %v1814, %v2274
  %v2301 = vmul.f32 %v1816, %v2274
  %v2302 = vmul.f32 %v1819, %v2274
  %v2303 = vmul.f32 %v1821, %v2274
  %v2304 = vmul.f32 %v1824, %v2274
  %v2305 = vmul.f32 %v1826, %v2274
  %v2306 = vmul.f32 %v1829, %v2274
  %v2307 = vmul.f32 %v1831, %v2274
  %v2308 = vmul.f32 %v1834, %v2274
  %v2309 = vmul.f32 %v1836, %v2274
  %v2310 = vmul.f32 %v1839, %v2274
  %v2311 = vmul.f32 %v1841, %v2274
  %v2312 = vmul.f32 %v1844, %v2274
  %v2313 = vmul.f32 %v1846, %v2274
  %v2314 = vmul.f32 %v1849, %v2274
  %v2315 = vmul.f32 %v1851, %v2274
  %v2316 = vmul.f32 %v1854, %v2274
  %v2317 = vmul.f32 %v1856, %v2274
  %v2318 = vmul.f32 %v1859, %v2274
  %v2319 = vmul.f32 %v1861, %v2274
  %v2320 = vmul.f32 %v1864, %v2274
  %v2321 = vmul.f32 %v1866, %v2274
  %v2322 = vmul.f32 %v1869, %v2274
  %v2323 = vmul.f32 %v1871, %v2274
  %v2324 = vmul.f32 %v1874, %v2274
  %v2325 = vmul.f32 %v1876, %v2274
  %v2326 = vmul.f32 %v1879, %v2274
  %v2327 = vmul.f32 %v1881, %v2274
  %v2328 = vmul.f32 %v1884, %v2274
  %v2329 = vmul.f32 %v1886, %v2274
  %v2330 = vmul.f32 %v1889, %v2274
  %v2331 = vmul.f32 %v1891, %v2274
  %v2333 = vperm.slane %v2272, 0
  %v2335 = vadd.f32 %v2276, %v2333
  %v2336 = vadd.f32 %v2277, %v2333
  %v2337 = vadd.f32 %v2278, %v2333
  %v2338 = vadd.f32 %v2279, %v2333
  %v2339 = vadd.f32 %v2280, %v2333
  %v2340 = vadd.f32 %v2281, %v2333
  %v2341 = vadd.f32 %v2282, %v2333
  %v2342 = vadd.f32 %v2283, %v2333
  %v2343 = vadd.f32 %v2284, %v2333
  %v2344 = vadd.f32 %v2285, %v2333
  %v2345 = vadd.f32 %v2286, %v2333
  %v2346 = vadd.f32 %v2287, %v2333
  %v2347 = vadd.f32 %v2288, %v2333
  %v2348 = vadd.f32 %v2289, %v2333
  %v2349 = vadd.f32 %v2290, %v2333
  %v2350 = vadd.f32 %v2291, %v2333
  %v2351 = vadd.f32 %v2292, %v2333
  %v2352 = vadd.f32 %v2293, %v2333
  %v2353 = vadd.f32 %v2294, %v2333
  %v2354 = vadd.f32 %v2295, %v2333
  %v2355 = vadd.f32 %v2296, %v2333
  %v2356 = vadd.f32 %v2297, %v2333
  %v2357 = vadd.f32 %v2298, %v2333
  %v2358 = vadd.f32 %v2299, %v2333
  %v2359 = vadd.f32 %v2300, %v2333
  %v2360 = vadd.f32 %v2301, %v2333
  %v2361 = vadd.f32 %v2302, %v2333
  %v2362 = vadd.f32 %v2303, %v2333
  %v2363 = vadd.f32 %v2304, %v2333
  %v2364 = vadd.f32 %v2305, %v2333
  %v2365 = vadd.f32 %v2306, %v2333
  %v2366 = vadd.f32 %v2307, %v2333
  %v2367 = vadd.f32 %v2308, %v2333
  %v2368 = vadd.f32 %v2309, %v2333
  %v2369 = vadd.f32 %v2310, %v2333
  %v2370 = vadd.f32 %v2311, %v2333
  %v2371 = vadd.f32 %v2312, %v2333
  %v2372 = vadd.f32 %v2313, %v2333
  %v2373 = vadd.f32 %v2314, %v2333
  %v2374 = vadd.f32 %v2315, %v2333
  %v2375 = vadd.f32 %v2316, %v2333
  %v2376 = vadd.f32 %v2317, %v2333
  %v2377 = vadd.f32 %v2318, %v2333
  %v2378 = vadd.f32 %v2319, %v2333
  %v2379 = vadd.f32 %v2320, %v2333
  %v2380 = vadd.f32 %v2321, %v2333
  %v2381 = vadd.f32 %v2322, %v2333
  %v2382 = vadd.f32 %v2323, %v2333
  %v2383 = vadd.f32 %v2324, %v2333
  %v2384 = vadd.f32 %v2325, %v2333
  %v2385 = vadd.f32 %v2326, %v2333
  %v2386 = vadd.f32 %v2327, %v2333
  %v2387 = vadd.f32 %v2328, %v2333
  %v2388 = vadd.f32 %v2329, %v2333
  %v2389 = vadd.f32 %v2330, %v2333
  %v2390 = vadd.f32 %v2331, %v2333
  %v2391 = vmax.f32 %v2335, 0.0
  %v2392 = vmax.f32 %v2336, 0.0
  %v2393 = vmax.f32 %v2337, 0.0
  %v2394 = vmax.f32 %v2338, 0.0
  %v2395 = vmax.f32 %v2339, 0.0
  %v2396 = vmax.f32 %v2340, 0.0
  %v2397 = vmax.f32 %v2341, 0.0
  %v2398 = vmax.f32 %v2342, 0.0
  %v2399 = vmax.f32 %v2343, 0.0
  %v2400 = vmax.f32 %v2344, 0.0
  %v2401 = vmax.f32 %v2345, 0.0
  %v2402 = vmax.f32 %v2346, 0.0
  %v2403 = vmax.f32 %v2347, 0.0
  %v2404 = vmax.f32 %v2348, 0.0
  %v2405 = vmax.f32 %v2349, 0.0
  %v2406 = vmax.f32 %v2350, 0.0
  %v2407 = vmax.f32 %v2351, 0.0
  %v2408 = vmax.f32 %v2352, 0.0
  %v2409 = vmax.f32 %v2353, 0.0
  %v2410 = vmax.f32 %v2354, 0.0
  %v2411 = vmax.f32 %v2355, 0.0
  %v2412 = vmax.f32 %v2356, 0.0
  %v2413 = vmax.f32 %v2357, 0.0
  %v2414 = vmax.f32 %v2358, 0.0
  %v2415 = vmax.f32 %v2359, 0.0
  %v2416 = vmax.f32 %v2360, 0.0
  %v2417 = vmax.f32 %v2361, 0.0
  %v2418 = vmax.f32 %v2362, 0.0
  %v2419 = vmax.f32 %v2363, 0.0
  %v2420 = vmax.f32 %v2364, 0.0
  %v2421 = vmax.f32 %v2365, 0.0
  %v2422 = vmax.f32 %v2366, 0.0
  %v2423 = vmax.f32 %v2367, 0.0
  %v2424 = vmax.f32 %v2368, 0.0
  %v2425 = vmax.f32 %v2369, 0.0
  %v2426 = vmax.f32 %v2370, 0.0
  %v2427 = vmax.f32 %v2371, 0.0
  %v2428 = vmax.f32 %v2372, 0.0
  %v2429 = vmax.f32 %v2373, 0.0
  %v2430 = vmax.f32 %v2374, 0.0
  %v2431 = vmax.f32 %v2375, 0.0
  %v2432 = vmax.f32 %v2376, 0.0
  %v2433 = vmax.f32 %v2377, 0.0
  %v2434 = vmax.f32 %v2378, 0.0
  %v2435 = vmax.f32 %v2379, 0.0
  %v2436 = vmax.f32 %v2380, 0.0
  %v2437 = vmax.f32 %v2381, 0.0
  %v2438 = vmax.f32 %v2382, 0.0
  %v2439 = vmax.f32 %v2383, 0.0
  %v2440 = vmax.f32 %v2384, 0.0
  %v2441 = vmax.f32 %v2385, 0.0
  %v2442 = vmax.f32 %v2386, 0.0
  %v2443 = vmax.f32 %v2387, 0.0
  %v2444 = vmax.f32 %v2388, 0.0
  %v2445 = vmax.f32 %v2389, 0.0
  %v2446 = vmax.f32 %v2390, 0.0
  %v2447 = vpack.c.bf16 %v2391, %v2391
  %v2448 = vpack.c.bf16 %v2392, %v2392
  %v2449 = vpack.c.bf16 %v2393, %v2393
  %v2450 = vpack.c.bf16 %v2394, %v2394
  %v2451 = vpack.c.bf16 %v2395, %v2395
  %v2452 = vpack.c.bf16 %v2396, %v2396
  %v2453 = vpack.c.bf16 %v2397, %v2397
  %v2454 = vpack.c.bf16 %v2398, %v2398
  %v2455 = vpack.c.bf16 %v2399, %v2399
  %v2456 = vpack.c.bf16 %v2400, %v2400
  %v2457 = vpack.c.bf16 %v2401, %v2401
  %v2458 = vpack.c.bf16 %v2402, %v2402
  %v2459 = vpack.c.bf16 %v2403, %v2403
  %v2460 = vpack.c.bf16 %v2404, %v2404
  %v2461 = vpack.c.bf16 %v2405, %v2405
  %v2462 = vpack.c.bf16 %v2406, %v2406
  %v2463 = vpack.c.bf16 %v2407, %v2407
  %v2464 = vpack.c.bf16 %v2408, %v2408
  %v2465 = vpack.c.bf16 %v2409, %v2409
  %v2466 = vpack.c.bf16 %v2410, %v2410
  %v2467 = vpack.c.bf16 %v2411, %v2411
  %v2468 = vpack.c.bf16 %v2412, %v2412
  %v2469 = vpack.c.bf16 %v2413, %v2413
  %v2470 = vpack.c.bf16 %v2414, %v2414
  %v2471 = vpack.c.bf16 %v2415, %v2415
  %v2472 = vpack.c.bf16 %v2416, %v2416
  %v2473 = vpack.c.bf16 %v2417, %v2417
  %v2474 = vpack.c.bf16 %v2418, %v2418
  %v2475 = vpack.c.bf16 %v2419, %v2419
  %v2476 = vpack.c.bf16 %v2420, %v2420
  %v2477 = vpack.c.bf16 %v2421, %v2421
  %v2478 = vpack.c.bf16 %v2422, %v2422
  %v2479 = vpack.c.bf16 %v2423, %v2423
  %v2480 = vpack.c.bf16 %v2424, %v2424
  %v2481 = vpack.c.bf16 %v2425, %v2425
  %v2482 = vpack.c.bf16 %v2426, %v2426
  %v2483 = vpack.c.bf16 %v2427, %v2427
  %v2484 = vpack.c.bf16 %v2428, %v2428
  %v2485 = vpack.c.bf16 %v2429, %v2429
  %v2486 = vpack.c.bf16 %v2430, %v2430
  %v2487 = vpack.c.bf16 %v2431, %v2431
  %v2488 = vpack.c.bf16 %v2432, %v2432
  %v2489 = vpack.c.bf16 %v2433, %v2433
  %v2490 = vpack.c.bf16 %v2434, %v2434
  %v2491 = vpack.c.bf16 %v2435, %v2435
  %v2492 = vpack.c.bf16 %v2436, %v2436
  %v2493 = vpack.c.bf16 %v2437, %v2437
  %v2494 = vpack.c.bf16 %v2438, %v2438
  %v2495 = vpack.c.bf16 %v2439, %v2439
  %v2496 = vpack.c.bf16 %v2440, %v2440
  %v2497 = vpack.c.bf16 %v2441, %v2441
  %v2498 = vpack.c.bf16 %v2442, %v2442
  %v2499 = vpack.c.bf16 %v2443, %v2443
  %v2500 = vpack.c.bf16 %v2444, %v2444
  %v2501 = vpack.c.bf16 %v2445, %v2445
  %v2502 = vpack.c.bf16 %v2446, %v2446
  %2503 = vst [vmem:[%s4] sm:$0xf] %v2447
  %2504 = vst [vmem:[%s4 + $0x4] sm:$0xf] %v2448
  %2505 = vst [vmem:[%s4 + $0x8] sm:$0xf] %v2449
  %2506 = vst [vmem:[%s4 + $0xc] sm:$0xf] %v2450
  %2507 = vst [vmem:[%s4 + $0x10] sm:$0xf] %v2451
  %2508 = vst [vmem:[%s4 + $0x14] sm:$0xf] %v2452
  %2509 = vst [vmem:[%s4 + $0x18] sm:$0xf] %v2453
  %2510 = vst [vmem:[%s4 + $0x1c] sm:$0xf] %v2454
  %2511 = vst [vmem:[%s4 + $0x20] sm:$0xf] %v2455
  %2512 = vst [vmem:[%s4 + $0x24] sm:$0xf] %v2456
  %2513 = vst [vmem:[%s4 + $0x28] sm:$0xf] %v2457
  %2514 = vst [vmem:[%s4 + $0x2c] sm:$0xf] %v2458
  %2515 = vst [vmem:[%s4 + $0x30] sm:$0xf] %v2459
  %2516 = vst [vmem:[%s4 + $0x34] sm:$0xf] %v2460
  %2517 = vst [vmem:[%s4 + $0x38] sm:$0xf] %v2461
  %2518 = vst [vmem:[%s4 + $0x3c] sm:$0xf] %v2462
  %2519 = vst [vmem:[%s4 + $0x40] sm:$0xf] %v2463
  %2520 = vst [vmem:[%s4 + $0x44] sm:$0xf] %v2464
  %2521 = vst [vmem:[%s4 + $0x48] sm:$0xf] %v2465
  %2522 = vst [vmem:[%s4 + $0x4c] sm:$0xf] %v2466
  %2523 = vst [vmem:[%s4 + $0x50] sm:$0xf] %v2467
  %2524 = vst [vmem:[%s4 + $0x54] sm:$0xf] %v2468
  %2525 = vst [vmem:[%s4 + $0x58] sm:$0xf] %v2469
  %2526 = vst [vmem:[%s4 + $0x5c] sm:$0xf] %v2470
  %2527 = vst [vmem:[%s4 + $0x60] sm:$0xf] %v2471
  %2528 = vst [vmem:[%s4 + $0x64] sm:$0xf] %v2472
  %2529 = vst [vmem:[%s4 + $0x68] sm:$0xf] %v2473
  %2530 = vst [vmem:[%s4 + $0x6c] sm:$0xf] %v2474
  %2531 = vst [vmem:[%s4 + $0x70] sm:$0xf] %v2475
  %2532 = vst [vmem:[%s4 + $0x74] sm:$0xf] %v2476
  %2533 = vst [vmem:[%s4 + $0x78] sm:$0xf] %v2477
  %2534 = vst [vmem:[%s4 + $0x7c] sm:$0xf] %v2478
  %2535 = vst [vmem:[%s4 + $0x80] sm:$0xf] %v2479
  %2536 = vst [vmem:[%s4 + $0x84] sm:$0xf] %v2480
  %2537 = vst [vmem:[%s4 + $0x88] sm:$0xf] %v2481
  %2538 = vst [vmem:[%s4 + $0x8c] sm:$0xf] %v2482
  %2539 = vst [vmem:[%s4 + $0x90] sm:$0xf] %v2483
  %2540 = vst [vmem:[%s4 + $0x94] sm:$0xf] %v2484
  %2541 = vst [vmem:[%s4 + $0x98] sm:$0xf] %v2485
  %2542 = vst [vmem:[%s4 + $0x9c] sm:$0xf] %v2486
  %2543 = vst [vmem:[%s4 + $0xa0] sm:$0xf] %v2487
  %2544 = vst [vmem:[%s4 + $0xa4] sm:$0xf] %v2488
  %2545 = vst [vmem:[%s4 + $0xa8] sm:$0xf] %v2489
  %2546 = vst [vmem:[%s4 + $0xac] sm:$0xf] %v2490
  %2547 = vst [vmem:[%s4 + $0xb0] sm:$0xf] %v2491
  %2548 = vst [vmem:[%s4 + $0xb4] sm:$0xf] %v2492
  %2549 = vst [vmem:[%s4 + $0xb8] sm:$0xf] %v2493
  %2550 = vst [vmem:[%s4 + $0xbc] sm:$0xf] %v2494
  %2551 = vst [vmem:[%s4 + $0xc0] sm:$0xf] %v2495
  %2552 = vst [vmem:[%s4 + $0xc4] sm:$0xf] %v2496
  %2553 = vst [vmem:[%s4 + $0xc8] sm:$0xf] %v2497
  %2554 = vst [vmem:[%s4 + $0xcc] sm:$0xf] %v2498
  %2555 = vst [vmem:[%s4 + $0xd0] sm:$0xf] %v2499
  %2556 = vst [vmem:[%s4 + $0xd4] sm:$0xf] %v2500
  %2557 = vst [vmem:[%s4 + $0xd8] sm:$0xf] %v2501
  %2558 = vst [vmem:[%s4 + $0xdc] sm:$0xf] %v2502
  // Predicated region
  $region18: #{double_conv_pallas.2} parent=0 // pred_check
    _
  $region19: #{double_conv_pallas.2} parent=0 // pred_check_branch
    %2560 = sbr.rel (0) target = $region21
  $region20: #{double_conv_pallas.2} parent=0 // pred_region
    _
  $region21: #{double_conv_pallas.2} parent=0 // pred_fallthru
    _
  // Predicated region
  $region22: #{double_conv_pallas.2} parent=0 // pred_check
    _
  $region23: #{double_conv_pallas.2} parent=0 // pred_check_branch
    %2562 = sbr.rel (0) target = $region25
  $region24: #{double_conv_pallas.2} parent=0 // pred_region
    _
  $region25: #{double_conv_pallas.2} parent=0 // pred_fallthru
    _

// kernel: double_conv_pallas.3
$region0: #{double_conv_pallas.3}
  #allocation0 [shape = 'u32[]', space=smem, size = 0x4, offset = 0x4, fixed_abs, tag = 'smem constant byte address 0x4 - core index']
  #allocation1 [shape = 'u32[72,128]{1,0:T(1,128)}', space=vmem, size = 0x9000, scoped, tag = 'internal scratch']
  %s0 = inlined_call_operand.vmem [shape: bf16[2,14,16,128], index: 0, kind: input, shape index: {}]
  %s1 = inlined_call_operand.vmem [shape: bf16[3,384,128], index: 1, kind: input, shape index: {}]
  %s2 = inlined_call_operand.vmem [shape: f32[1,128], index: 2, kind: input, shape index: {}]
  %s3 = inlined_call_operand.vmem [shape: f32[1,128], index: 3, kind: input, shape index: {}]
  %s4 = inlined_call_operand.vmem [shape: f32[2,12,16,128], index: 4, kind: output, shape index: {}]
  %s5 = sld [smem:[#allocation0]]
  $region26: #{double_conv_pallas.3} parent=0
    _
  %s7 = ssub.s32 1, %s5
  %s8 = scalar_select 0, %s7, %s5
  // Predicated region
  $region2: #{double_conv_pallas.3} parent=0 // pred_check
    _
  $region3: #{double_conv_pallas.3} parent=0 // pred_check_branch
    %10 = sbr.rel (0) target = $region5
  $region4: #{double_conv_pallas.3} parent=0 // pred_region
    _
  $region5: #{double_conv_pallas.3} parent=0 // pred_fallthru
    _
  // Predicated region
  $region6: #{double_conv_pallas.3} parent=0 // pred_check
    _
  $region7: #{double_conv_pallas.3} parent=0 // pred_check_branch
    %12 = sbr.rel (0) target = $region9
  $region8: #{double_conv_pallas.3} parent=0 // pred_region
    _
  $region9: #{double_conv_pallas.3} parent=0 // pred_fallthru
    _
  // Predicated region
  $region10: #{double_conv_pallas.3} parent=0 // pred_check
    _
  $region11: #{double_conv_pallas.3} parent=0 // pred_check_branch
    %14 = sbr.rel (0) target = $region13
  $region12: #{double_conv_pallas.3} parent=0 // pred_region
    _
  $region13: #{double_conv_pallas.3} parent=0 // pred_fallthru
    _
  // Predicated region
  $region14: #{double_conv_pallas.3} parent=0 // pred_check
    _
  $region15: #{double_conv_pallas.3} parent=0 // pred_check_branch
    %16 = sbr.rel (0) target = $region17
  $region16: #{double_conv_pallas.3} parent=0 // pred_region
    _
  $region17: #{double_conv_pallas.3} parent=0 // pred_fallthru
    _
  %v18 = vld [vmem:[%s0] sm:$0xf]
  %v19 = vld [vmem:[%s0 + $0x4] sm:$0xf]
  %v20 = vld [vmem:[%s0 + $0x8] sm:$0xf]
  %v21 = vld [vmem:[%s0 + $0xc] sm:$0xf]
  %v22 = vld [vmem:[%s0 + $0x10] sm:$0xf]
  %v23 = vld [vmem:[%s0 + $0x14] sm:$0xf]
  %v24 = vld [vmem:[%s0 + $0x18] sm:$0xf]
  %v25 = vld [vmem:[%s0 + $0x1c] sm:$0xf]
  %v26 = vld [vmem:[%s0 + $0x20] sm:$0xf]
  %v27 = vld [vmem:[%s0 + $0x24] sm:$0xf]
  %v28 = vld [vmem:[%s0 + $0x28] sm:$0xf]
  %v29 = vld [vmem:[%s0 + $0x2c] sm:$0xf]
  %v30 = vld [vmem:[%s0 + $0x30] sm:$0xf]
  %v31 = vld [vmem:[%s0 + $0x34] sm:$0xf]
  %v32 = vld [vmem:[%s0 + $0x38] sm:$0xf]
  %v33 = vld [vmem:[%s0 + $0x3c] sm:$0xf]
  %v34 = vld [vmem:[%s0 + $0x40] sm:$0xf]
  %v35 = vld [vmem:[%s0 + $0x44] sm:$0xf]
  %v36 = vld [vmem:[%s0 + $0x48] sm:$0xf]
  %v37 = vld [vmem:[%s0 + $0x4c] sm:$0xf]
  %v38 = vld [vmem:[%s0 + $0x50] sm:$0xf]
  %v39 = vld [vmem:[%s0 + $0x54] sm:$0xf]
  %v40 = vld [vmem:[%s0 + $0x58] sm:$0xf]
  %v41 = vld [vmem:[%s0 + $0x5c] sm:$0xf]
  %v42 = vld [vmem:[%s0 + $0x60] sm:$0xf]
  %v43 = vld [vmem:[%s0 + $0x64] sm:$0xf]
  %v44 = vld [vmem:[%s0 + $0x68] sm:$0xf]
  %v45 = vld [vmem:[%s0 + $0x6c] sm:$0xf]
  %v46 = vld [vmem:[%s0 + $0x70] sm:$0xf]
  %v47 = vld [vmem:[%s0 + $0x74] sm:$0xf]
  %v48 = vld [vmem:[%s0 + $0x78] sm:$0xf]
  %v49 = vld [vmem:[%s0 + $0x7c] sm:$0xf]
  %v50 = vld [vmem:[%s0 + $0x80] sm:$0xf]
  %v51 = vld [vmem:[%s0 + $0x84] sm:$0xf]
  %v52 = vld [vmem:[%s0 + $0x88] sm:$0xf]
  %v53 = vld [vmem:[%s0 + $0x8c] sm:$0xf]
  %v54 = vld [vmem:[%s0 + $0x90] sm:$0xf]
  %v55 = vld [vmem:[%s0 + $0x94] sm:$0xf]
  %v56 = vld [vmem:[%s0 + $0x98] sm:$0xf]
  %v57 = vld [vmem:[%s0 + $0x9c] sm:$0xf]
  %v58 = vld [vmem:[%s0 + $0xa0] sm:$0xf]
  %v59 = vld [vmem:[%s0 + $0xa4] sm:$0xf]
  %v60 = vld [vmem:[%s0 + $0xa8] sm:$0xf]
  %v61 = vld [vmem:[%s0 + $0xac] sm:$0xf]
  %v62 = vld [vmem:[%s0 + $0xb0] sm:$0xf]
  %v63 = vld [vmem:[%s0 + $0xb4] sm:$0xf]
  %v64 = vld [vmem:[%s0 + $0xb8] sm:$0xf]
  %v65 = vld [vmem:[%s0 + $0xbc] sm:$0xf]
  %v66 = vld [vmem:[%s0 + $0xc0] sm:$0xf]
  %v67 = vld [vmem:[%s0 + $0xc4] sm:$0xf]
  %v68 = vld [vmem:[%s0 + $0xc8] sm:$0xf]
  %v69 = vld [vmem:[%s0 + $0xcc] sm:$0xf]
  %v70 = vld [vmem:[%s0 + $0xd0] sm:$0xf]
  %v71 = vld [vmem:[%s0 + $0xd4] sm:$0xf]
  %v72 = vld [vmem:[%s0 + $0xd8] sm:$0xf]
  %v73 = vld [vmem:[%s0 + $0xdc] sm:$0xf]
  %v122 = vunpack.c.l.b16 %v18
  %v123 = vunpack.c.l.b16 %v19
  %v124 = vunpack.c.l.b16 %v20
  %v125 = vunpack.c.l.b16 %v21
  %v126 = vunpack.c.l.b16 %v22
  %v127 = vunpack.c.l.b16 %v23
  %v128 = vunpack.c.l.b16 %v24
  %v129 = vunpack.c.l.b16 %v25
  %v130 = vunpack.c.l.b16 %v26
  %v131 = vunpack.c.l.b16 %v27
  %v132 = vunpack.c.l.b16 %v28
  %v133 = vunpack.c.l.b16 %v29
  %v134 = vunpack.c.l.b16 %v30
  %v135 = vunpack.c.l.b16 %v31
  %v136 = vunpack.c.l.b16 %v32
  %v137 = vunpack.c.l.b16 %v33
  %v138 = vunpack.c.l.b16 %v34
  %v139 = vunpack.c.l.b16 %v35
  %v140 = vunpack.c.l.b16 %v36
  %v141 = vunpack.c.l.b16 %v37
  %v142 = vunpack.c.l.b16 %v38
  %v143 = vunpack.c.l.b16 %v39
  %v144 = vunpack.c.l.b16 %v40
  %v145 = vunpack.c.l.b16 %v41
  %v146 = vunpack.c.l.b16 %v46
  %v147 = vunpack.c.l.b16 %v47
  %v148 = vunpack.c.l.b16 %v48
  %v149 = vunpack.c.l.b16 %v49
  %v150 = vunpack.c.l.b16 %v50
  %v151 = vunpack.c.l.b16 %v51
  %v152 = vunpack.c.l.b16 %v52
  %v153 = vunpack.c.l.b16 %v53
  %v154 = vunpack.c.l.b16 %v54
  %v155 = vunpack.c.l.b16 %v55
  %v156 = vunpack.c.l.b16 %v56
  %v157 = vunpack.c.l.b16 %v57
  %v158 = vunpack.c.l.b16 %v58
  %v159 = vunpack.c.l.b16 %v59
  %v160 = vunpack.c.l.b16 %v60
  %v161 = vunpack.c.l.b16 %v61
  %v162 = vunpack.c.l.b16 %v62
  %v163 = vunpack.c.l.b16 %v63
  %v164 = vunpack.c.l.b16 %v64
  %v165 = vunpack.c.l.b16 %v65
  %v166 = vunpack.c.l.b16 %v66
  %v167 = vunpack.c.l.b16 %v67
  %v168 = vunpack.c.l.b16 %v68
  %v169 = vunpack.c.l.b16 %v69
  %v170 = vpack.c.b16 %v123, %v122
  %v171 = vpack.c.b16 %v125, %v124
  %v172 = vpack.c.b16 %v127, %v126
  %v173 = vpack.c.b16 %v129, %v128
  %v174 = vpack.c.b16 %v131, %v130
  %v175 = vpack.c.b16 %v133, %v132
  %v176 = vpack.c.b16 %v135, %v134
  %v177 = vpack.c.b16 %v137, %v136
  %v178 = vpack.c.b16 %v139, %v138
  %v179 = vpack.c.b16 %v141, %v140
  %v180 = vpack.c.b16 %v143, %v142
  %v181 = vpack.c.b16 %v145, %v144
  %v182 = vpack.c.b16 %v147, %v146
  %v183 = vpack.c.b16 %v149, %v148
  %v184 = vpack.c.b16 %v151, %v150
  %v185 = vpack.c.b16 %v153, %v152
  %v186 = vpack.c.b16 %v155, %v154
  %v187 = vpack.c.b16 %v157, %v156
  %v188 = vpack.c.b16 %v159, %v158
  %v189 = vpack.c.b16 %v161, %v160
  %v190 = vpack.c.b16 %v163, %v162
  %v191 = vpack.c.b16 %v165, %v164
  %v192 = vpack.c.b16 %v167, %v166
  %v193 = vpack.c.b16 %v169, %v168
  %v222 = vunpack.c.l.b16 %v42
  %v223 = vunpack.c.l.b16 %v43
  %v224 = vunpack.c.l.b16 %v70
  %v225 = vunpack.c.l.b16 %v71
  %v226 = vpack.c.b16 %v223, %v222
  %v227 = vpack.c.b16 %v225, %v224
  %v234 = vunpack.c.l.b16 %v44
  %v235 = vunpack.c.l.b16 %v45
  %v236 = vunpack.c.l.b16 %v72
  %v237 = vunpack.c.l.b16 %v73
  %v238 = vpack.c.b16 %v235, %v234
  %v239 = vpack.c.b16 %v237, %v236
  %v242 = vld [vmem:[%s1] sm:$0xf]
  %v243 = vld [vmem:[%s1 + $0x4] sm:$0xf]
  %v244 = vld [vmem:[%s1 + $0x8] sm:$0xf]
  %v245 = vld [vmem:[%s1 + $0xc] sm:$0xf]
  %v246 = vld [vmem:[%s1 + $0x10] sm:$0xf]
  %v247 = vld [vmem:[%s1 + $0x14] sm:$0xf]
  %v248 = vld [vmem:[%s1 + $0x18] sm:$0xf]
  %v249 = vld [vmem:[%s1 + $0x1c] sm:$0xf]
  %v250 = vld [vmem:[%s1 + $0x20] sm:$0xf]
  %v251 = vld [vmem:[%s1 + $0x24] sm:$0xf]
  %v252 = vld [vmem:[%s1 + $0x28] sm:$0xf]
  %v253 = vld [vmem:[%s1 + $0x2c] sm:$0xf]
  %v254 = vld [vmem:[%s1 + $0x30] sm:$0xf]
  %v255 = vld [vmem:[%s1 + $0x34] sm:$0xf]
  %v256 = vld [vmem:[%s1 + $0x38] sm:$0xf]
  %v257 = vld [vmem:[%s1 + $0x3c] sm:$0xf]
  %v258 = vld [vmem:[%s1 + $0x40] sm:$0xf]
  %v259 = vld [vmem:[%s1 + $0x44] sm:$0xf]
  %v260 = vld [vmem:[%s1 + $0x48] sm:$0xf]
  %v261 = vld [vmem:[%s1 + $0x4c] sm:$0xf]
  %v262 = vld [vmem:[%s1 + $0x50] sm:$0xf]
  %v263 = vld [vmem:[%s1 + $0x54] sm:$0xf]
  %v264 = vld [vmem:[%s1 + $0x58] sm:$0xf]
  %v265 = vld [vmem:[%s1 + $0x5c] sm:$0xf]
  %v266 = vld [vmem:[%s1 + $0x60] sm:$0xf]
  %v267 = vld [vmem:[%s1 + $0x64] sm:$0xf]
  %v268 = vld [vmem:[%s1 + $0x68] sm:$0xf]
  %v269 = vld [vmem:[%s1 + $0x6c] sm:$0xf]
  %v270 = vld [vmem:[%s1 + $0x70] sm:$0xf]
  %v271 = vld [vmem:[%s1 + $0x74] sm:$0xf]
  %v272 = vld [vmem:[%s1 + $0x78] sm:$0xf]
  %v273 = vld [vmem:[%s1 + $0x7c] sm:$0xf]
  %v274 = vld [vmem:[%s1 + $0x80] sm:$0xf]
  %v275 = vld [vmem:[%s1 + $0x84] sm:$0xf]
  %v276 = vld [vmem:[%s1 + $0x88] sm:$0xf]
  %v277 = vld [vmem:[%s1 + $0x8c] sm:$0xf]
  %v278 = vld [vmem:[%s1 + $0x90] sm:$0xf]
  %v279 = vld [vmem:[%s1 + $0x94] sm:$0xf]
  %v280 = vld [vmem:[%s1 + $0x98] sm:$0xf]
  %v281 = vld [vmem:[%s1 + $0x9c] sm:$0xf]
  %v282 = vld [vmem:[%s1 + $0xa0] sm:$0xf]
  %v283 = vld [vmem:[%s1 + $0xa4] sm:$0xf]
  %v284 = vld [vmem:[%s1 + $0xa8] sm:$0xf]
  %v285 = vld [vmem:[%s1 + $0xac] sm:$0xf]
  %v286 = vld [vmem:[%s1 + $0xb0] sm:$0xf]
  %v287 = vld [vmem:[%s1 + $0xb4] sm:$0xf]
  %v288 = vld [vmem:[%s1 + $0xb8] sm:$0xf]
  %v289 = vld [vmem:[%s1 + $0xbc] sm:$0xf]
  %v291 = vshrl.u32 %v170, 16
  %v293 = vshll.u32 %v170, 16
  %v295 = vrot.slane %v293, 1
  %v296 = vor.u32 %v291, %v295
  %v298 = vshrl.u32 %v171, 16
  %v300 = vshll.u32 %v171, 16
  %v302 = vrot.slane %v300, 1
  %v303 = vor.u32 %v298, %v302
  %v305 = vshrl.u32 %v172, 16
  %v307 = vshll.u32 %v172, 16
  %v309 = vrot.slane %v307, 1
  %v310 = vor.u32 %v305, %v309
  %v312 = vshrl.u32 %v173, 16
  %v314 = vshll.u32 %v173, 16
  %v316 = vrot.slane %v314, 1
  %v317 = vor.u32 %v312, %v316
  %v319 = vshrl.u32 %v174, 16
  %v321 = vshll.u32 %v174, 16
  %v323 = vrot.slane %v321, 1
  %v324 = vor.u32 %v319, %v323
  %v326 = vshrl.u32 %v175, 16
  %v328 = vshll.u32 %v175, 16
  %v330 = vrot.slane %v328, 1
  %v331 = vor.u32 %v326, %v330
  %v333 = vshrl.u32 %v176, 16
  %v335 = vshll.u32 %v176, 16
  %v337 = vrot.slane %v335, 1
  %v338 = vor.u32 %v333, %v337
  %v340 = vshrl.u32 %v177, 16
  %v342 = vshll.u32 %v177, 16
  %v344 = vrot.slane %v342, 1
  %v345 = vor.u32 %v340, %v344
  %v347 = vshrl.u32 %v178, 16
  %v349 = vshll.u32 %v178, 16
  %v351 = vrot.slane %v349, 1
  %v352 = vor.u32 %v347, %v351
  %v354 = vshrl.u32 %v179, 16
  %v356 = vshll.u32 %v179, 16
  %v358 = vrot.slane %v356, 1
  %v359 = vor.u32 %v354, %v358
  %v361 = vshrl.u32 %v180, 16
  %v363 = vshll.u32 %v180, 16
  %v365 = vrot.slane %v363, 1
  %v366 = vor.u32 %v361, %v365
  %v368 = vshrl.u32 %v181, 16
  %v370 = vshll.u32 %v181, 16
  %v372 = vrot.slane %v370, 1
  %v373 = vor.u32 %v368, %v372
  %v375 = vshrl.u32 %v226, 16
  %v377 = vshll.u32 %v226, 16
  %v379 = vrot.slane %v377, 1
  %v380 = vor.u32 %v375, %v379
  %v382 = vshrl.u32 %v238, 16
  %v384 = vshll.u32 %v238, 16
  %v386 = vrot.slane %v384, 1
  %v387 = vor.u32 %v382, %v386
  %v389 = vshrl.u32 %v182, 16
  %v391 = vshll.u32 %v182, 16
  %v393 = vrot.slane %v391, 1
  %v394 = vor.u32 %v389, %v393
  %v396 = vshrl.u32 %v183, 16
  %v398 = vshll.u32 %v183, 16
  %v400 = vrot.slane %v398, 1
  %v401 = vor.u32 %v396, %v400
  %v403 = vshrl.u32 %v184, 16
  %v405 = vshll.u32 %v184, 16
  %v407 = vrot.slane %v405, 1
  %v408 = vor.u32 %v403, %v407
  %v410 = vshrl.u32 %v185, 16
  %v412 = vshll.u32 %v185, 16
  %v414 = vrot.slane %v412, 1
  %v415 = vor.u32 %v410, %v414
  %v417 = vshrl.u32 %v186, 16
  %v419 = vshll.u32 %v186, 16
  %v421 = vrot.slane %v419, 1
  %v422 = vor.u32 %v417, %v421
  %v424 = vshrl.u32 %v187, 16
  %v426 = vshll.u32 %v187, 16
  %v428 = vrot.slane %v426, 1
  %v429 = vor.u32 %v424, %v428
  %v431 = vshrl.u32 %v188, 16
  %v433 = vshll.u32 %v188, 16
  %v435 = vrot.slane %v433, 1
  %v436 = vor.u32 %v431, %v435
  %v438 = vshrl.u32 %v189, 16
  %v440 = vshll.u32 %v189, 16
  %v442 = vrot.slane %v440, 1
  %v443 = vor.u32 %v438, %v442
  %v445 = vshrl.u32 %v190, 16
  %v447 = vshll.u32 %v190, 16
  %v449 = vrot.slane %v447, 1
  %v450 = vor.u32 %v445, %v449
  %v452 = vshrl.u32 %v191, 16
  %v454 = vshll.u32 %v191, 16
  %v456 = vrot.slane %v454, 1
  %v457 = vor.u32 %v452, %v456
  %v459 = vshrl.u32 %v192, 16
  %v461 = vshll.u32 %v192, 16
  %v463 = vrot.slane %v461, 1
  %v464 = vor.u32 %v459, %v463
  %v466 = vshrl.u32 %v193, 16
  %v468 = vshll.u32 %v193, 16
  %v470 = vrot.slane %v468, 1
  %v471 = vor.u32 %v466, %v470
  %v473 = vshrl.u32 %v227, 16
  %v475 = vshll.u32 %v227, 16
  %v477 = vrot.slane %v475, 1
  %v478 = vor.u32 %v473, %v477
  %v480 = vshrl.u32 %v239, 16
  %v482 = vshll.u32 %v239, 16
  %v484 = vrot.slane %v482, 1
  %v485 = vor.u32 %v480, %v484
  %vm514 = vcmask 1047552
  %vm515 = vsmask.f32 7424
  %vm516 = vmand %vm514, %vm515
  %v517 = vsel %vm516, %v296, 0
  %v518 = vsel %vm516, %v303, 0
  %v519 = vsel %vm516, %v310, 0
  %v520 = vsel %vm516, %v317, 0
  %v521 = vsel %vm516, %v324, 0
  %v522 = vsel %vm516, %v331, 0
  %v523 = vsel %vm516, %v338, 0
  %v524 = vsel %vm516, %v345, 0
  %v525 = vsel %vm516, %v352, 0
  %v526 = vsel %vm516, %v359, 0
  %v527 = vsel %vm516, %v366, 0
  %v528 = vsel %vm516, %v373, 0
  %v529 = vsel %vm516, %v380, 0
  %v530 = vsel %vm516, %v387, 0
  %v531 = vsel %vm516, %v394, 0
  %v532 = vsel %vm516, %v401, 0
  %v533 = vsel %vm516, %v408, 0
  %v534 = vsel %vm516, %v415, 0
  %v535 = vsel %vm516, %v422, 0
  %v536 = vsel %vm516, %v429, 0
  %v537 = vsel %vm516, %v436, 0
  %v538 = vsel %vm516, %v443, 0
  %v539 = vsel %vm516, %v450, 0
  %v540 = vsel %vm516, %v457, 0
  %v541 = vsel %vm516, %v464, 0
  %v542 = vsel %vm516, %v471, 0
  %v543 = vsel %vm516, %v478, 0
  %v544 = vsel %vm516, %v485, 0
  %s545 = scalar_lea.vmem %s1, 192
  %v546 = vld [vmem:[%s545] sm:$0xf]
  %v547 = vld [vmem:[%s545 + $0x4] sm:$0xf]
  %v548 = vld [vmem:[%s545 + $0x8] sm:$0xf]
  %v549 = vld [vmem:[%s545 + $0xc] sm:$0xf]
  %v550 = vld [vmem:[%s545 + $0x10] sm:$0xf]
  %v551 = vld [vmem:[%s545 + $0x14] sm:$0xf]
  %v552 = vld [vmem:[%s545 + $0x18] sm:$0xf]
  %v553 = vld [vmem:[%s545 + $0x1c] sm:$0xf]
  %v554 = vld [vmem:[%s545 + $0x20] sm:$0xf]
  %v555 = vld [vmem:[%s545 + $0x24] sm:$0xf]
  %v556 = vld [vmem:[%s545 + $0x28] sm:$0xf]
  %v557 = vld [vmem:[%s545 + $0x2c] sm:$0xf]
  %v558 = vld [vmem:[%s545 + $0x30] sm:$0xf]
  %v559 = vld [vmem:[%s545 + $0x34] sm:$0xf]
  %v560 = vld [vmem:[%s545 + $0x38] sm:$0xf]
  %v561 = vld [vmem:[%s545 + $0x3c] sm:$0xf]
  %v562 = vld [vmem:[%s545 + $0x40] sm:$0xf]
  %v563 = vld [vmem:[%s545 + $0x44] sm:$0xf]
  %v564 = vld [vmem:[%s545 + $0x48] sm:$0xf]
  %v565 = vld [vmem:[%s545 + $0x4c] sm:$0xf]
  %v566 = vld [vmem:[%s545 + $0x50] sm:$0xf]
  %v567 = vld [vmem:[%s545 + $0x54] sm:$0xf]
  %v568 = vld [vmem:[%s545 + $0x58] sm:$0xf]
  %v569 = vld [vmem:[%s545 + $0x5c] sm:$0xf]
  %v570 = vld [vmem:[%s545 + $0x60] sm:$0xf]
  %v571 = vld [vmem:[%s545 + $0x64] sm:$0xf]
  %v572 = vld [vmem:[%s545 + $0x68] sm:$0xf]
  %v573 = vld [vmem:[%s545 + $0x6c] sm:$0xf]
  %v574 = vld [vmem:[%s545 + $0x70] sm:$0xf]
  %v575 = vld [vmem:[%s545 + $0x74] sm:$0xf]
  %v576 = vld [vmem:[%s545 + $0x78] sm:$0xf]
  %v577 = vld [vmem:[%s545 + $0x7c] sm:$0xf]
  %v578 = vld [vmem:[%s545 + $0x80] sm:$0xf]
  %v579 = vld [vmem:[%s545 + $0x84] sm:$0xf]
  %v580 = vld [vmem:[%s545 + $0x88] sm:$0xf]
  %v581 = vld [vmem:[%s545 + $0x8c] sm:$0xf]
  %v582 = vld [vmem:[%s545 + $0x90] sm:$0xf]
  %v583 = vld [vmem:[%s545 + $0x94] sm:$0xf]
  %v584 = vld [vmem:[%s545 + $0x98] sm:$0xf]
  %v585 = vld [vmem:[%s545 + $0x9c] sm:$0xf]
  %v586 = vld [vmem:[%s545 + $0xa0] sm:$0xf]
  %v587 = vld [vmem:[%s545 + $0xa4] sm:$0xf]
  %v588 = vld [vmem:[%s545 + $0xa8] sm:$0xf]
  %v589 = vld [vmem:[%s545 + $0xac] sm:$0xf]
  %v590 = vld [vmem:[%s545 + $0xb0] sm:$0xf]
  %v591 = vld [vmem:[%s545 + $0xb4] sm:$0xf]
  %v592 = vld [vmem:[%s545 + $0xb8] sm:$0xf]
  %v593 = vld [vmem:[%s545 + $0xbc] sm:$0xf]
  %v642 = vunpack.c.l.b16 %v546
  %v643 = vunpack.c.l.b16 %v547
  %v644 = vunpack.c.l.b16 %v548
  %v645 = vunpack.c.l.b16 %v549
  %v646 = vunpack.c.l.b16 %v550
  %v647 = vunpack.c.l.b16 %v551
  %v648 = vunpack.c.l.b16 %v552
  %v649 = vunpack.c.l.b16 %v553
  %v650 = vunpack.c.l.b16 %v554
  %v651 = vunpack.c.l.b16 %v555
  %v652 = vunpack.c.l.b16 %v556
  %v653 = vunpack.c.l.b16 %v557
  %v654 = vunpack.c.l.b16 %v558
  %v655 = vunpack.c.l.b16 %v559
  %v656 = vunpack.c.l.b16 %v560
  %v657 = vunpack.c.l.b16 %v561
  %v658 = vunpack.c.l.b16 %v562
  %v659 = vunpack.c.l.b16 %v563
  %v660 = vunpack.c.l.b16 %v564
  %v661 = vunpack.c.l.b16 %v565
  %v662 = vunpack.c.l.b16 %v566
  %v663 = vunpack.c.l.b16 %v567
  %v664 = vunpack.c.l.b16 %v568
  %v665 = vunpack.c.l.b16 %v569
  %v666 = vunpack.c.l.b16 %v570
  %v667 = vunpack.c.l.b16 %v571
  %v668 = vunpack.c.l.b16 %v572
  %v669 = vunpack.c.l.b16 %v573
  %v670 = vunpack.c.l.b16 %v574
  %v671 = vunpack.c.l.b16 %v575
  %v672 = vunpack.c.l.b16 %v576
  %v673 = vunpack.c.l.b16 %v577
  %v674 = vunpack.c.l.b16 %v578
  %v675 = vunpack.c.l.b16 %v579
  %v676 = vunpack.c.l.b16 %v580
  %v677 = vunpack.c.l.b16 %v581
  %v678 = vunpack.c.l.b16 %v582
  %v679 = vunpack.c.l.b16 %v583
  %v680 = vunpack.c.l.b16 %v584
  %v681 = vunpack.c.l.b16 %v585
  %v682 = vunpack.c.l.b16 %v586
  %v683 = vunpack.c.l.b16 %v587
  %v684 = vunpack.c.l.b16 %v588
  %v685 = vunpack.c.l.b16 %v589
  %v686 = vunpack.c.l.b16 %v590
  %v687 = vunpack.c.l.b16 %v591
  %v688 = vunpack.c.l.b16 %v592
  %v689 = vunpack.c.l.b16 %v593
  %v690 = vpack.c.b16 %v643, %v642
  %v691 = vpack.c.b16 %v645, %v644
  %v692 = vpack.c.b16 %v647, %v646
  %v693 = vpack.c.b16 %v649, %v648
  %v694 = vpack.c.b16 %v651, %v650
  %v695 = vpack.c.b16 %v653, %v652
  %v696 = vpack.c.b16 %v655, %v654
  %v697 = vpack.c.b16 %v657, %v656
  %v698 = vpack.c.b16 %v659, %v658
  %v699 = vpack.c.b16 %v661, %v660
  %v700 = vpack.c.b16 %v663, %v662
  %v701 = vpack.c.b16 %v665, %v664
  %v702 = vpack.c.b16 %v667, %v666
  %v703 = vpack.c.b16 %v669, %v668
  %v704 = vpack.c.b16 %v671, %v670
  %v705 = vpack.c.b16 %v673, %v672
  %v706 = vpack.c.b16 %v675, %v674
  %v707 = vpack.c.b16 %v677, %v676
  %v708 = vpack.c.b16 %v679, %v678
  %v709 = vpack.c.b16 %v681, %v680
  %v710 = vpack.c.b16 %v683, %v682
  %v711 = vpack.c.b16 %v685, %v684
  %v712 = vpack.c.b16 %v687, %v686
  %v713 = vpack.c.b16 %v689, %v688
  %738 = vmatpush.bf16.msra.mxu0 %v697
  %739 = vmatpush.bf16.msra.mxu0 %v696
  %740 = vmatpush.bf16.msra.mxu0 %v695
  %741 = vmatpush.bf16.msra.mxu0 %v694
  %742 = vmatpush.bf16.msra.mxu0 %v693
  %743 = vmatpush.bf16.msra.mxu0 %v692
  %744 = vmatpush.bf16.msra.mxu0 %v691
  %745 = vmatpush.bf16.msra.mxu0 %v690
  %746 = vmatmul.bf16.gmra.mxu0 %v517
  %v747 = vpop.f32.mrf.mxu0
  %v748 = vadd.f32 0.0, %v747
  %v749 = vpop.f32.mrf.mxu0
  %v750 = vadd.f32 0.0, %v749
  %751 = vmatmul.bf16.gmra.mxu0 %v518
  %v752 = vpop.f32.mrf.mxu0
  %v753 = vadd.f32 0.0, %v752
  %v754 = vpop.f32.mrf.mxu0
  %v755 = vadd.f32 0.0, %v754
  %756 = vmatmul.bf16.gmra.mxu0 %v519
  %v757 = vpop.f32.mrf.mxu0
  %v758 = vadd.f32 0.0, %v757
  %v759 = vpop.f32.mrf.mxu0
  %v760 = vadd.f32 0.0, %v759
  %761 = vmatmul.bf16.gmra.mxu0 %v520
  %v762 = vpop.f32.mrf.mxu0
  %v763 = vadd.f32 0.0, %v762
  %v764 = vpop.f32.mrf.mxu0
  %v765 = vadd.f32 0.0, %v764
  %766 = vmatmul.bf16.gmra.mxu0 %v521
  %v767 = vpop.f32.mrf.mxu0
  %v768 = vadd.f32 0.0, %v767
  %v769 = vpop.f32.mrf.mxu0
  %v770 = vadd.f32 0.0, %v769
  %771 = vmatmul.bf16.gmra.mxu0 %v522
  %v772 = vpop.f32.mrf.mxu0
  %v773 = vadd.f32 0.0, %v772
  %v774 = vpop.f32.mrf.mxu0
  %v775 = vadd.f32 0.0, %v774
  %776 = vmatmul.bf16.gmra.mxu0 %v523
  %v777 = vpop.f32.mrf.mxu0
  %v778 = vadd.f32 0.0, %v777
  %v779 = vpop.f32.mrf.mxu0
  %v780 = vadd.f32 0.0, %v779
  %781 = vmatmul.bf16.gmra.mxu0 %v524
  %v782 = vpop.f32.mrf.mxu0
  %v783 = vadd.f32 0.0, %v782
  %v784 = vpop.f32.mrf.mxu0
  %v785 = vadd.f32 0.0, %v784
  %786 = vmatmul.bf16.gmra.mxu0 %v525
  %v787 = vpop.f32.mrf.mxu0
  %v788 = vadd.f32 0.0, %v787
  %v789 = vpop.f32.mrf.mxu0
  %v790 = vadd.f32 0.0, %v789
  %791 = vmatmul.bf16.gmra.mxu0 %v526
  %v792 = vpop.f32.mrf.mxu0
  %v793 = vadd.f32 0.0, %v792
  %v794 = vpop.f32.mrf.mxu0
  %v795 = vadd.f32 0.0, %v794
  %796 = vmatmul.bf16.gmra.mxu0 %v527
  %v797 = vpop.f32.mrf.mxu0
  %v798 = vadd.f32 0.0, %v797
  %v799 = vpop.f32.mrf.mxu0
  %v800 = vadd.f32 0.0, %v799
  %801 = vmatmul.bf16.gmra.mxu0 %v528
  %v802 = vpop.f32.mrf.mxu0
  %v803 = vadd.f32 0.0, %v802
  %v804 = vpop.f32.mrf.mxu0
  %v805 = vadd.f32 0.0, %v804
  %806 = vmatmul.bf16.gmra.mxu0 %v531
  %v807 = vpop.f32.mrf.mxu0
  %v808 = vadd.f32 0.0, %v807
  %v809 = vpop.f32.mrf.mxu0
  %v810 = vadd.f32 0.0, %v809
  %811 = vmatmul.bf16.gmra.mxu0 %v532
  %v812 = vpop.f32.mrf.mxu0
  %v813 = vadd.f32 0.0, %v812
  %v814 = vpop.f32.mrf.mxu0
  %v815 = vadd.f32 0.0, %v814
  %816 = vmatmul.bf16.gmra.mxu0 %v533
  %v817 = vpop.f32.mrf.mxu0
  %v818 = vadd.f32 0.0, %v817
  %v819 = vpop.f32.mrf.mxu0
  %v820 = vadd.f32 0.0, %v819
  %821 = vmatmul.bf16.gmra.mxu0 %v534
  %v822 = vpop.f32.mrf.mxu0
  %v823 = vadd.f32 0.0, %v822
  %v824 = vpop.f32.mrf.mxu0
  %v825 = vadd.f32 0.0, %v824
  %826 = vmatmul.bf16.gmra.mxu0 %v535
  %v827 = vpop.f32.mrf.mxu0
  %v828 = vadd.f32 0.0, %v827
  %v829 = vpop.f32.mrf.mxu0
  %v830 = vadd.f32 0.0, %v829
  %831 = vmatmul.bf16.gmra.mxu0 %v536
  %v832 = vpop.f32.mrf.mxu0
  %v833 = vadd.f32 0.0, %v832
  %v834 = vpop.f32.mrf.mxu0
  %v835 = vadd.f32 0.0, %v834
  %836 = vmatmul.bf16.gmra.mxu0 %v537
  %v837 = vpop.f32.mrf.mxu0
  %v838 = vadd.f32 0.0, %v837
  %v839 = vpop.f32.mrf.mxu0
  %v840 = vadd.f32 0.0, %v839
  %841 = vmatmul.bf16.gmra.mxu0 %v538
  %v842 = vpop.f32.mrf.mxu0
  %v843 = vadd.f32 0.0, %v842
  %v844 = vpop.f32.mrf.mxu0
  %v845 = vadd.f32 0.0, %v844
  %846 = vmatmul.bf16.gmra.mxu0 %v539
  %v847 = vpop.f32.mrf.mxu0
  %v848 = vadd.f32 0.0, %v847
  %v849 = vpop.f32.mrf.mxu0
  %v850 = vadd.f32 0.0, %v849
  %851 = vmatmul.bf16.gmra.mxu0 %v540
  %v852 = vpop.f32.mrf.mxu0
  %v853 = vadd.f32 0.0, %v852
  %v854 = vpop.f32.mrf.mxu0
  %v855 = vadd.f32 0.0, %v854
  %856 = vmatmul.bf16.gmra.mxu0 %v541
  %v857 = vpop.f32.mrf.mxu0
  %v858 = vadd.f32 0.0, %v857
  %v859 = vpop.f32.mrf.mxu0
  %v860 = vadd.f32 0.0, %v859
  %861 = vmatmul.bf16.gmra.mxu0 %v542
  %v862 = vpop.f32.mrf.mxu0
  %v863 = vadd.f32 0.0, %v862
  %v864 = vpop.f32.mrf.mxu0
  %v865 = vadd.f32 0.0, %v864
  %866 = vdwg.mxu0
  %867 = vmatpush.bf16.msra.mxu0 %v705
  %868 = vmatpush.bf16.msra.mxu0 %v704
  %869 = vmatpush.bf16.msra.mxu0 %v703
  %870 = vmatpush.bf16.msra.mxu0 %v702
  %871 = vmatpush.bf16.msra.mxu0 %v701
  %872 = vmatpush.bf16.msra.mxu0 %v700
  %873 = vmatpush.bf16.msra.mxu0 %v699
  %874 = vmatpush.bf16.msra.mxu0 %v698
  %875 = vmatmul.bf16.gmra.mxu0 %v518
  %v876 = vpop.f32.mrf.mxu0
  %v877 = vadd.f32 %v748, %v876
  %v878 = vpop.f32.mrf.mxu0
  %v879 = vadd.f32 %v750, %v878
  %880 = vmatmul.bf16.gmra.mxu0 %v519
  %v881 = vpop.f32.mrf.mxu0
  %v882 = vadd.f32 %v753, %v881
  %v883 = vpop.f32.mrf.mxu0
  %v884 = vadd.f32 %v755, %v883
  %885 = vmatmul.bf16.gmra.mxu0 %v520
  %v886 = vpop.f32.mrf.mxu0
  %v887 = vadd.f32 %v758, %v886
  %v888 = vpop.f32.mrf.mxu0
  %v889 = vadd.f32 %v760, %v888
  %890 = vmatmul.bf16.gmra.mxu0 %v521
  %v891 = vpop.f32.mrf.mxu0
  %v892 = vadd.f32 %v763, %v891
  %v893 = vpop.f32.mrf.mxu0
  %v894 = vadd.f32 %v765, %v893
  %895 = vmatmul.bf16.gmra.mxu0 %v522
  %v896 = vpop.f32.mrf.mxu0
  %v897 = vadd.f32 %v768, %v896
  %v898 = vpop.f32.mrf.mxu0
  %v899 = vadd.f32 %v770, %v898
  %900 = vmatmul.bf16.gmra.mxu0 %v523
  %v901 = vpop.f32.mrf.mxu0
  %v902 = vadd.f32 %v773, %v901
  %v903 = vpop.f32.mrf.mxu0
  %v904 = vadd.f32 %v775, %v903
  %905 = vmatmul.bf16.gmra.mxu0 %v524
  %v906 = vpop.f32.mrf.mxu0
  %v907 = vadd.f32 %v778, %v906
  %v908 = vpop.f32.mrf.mxu0
  %v909 = vadd.f32 %v780, %v908
  %910 = vmatmul.bf16.gmra.mxu0 %v525
  %v911 = vpop.f32.mrf.mxu0
  %v912 = vadd.f32 %v783, %v911
  %v913 = vpop.f32.mrf.mxu0
  %v914 = vadd.f32 %v785, %v913
  %915 = vmatmul.bf16.gmra.mxu0 %v526
  %v916 = vpop.f32.mrf.mxu0
  %v917 = vadd.f32 %v788, %v916
  %v918 = vpop.f32.mrf.mxu0
  %v919 = vadd.f32 %v790, %v918
  %920 = vmatmul.bf16.gmra.mxu0 %v527
  %v921 = vpop.f32.mrf.mxu0
  %v922 = vadd.f32 %v793, %v921
  %v923 = vpop.f32.mrf.mxu0
  %v924 = vadd.f32 %v795, %v923
  %925 = vmatmul.bf16.gmra.mxu0 %v528
  %v926 = vpop.f32.mrf.mxu0
  %v927 = vadd.f32 %v798, %v926
  %v928 = vpop.f32.mrf.mxu0
  %v929 = vadd.f32 %v800, %v928
  %930 = vmatmul.bf16.gmra.mxu0 %v529
  %v931 = vpop.f32.mrf.mxu0
  %v932 = vadd.f32 %v803, %v931
  %v933 = vpop.f32.mrf.mxu0
  %v934 = vadd.f32 %v805, %v933
  %935 = vmatmul.bf16.gmra.mxu0 %v532
  %v936 = vpop.f32.mrf.mxu0
  %v937 = vadd.f32 %v808, %v936
  %v938 = vpop.f32.mrf.mxu0
  %v939 = vadd.f32 %v810, %v938
  %940 = vmatmul.bf16.gmra.mxu0 %v533
  %v941 = vpop.f32.mrf.mxu0
  %v942 = vadd.f32 %v813, %v941
  %v943 = vpop.f32.mrf.mxu0
  %v944 = vadd.f32 %v815, %v943
  %945 = vmatmul.bf16.gmra.mxu0 %v534
  %v946 = vpop.f32.mrf.mxu0
  %v947 = vadd.f32 %v818, %v946
  %v948 = vpop.f32.mrf.mxu0
  %v949 = vadd.f32 %v820, %v948
  %950 = vmatmul.bf16.gmra.mxu0 %v535
  %v951 = vpop.f32.mrf.mxu0
  %v952 = vadd.f32 %v823, %v951
  %v953 = vpop.f32.mrf.mxu0
  %v954 = vadd.f32 %v825, %v953
  %955 = vmatmul.bf16.gmra.mxu0 %v536
  %v956 = vpop.f32.mrf.mxu0
  %v957 = vadd.f32 %v828, %v956
  %v958 = vpop.f32.mrf.mxu0
  %v959 = vadd.f32 %v830, %v958
  %960 = vmatmul.bf16.gmra.mxu0 %v537
  %v961 = vpop.f32.mrf.mxu0
  %v962 = vadd.f32 %v833, %v961
  %v963 = vpop.f32.mrf.mxu0
  %v964 = vadd.f32 %v835, %v963
  %965 = vmatmul.bf16.gmra.mxu0 %v538
  %v966 = vpop.f32.mrf.mxu0
  %v967 = vadd.f32 %v838, %v966
  %v968 = vpop.f32.mrf.mxu0
  %v969 = vadd.f32 %v840, %v968
  %970 = vmatmul.bf16.gmra.mxu0 %v539
  %v971 = vpop.f32.mrf.mxu0
  %v972 = vadd.f32 %v843, %v971
  %v973 = vpop.f32.mrf.mxu0
  %v974 = vadd.f32 %v845, %v973
  %975 = vmatmul.bf16.gmra.mxu0 %v540
  %v976 = vpop.f32.mrf.mxu0
  %v977 = vadd.f32 %v848, %v976
  %v978 = vpop.f32.mrf.mxu0
  %v979 = vadd.f32 %v850, %v978
  %980 = vmatmul.bf16.gmra.mxu0 %v541
  %v981 = vpop.f32.mrf.mxu0
  %v982 = vadd.f32 %v853, %v981
  %v983 = vpop.f32.mrf.mxu0
  %v984 = vadd.f32 %v855, %v983
  %985 = vmatmul.bf16.gmra.mxu0 %v542
  %v986 = vpop.f32.mrf.mxu0
  %v987 = vadd.f32 %v858, %v986
  %v988 = vpop.f32.mrf.mxu0
  %v989 = vadd.f32 %v860, %v988
  %990 = vmatmul.bf16.gmra.mxu0 %v543
  %v991 = vpop.f32.mrf.mxu0
  %v992 = vadd.f32 %v863, %v991
  %v993 = vpop.f32.mrf.mxu0
  %v994 = vadd.f32 %v865, %v993
  %995 = vdwg.mxu0
  %996 = vmatpush.bf16.msra.mxu0 %v713
  %997 = vmatpush.bf16.msra.mxu0 %v712
  %998 = vmatpush.bf16.msra.mxu0 %v711
  %999 = vmatpush.bf16.msra.mxu0 %v710
  %1000 = vmatpush.bf16.msra.mxu0 %v709
  %1001 = vmatpush.bf16.msra.mxu0 %v708
  %1002 = vmatpush.bf16.msra.mxu0 %v707
  %1003 = vmatpush.bf16.msra.mxu0 %v706
  %1004 = vmatmul.bf16.gmra.mxu0 %v519
  %v1005 = vpop.f32.mrf.mxu0
  %v1006 = vadd.f32 %v877, %v1005
  %v1007 = vpop.f32.mrf.mxu0
  %v1008 = vadd.f32 %v879, %v1007
  %1009 = vmatmul.bf16.gmra.mxu0 %v520
  %v1010 = vpop.f32.mrf.mxu0
  %v1011 = vadd.f32 %v882, %v1010
  %v1012 = vpop.f32.mrf.mxu0
  %v1013 = vadd.f32 %v884, %v1012
  %1014 = vmatmul.bf16.gmra.mxu0 %v521
  %v1015 = vpop.f32.mrf.mxu0
  %v1016 = vadd.f32 %v887, %v1015
  %v1017 = vpop.f32.mrf.mxu0
  %v1018 = vadd.f32 %v889, %v1017
  %1019 = vmatmul.bf16.gmra.mxu0 %v522
  %v1020 = vpop.f32.mrf.mxu0
  %v1021 = vadd.f32 %v892, %v1020
  %v1022 = vpop.f32.mrf.mxu0
  %v1023 = vadd.f32 %v894, %v1022
  %1024 = vmatmul.bf16.gmra.mxu0 %v523
  %v1025 = vpop.f32.mrf.mxu0
  %v1026 = vadd.f32 %v897, %v1025
  %v1027 = vpop.f32.mrf.mxu0
  %v1028 = vadd.f32 %v899, %v1027
  %1029 = vmatmul.bf16.gmra.mxu0 %v524
  %v1030 = vpop.f32.mrf.mxu0
  %v1031 = vadd.f32 %v902, %v1030
  %v1032 = vpop.f32.mrf.mxu0
  %v1033 = vadd.f32 %v904, %v1032
  %1034 = vmatmul.bf16.gmra.mxu0 %v525
  %v1035 = vpop.f32.mrf.mxu0
  %v1036 = vadd.f32 %v907, %v1035
  %v1037 = vpop.f32.mrf.mxu0
  %v1038 = vadd.f32 %v909, %v1037
  %1039 = vmatmul.bf16.gmra.mxu0 %v526
  %v1040 = vpop.f32.mrf.mxu0
  %v1041 = vadd.f32 %v912, %v1040
  %v1042 = vpop.f32.mrf.mxu0
  %v1043 = vadd.f32 %v914, %v1042
  %1044 = vmatmul.bf16.gmra.mxu0 %v527
  %v1045 = vpop.f32.mrf.mxu0
  %v1046 = vadd.f32 %v917, %v1045
  %v1047 = vpop.f32.mrf.mxu0
  %v1048 = vadd.f32 %v919, %v1047
  %1049 = vmatmul.bf16.gmra.mxu0 %v528
  %v1050 = vpop.f32.mrf.mxu0
  %v1051 = vadd.f32 %v922, %v1050
  %v1052 = vpop.f32.mrf.mxu0
  %v1053 = vadd.f32 %v924, %v1052
  %1054 = vmatmul.bf16.gmra.mxu0 %v529
  %v1055 = vpop.f32.mrf.mxu0
  %v1056 = vadd.f32 %v927, %v1055
  %v1057 = vpop.f32.mrf.mxu0
  %v1058 = vadd.f32 %v929, %v1057
  %1059 = vmatmul.bf16.gmra.mxu0 %v530
  %v1060 = vpop.f32.mrf.mxu0
  %v1061 = vadd.f32 %v932, %v1060
  %v1062 = vpop.f32.mrf.mxu0
  %v1063 = vadd.f32 %v934, %v1062
  %1064 = vmatmul.bf16.gmra.mxu0 %v533
  %v1065 = vpop.f32.mrf.mxu0
  %v1066 = vadd.f32 %v937, %v1065
  %v1067 = vpop.f32.mrf.mxu0
  %v1068 = vadd.f32 %v939, %v1067
  %1069 = vmatmul.bf16.gmra.mxu0 %v534
  %v1070 = vpop.f32.mrf.mxu0
  %v1071 = vadd.f32 %v942, %v1070
  %v1072 = vpop.f32.mrf.mxu0
  %v1073 = vadd.f32 %v944, %v1072
  %1074 = vmatmul.bf16.gmra.mxu0 %v535
  %v1075 = vpop.f32.mrf.mxu0
  %v1076 = vadd.f32 %v947, %v1075
  %v1077 = vpop.f32.mrf.mxu0
  %v1078 = vadd.f32 %v949, %v1077
  %1079 = vmatmul.bf16.gmra.mxu0 %v536
  %v1080 = vpop.f32.mrf.mxu0
  %v1081 = vadd.f32 %v952, %v1080
  %v1082 = vpop.f32.mrf.mxu0
  %v1083 = vadd.f32 %v954, %v1082
  %1084 = vmatmul.bf16.gmra.mxu0 %v537
  %v1085 = vpop.f32.mrf.mxu0
  %v1086 = vadd.f32 %v957, %v1085
  %v1087 = vpop.f32.mrf.mxu0
  %v1088 = vadd.f32 %v959, %v1087
  %1089 = vmatmul.bf16.gmra.mxu0 %v538
  %v1090 = vpop.f32.mrf.mxu0
  %v1091 = vadd.f32 %v962, %v1090
  %v1092 = vpop.f32.mrf.mxu0
  %v1093 = vadd.f32 %v964, %v1092
  %1094 = vmatmul.bf16.gmra.mxu0 %v539
  %v1095 = vpop.f32.mrf.mxu0
  %v1096 = vadd.f32 %v967, %v1095
  %v1097 = vpop.f32.mrf.mxu0
  %v1098 = vadd.f32 %v969, %v1097
  %1099 = vmatmul.bf16.gmra.mxu0 %v540
  %v1100 = vpop.f32.mrf.mxu0
  %v1101 = vadd.f32 %v972, %v1100
  %v1102 = vpop.f32.mrf.mxu0
  %v1103 = vadd.f32 %v974, %v1102
  %1104 = vmatmul.bf16.gmra.mxu0 %v541
  %v1105 = vpop.f32.mrf.mxu0
  %v1106 = vadd.f32 %v977, %v1105
  %v1107 = vpop.f32.mrf.mxu0
  %v1108 = vadd.f32 %v979, %v1107
  %1109 = vmatmul.bf16.gmra.mxu0 %v542
  %v1110 = vpop.f32.mrf.mxu0
  %v1111 = vadd.f32 %v982, %v1110
  %v1112 = vpop.f32.mrf.mxu0
  %v1113 = vadd.f32 %v984, %v1112
  %1114 = vmatmul.bf16.gmra.mxu0 %v543
  %v1115 = vpop.f32.mrf.mxu0
  %v1116 = vadd.f32 %v987, %v1115
  %v1117 = vpop.f32.mrf.mxu0
  %v1118 = vadd.f32 %v989, %v1117
  %1119 = vmatmul.bf16.gmra.mxu0 %v544
  %v1120 = vpop.f32.mrf.mxu0
  %v1121 = vadd.f32 %v992, %v1120
  %v1122 = vpop.f32.mrf.mxu0
  %v1123 = vadd.f32 %v994, %v1122
  %1124 = vdwg.mxu0
  %v1173 = vunpack.c.l.b16 %v242
  %v1174 = vunpack.c.l.b16 %v243
  %v1175 = vunpack.c.l.b16 %v244
  %v1176 = vunpack.c.l.b16 %v245
  %v1177 = vunpack.c.l.b16 %v246
  %v1178 = vunpack.c.l.b16 %v247
  %v1179 = vunpack.c.l.b16 %v248
  %v1180 = vunpack.c.l.b16 %v249
  %v1181 = vunpack.c.l.b16 %v250
  %v1182 = vunpack.c.l.b16 %v251
  %v1183 = vunpack.c.l.b16 %v252
  %v1184 = vunpack.c.l.b16 %v253
  %v1185 = vunpack.c.l.b16 %v254
  %v1186 = vunpack.c.l.b16 %v255
  %v1187 = vunpack.c.l.b16 %v256
  %v1188 = vunpack.c.l.b16 %v257
  %v1189 = vunpack.c.l.b16 %v258
  %v1190 = vunpack.c.l.b16 %v259
  %v1191 = vunpack.c.l.b16 %v260
  %v1192 = vunpack.c.l.b16 %v261
  %v1193 = vunpack.c.l.b16 %v262
  %v1194 = vunpack.c.l.b16 %v263
  %v1195 = vunpack.c.l.b16 %v264
  %v1196 = vunpack.c.l.b16 %v265
  %v1197 = vunpack.c.l.b16 %v266
  %v1198 = vunpack.c.l.b16 %v267
  %v1199 = vunpack.c.l.b16 %v268
  %v1200 = vunpack.c.l.b16 %v269
  %v1201 = vunpack.c.l.b16 %v270
  %v1202 = vunpack.c.l.b16 %v271
  %v1203 = vunpack.c.l.b16 %v272
  %v1204 = vunpack.c.l.b16 %v273
  %v1205 = vunpack.c.l.b16 %v274
  %v1206 = vunpack.c.l.b16 %v275
  %v1207 = vunpack.c.l.b16 %v276
  %v1208 = vunpack.c.l.b16 %v277
  %v1209 = vunpack.c.l.b16 %v278
  %v1210 = vunpack.c.l.b16 %v279
  %v1211 = vunpack.c.l.b16 %v280
  %v1212 = vunpack.c.l.b16 %v281
  %v1213 = vunpack.c.l.b16 %v282
  %v1214 = vunpack.c.l.b16 %v283
  %v1215 = vunpack.c.l.b16 %v284
  %v1216 = vunpack.c.l.b16 %v285
  %v1217 = vunpack.c.l.b16 %v286
  %v1218 = vunpack.c.l.b16 %v287
  %v1219 = vunpack.c.l.b16 %v288
  %v1220 = vunpack.c.l.b16 %v289
  %v1221 = vpack.c.b16 %v1174, %v1173
  %v1222 = vpack.c.b16 %v1176, %v1175
  %v1223 = vpack.c.b16 %v1178, %v1177
  %v1224 = vpack.c.b16 %v1180, %v1179
  %v1225 = vpack.c.b16 %v1182, %v1181
  %v1226 = vpack.c.b16 %v1184, %v1183
  %v1227 = vpack.c.b16 %v1186, %v1185
  %v1228 = vpack.c.b16 %v1188, %v1187
  %v1229 = vpack.c.b16 %v1190, %v1189
  %v1230 = vpack.c.b16 %v1192, %v1191
  %v1231 = vpack.c.b16 %v1194, %v1193
  %v1232 = vpack.c.b16 %v1196, %v1195
  %v1233 = vpack.c.b16 %v1198, %v1197
  %v1234 = vpack.c.b16 %v1200, %v1199
  %v1235 = vpack.c.b16 %v1202, %v1201
  %v1236 = vpack.c.b16 %v1204, %v1203
  %v1237 = vpack.c.b16 %v1206, %v1205
  %v1238 = vpack.c.b16 %v1208, %v1207
  %v1239 = vpack.c.b16 %v1210, %v1209
  %v1240 = vpack.c.b16 %v1212, %v1211
  %v1241 = vpack.c.b16 %v1214, %v1213
  %v1242 = vpack.c.b16 %v1216, %v1215
  %v1243 = vpack.c.b16 %v1218, %v1217
  %v1244 = vpack.c.b16 %v1220, %v1219
  %1269 = vmatpush.bf16.msra.mxu0 %v1228
  %1270 = vmatpush.bf16.msra.mxu0 %v1227
  %1271 = vmatpush.bf16.msra.mxu0 %v1226
  %1272 = vmatpush.bf16.msra.mxu0 %v1225
  %1273 = vmatpush.bf16.msra.mxu0 %v1224
  %1274 = vmatpush.bf16.msra.mxu0 %v1223
  %1275 = vmatpush.bf16.msra.mxu0 %v1222
  %1276 = vmatpush.bf16.msra.mxu0 %v1221
  %1277 = vmatmul.bf16.gmra.mxu0 %v170
  %v1278 = vpop.f32.mrf.mxu0
  %v1279 = vadd.f32 %v1006, %v1278
  %v1280 = vpop.f32.mrf.mxu0
  %v1281 = vadd.f32 %v1008, %v1280
  %1282 = vmatmul.bf16.gmra.mxu0 %v171
  %v1283 = vpop.f32.mrf.mxu0
  %v1284 = vadd.f32 %v1011, %v1283
  %v1285 = vpop.f32.mrf.mxu0
  %v1286 = vadd.f32 %v1013, %v1285
  %1287 = vmatmul.bf16.gmra.mxu0 %v172
  %v1288 = vpop.f32.mrf.mxu0
  %v1289 = vadd.f32 %v1016, %v1288
  %v1290 = vpop.f32.mrf.mxu0
  %v1291 = vadd.f32 %v1018, %v1290
  %1292 = vmatmul.bf16.gmra.mxu0 %v173
  %v1293 = vpop.f32.mrf.mxu0
  %v1294 = vadd.f32 %v1021, %v1293
  %v1295 = vpop.f32.mrf.mxu0
  %v1296 = vadd.f32 %v1023, %v1295
  %1297 = vmatmul.bf16.gmra.mxu0 %v174
  %v1298 = vpop.f32.mrf.mxu0
  %v1299 = vadd.f32 %v1026, %v1298
  %v1300 = vpop.f32.mrf.mxu0
  %v1301 = vadd.f32 %v1028, %v1300
  %1302 = vmatmul.bf16.gmra.mxu0 %v175
  %v1303 = vpop.f32.mrf.mxu0
  %v1304 = vadd.f32 %v1031, %v1303
  %v1305 = vpop.f32.mrf.mxu0
  %v1306 = vadd.f32 %v1033, %v1305
  %1307 = vmatmul.bf16.gmra.mxu0 %v176
  %v1308 = vpop.f32.mrf.mxu0
  %v1309 = vadd.f32 %v1036, %v1308
  %v1310 = vpop.f32.mrf.mxu0
  %v1311 = vadd.f32 %v1038, %v1310
  %1312 = vmatmul.bf16.gmra.mxu0 %v177
  %v1313 = vpop.f32.mrf.mxu0
  %v1314 = vadd.f32 %v1041, %v1313
  %v1315 = vpop.f32.mrf.mxu0
  %v1316 = vadd.f32 %v1043, %v1315
  %1317 = vmatmul.bf16.gmra.mxu0 %v178
  %v1318 = vpop.f32.mrf.mxu0
  %v1319 = vadd.f32 %v1046, %v1318
  %v1320 = vpop.f32.mrf.mxu0
  %v1321 = vadd.f32 %v1048, %v1320
  %1322 = vmatmul.bf16.gmra.mxu0 %v179
  %v1323 = vpop.f32.mrf.mxu0
  %v1324 = vadd.f32 %v1051, %v1323
  %v1325 = vpop.f32.mrf.mxu0
  %v1326 = vadd.f32 %v1053, %v1325
  %1327 = vmatmul.bf16.gmra.mxu0 %v180
  %v1328 = vpop.f32.mrf.mxu0
  %v1329 = vadd.f32 %v1056, %v1328
  %v1330 = vpop.f32.mrf.mxu0
  %v1331 = vadd.f32 %v1058, %v1330
  %1332 = vmatmul.bf16.gmra.mxu0 %v181
  %v1333 = vpop.f32.mrf.mxu0
  %v1334 = vadd.f32 %v1061, %v1333
  %v1335 = vpop.f32.mrf.mxu0
  %v1336 = vadd.f32 %v1063, %v1335
  %1337 = vmatmul.bf16.gmra.mxu0 %v182
  %v1338 = vpop.f32.mrf.mxu0
  %v1339 = vadd.f32 %v1066, %v1338
  %v1340 = vpop.f32.mrf.mxu0
  %v1341 = vadd.f32 %v1068, %v1340
  %1342 = vmatmul.bf16.gmra.mxu0 %v183
  %v1343 = vpop.f32.mrf.mxu0
  %v1344 = vadd.f32 %v1071, %v1343
  %v1345 = vpop.f32.mrf.mxu0
  %v1346 = vadd.f32 %v1073, %v1345
  %1347 = vmatmul.bf16.gmra.mxu0 %v184
  %v1348 = vpop.f32.mrf.mxu0
  %v1349 = vadd.f32 %v1076, %v1348
  %v1350 = vpop.f32.mrf.mxu0
  %v1351 = vadd.f32 %v1078, %v1350
  %1352 = vmatmul.bf16.gmra.mxu0 %v185
  %v1353 = vpop.f32.mrf.mxu0
  %v1354 = vadd.f32 %v1081, %v1353
  %v1355 = vpop.f32.mrf.mxu0
  %v1356 = vadd.f32 %v1083, %v1355
  %1357 = vmatmul.bf16.gmra.mxu0 %v186
  %v1358 = vpop.f32.mrf.mxu0
  %v1359 = vadd.f32 %v1086, %v1358
  %v1360 = vpop.f32.mrf.mxu0
  %v1361 = vadd.f32 %v1088, %v1360
  %1362 = vmatmul.bf16.gmra.mxu0 %v187
  %v1363 = vpop.f32.mrf.mxu0
  %v1364 = vadd.f32 %v1091, %v1363
  %v1365 = vpop.f32.mrf.mxu0
  %v1366 = vadd.f32 %v1093, %v1365
  %1367 = vmatmul.bf16.gmra.mxu0 %v188
  %v1368 = vpop.f32.mrf.mxu0
  %v1369 = vadd.f32 %v1096, %v1368
  %v1370 = vpop.f32.mrf.mxu0
  %v1371 = vadd.f32 %v1098, %v1370
  %1372 = vmatmul.bf16.gmra.mxu0 %v189
  %v1373 = vpop.f32.mrf.mxu0
  %v1374 = vadd.f32 %v1101, %v1373
  %v1375 = vpop.f32.mrf.mxu0
  %v1376 = vadd.f32 %v1103, %v1375
  %1377 = vmatmul.bf16.gmra.mxu0 %v190
  %v1378 = vpop.f32.mrf.mxu0
  %v1379 = vadd.f32 %v1106, %v1378
  %v1380 = vpop.f32.mrf.mxu0
  %v1381 = vadd.f32 %v1108, %v1380
  %1382 = vmatmul.bf16.gmra.mxu0 %v191
  %v1383 = vpop.f32.mrf.mxu0
  %v1384 = vadd.f32 %v1111, %v1383
  %v1385 = vpop.f32.mrf.mxu0
  %v1386 = vadd.f32 %v1113, %v1385
  %1387 = vmatmul.bf16.gmra.mxu0 %v192
  %v1388 = vpop.f32.mrf.mxu0
  %v1389 = vadd.f32 %v1116, %v1388
  %v1390 = vpop.f32.mrf.mxu0
  %v1391 = vadd.f32 %v1118, %v1390
  %1392 = vmatmul.bf16.gmra.mxu0 %v193
  %v1393 = vpop.f32.mrf.mxu0
  %v1394 = vadd.f32 %v1121, %v1393
  %v1395 = vpop.f32.mrf.mxu0
  %v1396 = vadd.f32 %v1123, %v1395
  %1397 = vdwg.mxu0
  %1398 = vmatpush.bf16.msra.mxu0 %v1236
  %1399 = vmatpush.bf16.msra.mxu0 %v1235
  %1400 = vmatpush.bf16.msra.mxu0 %v1234
  %1401 = vmatpush.bf16.msra.mxu0 %v1233
  %1402 = vmatpush.bf16.msra.mxu0 %v1232
  %1403 = vmatpush.bf16.msra.mxu0 %v1231
  %1404 = vmatpush.bf16.msra.mxu0 %v1230
  %1405 = vmatpush.bf16.msra.mxu0 %v1229
  %1406 = vmatmul.bf16.gmra.mxu0 %v171
  %v1407 = vpop.f32.mrf.mxu0
  %v1408 = vadd.f32 %v1279, %v1407
  %v1409 = vpop.f32.mrf.mxu0
  %v1410 = vadd.f32 %v1281, %v1409
  %1411 = vmatmul.bf16.gmra.mxu0 %v172
  %v1412 = vpop.f32.mrf.mxu0
  %v1413 = vadd.f32 %v1284, %v1412
  %v1414 = vpop.f32.mrf.mxu0
  %v1415 = vadd.f32 %v1286, %v1414
  %1416 = vmatmul.bf16.gmra.mxu0 %v173
  %v1417 = vpop.f32.mrf.mxu0
  %v1418 = vadd.f32 %v1289, %v1417
  %v1419 = vpop.f32.mrf.mxu0
  %v1420 = vadd.f32 %v1291, %v1419
  %1421 = vmatmul.bf16.gmra.mxu0 %v174
  %v1422 = vpop.f32.mrf.mxu0
  %v1423 = vadd.f32 %v1294, %v1422
  %v1424 = vpop.f32.mrf.mxu0
  %v1425 = vadd.f32 %v1296, %v1424
  %1426 = vmatmul.bf16.gmra.mxu0 %v175
  %v1427 = vpop.f32.mrf.mxu0
  %v1428 = vadd.f32 %v1299, %v1427
  %v1429 = vpop.f32.mrf.mxu0
  %v1430 = vadd.f32 %v1301, %v1429
  %1431 = vmatmul.bf16.gmra.mxu0 %v176
  %v1432 = vpop.f32.mrf.mxu0
  %v1433 = vadd.f32 %v1304, %v1432
  %v1434 = vpop.f32.mrf.mxu0
  %v1435 = vadd.f32 %v1306, %v1434
  %1436 = vmatmul.bf16.gmra.mxu0 %v177
  %v1437 = vpop.f32.mrf.mxu0
  %v1438 = vadd.f32 %v1309, %v1437
  %v1439 = vpop.f32.mrf.mxu0
  %v1440 = vadd.f32 %v1311, %v1439
  %1441 = vmatmul.bf16.gmra.mxu0 %v178
  %v1442 = vpop.f32.mrf.mxu0
  %v1443 = vadd.f32 %v1314, %v1442
  %v1444 = vpop.f32.mrf.mxu0
  %v1445 = vadd.f32 %v1316, %v1444
  %1446 = vmatmul.bf16.gmra.mxu0 %v179
  %v1447 = vpop.f32.mrf.mxu0
  %v1448 = vadd.f32 %v1319, %v1447
  %v1449 = vpop.f32.mrf.mxu0
  %v1450 = vadd.f32 %v1321, %v1449
  %1451 = vmatmul.bf16.gmra.mxu0 %v180
  %v1452 = vpop.f32.mrf.mxu0
  %v1453 = vadd.f32 %v1324, %v1452
  %v1454 = vpop.f32.mrf.mxu0
  %v1455 = vadd.f32 %v1326, %v1454
  %1456 = vmatmul.bf16.gmra.mxu0 %v181
  %v1457 = vpop.f32.mrf.mxu0
  %v1458 = vadd.f32 %v1329, %v1457
  %v1459 = vpop.f32.mrf.mxu0
  %v1460 = vadd.f32 %v1331, %v1459
  %1461 = vmatmul.bf16.gmra.mxu0 %v226
  %v1462 = vpop.f32.mrf.mxu0
  %v1463 = vadd.f32 %v1334, %v1462
  %v1464 = vpop.f32.mrf.mxu0
  %v1465 = vadd.f32 %v1336, %v1464
  %1466 = vmatmul.bf16.gmra.mxu0 %v183
  %v1467 = vpop.f32.mrf.mxu0
  %v1468 = vadd.f32 %v1339, %v1467
  %v1469 = vpop.f32.mrf.mxu0
  %v1470 = vadd.f32 %v1341, %v1469
  %1471 = vmatmul.bf16.gmra.mxu0 %v184
  %v1472 = vpop.f32.mrf.mxu0
  %v1473 = vadd.f32 %v1344, %v1472
  %v1474 = vpop.f32.mrf.mxu0
  %v1475 = vadd.f32 %v1346, %v1474
  %1476 = vmatmul.bf16.gmra.mxu0 %v185
  %v1477 = vpop.f32.mrf.mxu0
  %v1478 = vadd.f32 %v1349, %v1477
  %v1479 = vpop.f32.mrf.mxu0
  %v1480 = vadd.f32 %v1351, %v1479
  %1481 = vmatmul.bf16.gmra.mxu0 %v186
  %v1482 = vpop.f32.mrf.mxu0
  %v1483 = vadd.f32 %v1354, %v1482
  %v1484 = vpop.f32.mrf.mxu0
  %v1485 = vadd.f32 %v1356, %v1484
  %1486 = vmatmul.bf16.gmra.mxu0 %v187
  %v1487 = vpop.f32.mrf.mxu0
  %v1488 = vadd.f32 %v1359, %v1487
  %v1489 = vpop.f32.mrf.mxu0
  %v1490 = vadd.f32 %v1361, %v1489
  %1491 = vmatmul.bf16.gmra.mxu0 %v188
  %v1492 = vpop.f32.mrf.mxu0
  %v1493 = vadd.f32 %v1364, %v1492
  %v1494 = vpop.f32.mrf.mxu0
  %v1495 = vadd.f32 %v1366, %v1494
  %1496 = vmatmul.bf16.gmra.mxu0 %v189
  %v1497 = vpop.f32.mrf.mxu0
  %v1498 = vadd.f32 %v1369, %v1497
  %v1499 = vpop.f32.mrf.mxu0
  %v1500 = vadd.f32 %v1371, %v1499
  %1501 = vmatmul.bf16.gmra.mxu0 %v190
  %v1502 = vpop.f32.mrf.mxu0
  %v1503 = vadd.f32 %v1374, %v1502
  %v1504 = vpop.f32.mrf.mxu0
  %v1505 = vadd.f32 %v1376, %v1504
  %1506 = vmatmul.bf16.gmra.mxu0 %v191
  %v1507 = vpop.f32.mrf.mxu0
  %v1508 = vadd.f32 %v1379, %v1507
  %v1509 = vpop.f32.mrf.mxu0
  %v1510 = vadd.f32 %v1381, %v1509
  %1511 = vmatmul.bf16.gmra.mxu0 %v192
  %v1512 = vpop.f32.mrf.mxu0
  %v1513 = vadd.f32 %v1384, %v1512
  %v1514 = vpop.f32.mrf.mxu0
  %v1515 = vadd.f32 %v1386, %v1514
  %1516 = vmatmul.bf16.gmra.mxu0 %v193
  %v1517 = vpop.f32.mrf.mxu0
  %v1518 = vadd.f32 %v1389, %v1517
  %v1519 = vpop.f32.mrf.mxu0
  %v1520 = vadd.f32 %v1391, %v1519
  %1521 = vmatmul.bf16.gmra.mxu0 %v227
  %v1522 = vpop.f32.mrf.mxu0
  %v1523 = vadd.f32 %v1394, %v1522
  %v1524 = vpop.f32.mrf.mxu0
  %v1525 = vadd.f32 %v1396, %v1524
  %1526 = vdwg.mxu0
  %1527 = vmatpush.bf16.msra.mxu0 %v1244
  %1528 = vmatpush.bf16.msra.mxu0 %v1243
  %1529 = vmatpush.bf16.msra.mxu0 %v1242
  %1530 = vmatpush.bf16.msra.mxu0 %v1241
  %1531 = vmatpush.bf16.msra.mxu0 %v1240
  %1532 = vmatpush.bf16.msra.mxu0 %v1239
  %1533 = vmatpush.bf16.msra.mxu0 %v1238
  %1534 = vmatpush.bf16.msra.mxu0 %v1237
  %1535 = vmatmul.bf16.gmra.mxu0 %v172
  %v1536 = vpop.f32.mrf.mxu0
  %v1537 = vadd.f32 %v1408, %v1536
  %v1538 = vpop.f32.mrf.mxu0
  %v1539 = vadd.f32 %v1410, %v1538
  %1540 = vmatmul.bf16.gmra.mxu0 %v173
  %v1541 = vpop.f32.mrf.mxu0
  %v1542 = vadd.f32 %v1413, %v1541
  %v1543 = vpop.f32.mrf.mxu0
  %v1544 = vadd.f32 %v1415, %v1543
  %1545 = vmatmul.bf16.gmra.mxu0 %v174
  %v1546 = vpop.f32.mrf.mxu0
  %v1547 = vadd.f32 %v1418, %v1546
  %v1548 = vpop.f32.mrf.mxu0
  %v1549 = vadd.f32 %v1420, %v1548
  %1550 = vmatmul.bf16.gmra.mxu0 %v175
  %v1551 = vpop.f32.mrf.mxu0
  %v1552 = vadd.f32 %v1423, %v1551
  %v1553 = vpop.f32.mrf.mxu0
  %v1554 = vadd.f32 %v1425, %v1553
  %1555 = vmatmul.bf16.gmra.mxu0 %v176
  %v1556 = vpop.f32.mrf.mxu0
  %v1557 = vadd.f32 %v1428, %v1556
  %v1558 = vpop.f32.mrf.mxu0
  %v1559 = vadd.f32 %v1430, %v1558
  %1560 = vmatmul.bf16.gmra.mxu0 %v177
  %v1561 = vpop.f32.mrf.mxu0
  %v1562 = vadd.f32 %v1433, %v1561
  %v1563 = vpop.f32.mrf.mxu0
  %v1564 = vadd.f32 %v1435, %v1563
  %1565 = vmatmul.bf16.gmra.mxu0 %v178
  %v1566 = vpop.f32.mrf.mxu0
  %v1567 = vadd.f32 %v1438, %v1566
  %v1568 = vpop.f32.mrf.mxu0
  %v1569 = vadd.f32 %v1440, %v1568
  %1570 = vmatmul.bf16.gmra.mxu0 %v179
  %v1571 = vpop.f32.mrf.mxu0
  %v1572 = vadd.f32 %v1443, %v1571
  %v1573 = vpop.f32.mrf.mxu0
  %v1574 = vadd.f32 %v1445, %v1573
  %1575 = vmatmul.bf16.gmra.mxu0 %v180
  %v1576 = vpop.f32.mrf.mxu0
  %v1577 = vadd.f32 %v1448, %v1576
  %v1578 = vpop.f32.mrf.mxu0
  %v1579 = vadd.f32 %v1450, %v1578
  %1580 = vmatmul.bf16.gmra.mxu0 %v181
  %v1581 = vpop.f32.mrf.mxu0
  %v1582 = vadd.f32 %v1453, %v1581
  %v1583 = vpop.f32.mrf.mxu0
  %v1584 = vadd.f32 %v1455, %v1583
  %1585 = vmatmul.bf16.gmra.mxu0 %v226
  %v1586 = vpop.f32.mrf.mxu0
  %v1587 = vadd.f32 %v1458, %v1586
  %v1588 = vpop.f32.mrf.mxu0
  %v1589 = vadd.f32 %v1460, %v1588
  %1590 = vmatmul.bf16.gmra.mxu0 %v238
  %v1591 = vpop.f32.mrf.mxu0
  %v1592 = vadd.f32 %v1463, %v1591
  %v1593 = vpop.f32.mrf.mxu0
  %v1594 = vadd.f32 %v1465, %v1593
  %1595 = vmatmul.bf16.gmra.mxu0 %v184
  %v1596 = vpop.f32.mrf.mxu0
  %v1597 = vadd.f32 %v1468, %v1596
  %v1598 = vpop.f32.mrf.mxu0
  %v1599 = vadd.f32 %v1470, %v1598
  %1600 = vmatmul.bf16.gmra.mxu0 %v185
  %v1601 = vpop.f32.mrf.mxu0
  %v1602 = vadd.f32 %v1473, %v1601
  %v1603 = vpop.f32.mrf.mxu0
  %v1604 = vadd.f32 %v1475, %v1603
  %1605 = vmatmul.bf16.gmra.mxu0 %v186
  %v1606 = vpop.f32.mrf.mxu0
  %v1607 = vadd.f32 %v1478, %v1606
  %v1608 = vpop.f32.mrf.mxu0
  %v1609 = vadd.f32 %v1480, %v1608
  %1610 = vmatmul.bf16.gmra.mxu0 %v187
  %v1611 = vpop.f32.mrf.mxu0
  %v1612 = vadd.f32 %v1483, %v1611
  %v1613 = vpop.f32.mrf.mxu0
  %v1614 = vadd.f32 %v1485, %v1613
  %1615 = vmatmul.bf16.gmra.mxu0 %v188
  %v1616 = vpop.f32.mrf.mxu0
  %v1617 = vadd.f32 %v1488, %v1616
  %v1618 = vpop.f32.mrf.mxu0
  %v1619 = vadd.f32 %v1490, %v1618
  %1620 = vmatmul.bf16.gmra.mxu0 %v189
  %v1621 = vpop.f32.mrf.mxu0
  %v1622 = vadd.f32 %v1493, %v1621
  %v1623 = vpop.f32.mrf.mxu0
  %v1624 = vadd.f32 %v1495, %v1623
  %1625 = vmatmul.bf16.gmra.mxu0 %v190
  %v1626 = vpop.f32.mrf.mxu0
  %v1627 = vadd.f32 %v1498, %v1626
  %v1628 = vpop.f32.mrf.mxu0
  %v1629 = vadd.f32 %v1500, %v1628
  %1630 = vmatmul.bf16.gmra.mxu0 %v191
  %v1631 = vpop.f32.mrf.mxu0
  %v1632 = vadd.f32 %v1503, %v1631
  %v1633 = vpop.f32.mrf.mxu0
  %v1634 = vadd.f32 %v1505, %v1633
  %1635 = vmatmul.bf16.gmra.mxu0 %v192
  %v1636 = vpop.f32.mrf.mxu0
  %v1637 = vadd.f32 %v1508, %v1636
  %v1638 = vpop.f32.mrf.mxu0
  %v1639 = vadd.f32 %v1510, %v1638
  %1640 = vmatmul.bf16.gmra.mxu0 %v193
  %v1641 = vpop.f32.mrf.mxu0
  %v1642 = vadd.f32 %v1513, %v1641
  %v1643 = vpop.f32.mrf.mxu0
  %v1644 = vadd.f32 %v1515, %v1643
  %1645 = vmatmul.bf16.gmra.mxu0 %v227
  %v1646 = vpop.f32.mrf.mxu0
  %v1647 = vadd.f32 %v1518, %v1646
  %v1648 = vpop.f32.mrf.mxu0
  %v1649 = vadd.f32 %v1520, %v1648
  %1650 = vmatmul.bf16.gmra.mxu0 %v239
  %v1651 = vpop.f32.mrf.mxu0
  %v1652 = vadd.f32 %v1523, %v1651
  %v1653 = vpop.f32.mrf.mxu0
  %v1654 = vadd.f32 %v1525, %v1653
  %1655 = vdwg.mxu0
  %v1656 = vrot.slane %v170, 1
  %v1657 = vrot.slane %v171, 1
  %v1658 = vrot.slane %v172, 1
  %v1659 = vrot.slane %v173, 1
  %v1660 = vrot.slane %v174, 1
  %v1661 = vrot.slane %v175, 1
  %v1662 = vrot.slane %v176, 1
  %v1663 = vrot.slane %v177, 1
  %v1664 = vrot.slane %v178, 1
  %v1665 = vrot.slane %v179, 1
  %v1666 = vrot.slane %v180, 1
  %v1667 = vrot.slane %v181, 1
  %v1668 = vrot.slane %v226, 1
  %v1669 = vrot.slane %v238, 1
  %v1670 = vrot.slane %v182, 1
  %v1671 = vrot.slane %v183, 1
  %v1672 = vrot.slane %v184, 1
  %v1673 = vrot.slane %v185, 1
  %v1674 = vrot.slane %v186, 1
  %v1675 = vrot.slane %v187, 1
  %v1676 = vrot.slane %v188, 1
  %v1677 = vrot.slane %v189, 1
  %v1678 = vrot.slane %v190, 1
  %v1679 = vrot.slane %v191, 1
  %v1680 = vrot.slane %v192, 1
  %v1681 = vrot.slane %v193, 1
  %v1682 = vrot.slane %v227, 1
  %v1683 = vrot.slane %v239, 1
  %vm1684 = vcmask 1046528
  %v1687 = vsel %vm1684, %v1656, 0
  %v1690 = vsel %vm1684, %v1657, 0
  %v1693 = vsel %vm1684, %v1658, 0
  %v1696 = vsel %vm1684, %v1659, 0
  %v1699 = vsel %vm1684, %v1660, 0
  %v1702 = vsel %vm1684, %v1661, 0
  %v1705 = vsel %vm1684, %v1662, 0
  %v1708 = vsel %vm1684, %v1663, 0
  %v1711 = vsel %vm1684, %v1664, 0
  %v1714 = vsel %vm1684, %v1665, 0
  %v1717 = vsel %vm1684, %v1666, 0
  %v1720 = vsel %vm1684, %v1667, 0
  %v1723 = vsel %vm1684, %v1668, 0
  %v1726 = vsel %vm1684, %v1669, 0
  %v1729 = vsel %vm1684, %v1670, 0
  %v1732 = vsel %vm1684, %v1671, 0
  %v1735 = vsel %vm1684, %v1672, 0
  %v1738 = vsel %vm1684, %v1673, 0
  %v1741 = vsel %vm1684, %v1674, 0
  %v1744 = vsel %vm1684, %v1675, 0
  %v1747 = vsel %vm1684, %v1676, 0
  %v1750 = vsel %vm1684, %v1677, 0
  %v1753 = vsel %vm1684, %v1678, 0
  %v1756 = vsel %vm1684, %v1679, 0
  %v1759 = vsel %vm1684, %v1680, 0
  %v1762 = vsel %vm1684, %v1681, 0
  %v1765 = vsel %vm1684, %v1682, 0
  %v1768 = vsel %vm1684, %v1683, 0
  %s1770 = scalar_lea.vmem %s1, 384
  %v1771 = vld [vmem:[%s1770] sm:$0xf]
  %v1772 = vld [vmem:[%s1770 + $0x4] sm:$0xf]
  %v1773 = vld [vmem:[%s1770 + $0x8] sm:$0xf]
  %v1774 = vld [vmem:[%s1770 + $0xc] sm:$0xf]
  %v1775 = vld [vmem:[%s1770 + $0x10] sm:$0xf]
  %v1776 = vld [vmem:[%s1770 + $0x14] sm:$0xf]
  %v1777 = vld [vmem:[%s1770 + $0x18] sm:$0xf]
  %v1778 = vld [vmem:[%s1770 + $0x1c] sm:$0xf]
  %v1779 = vld [vmem:[%s1770 + $0x20] sm:$0xf]
  %v1780 = vld [vmem:[%s1770 + $0x24] sm:$0xf]
  %v1781 = vld [vmem:[%s1770 + $0x28] sm:$0xf]
  %v1782 = vld [vmem:[%s1770 + $0x2c] sm:$0xf]
  %v1783 = vld [vmem:[%s1770 + $0x30] sm:$0xf]
  %v1784 = vld [vmem:[%s1770 + $0x34] sm:$0xf]
  %v1785 = vld [vmem:[%s1770 + $0x38] sm:$0xf]
  %v1786 = vld [vmem:[%s1770 + $0x3c] sm:$0xf]
  %v1787 = vld [vmem:[%s1770 + $0x40] sm:$0xf]
  %v1788 = vld [vmem:[%s1770 + $0x44] sm:$0xf]
  %v1789 = vld [vmem:[%s1770 + $0x48] sm:$0xf]
  %v1790 = vld [vmem:[%s1770 + $0x4c] sm:$0xf]
  %v1791 = vld [vmem:[%s1770 + $0x50] sm:$0xf]
  %v1792 = vld [vmem:[%s1770 + $0x54] sm:$0xf]
  %v1793 = vld [vmem:[%s1770 + $0x58] sm:$0xf]
  %v1794 = vld [vmem:[%s1770 + $0x5c] sm:$0xf]
  %v1795 = vld [vmem:[%s1770 + $0x60] sm:$0xf]
  %v1796 = vld [vmem:[%s1770 + $0x64] sm:$0xf]
  %v1797 = vld [vmem:[%s1770 + $0x68] sm:$0xf]
  %v1798 = vld [vmem:[%s1770 + $0x6c] sm:$0xf]
  %v1799 = vld [vmem:[%s1770 + $0x70] sm:$0xf]
  %v1800 = vld [vmem:[%s1770 + $0x74] sm:$0xf]
  %v1801 = vld [vmem:[%s1770 + $0x78] sm:$0xf]
  %v1802 = vld [vmem:[%s1770 + $0x7c] sm:$0xf]
  %v1803 = vld [vmem:[%s1770 + $0x80] sm:$0xf]
  %v1804 = vld [vmem:[%s1770 + $0x84] sm:$0xf]
  %v1805 = vld [vmem:[%s1770 + $0x88] sm:$0xf]
  %v1806 = vld [vmem:[%s1770 + $0x8c] sm:$0xf]
  %v1807 = vld [vmem:[%s1770 + $0x90] sm:$0xf]
  %v1808 = vld [vmem:[%s1770 + $0x94] sm:$0xf]
  %v1809 = vld [vmem:[%s1770 + $0x98] sm:$0xf]
  %v1810 = vld [vmem:[%s1770 + $0x9c] sm:$0xf]
  %v1811 = vld [vmem:[%s1770 + $0xa0] sm:$0xf]
  %v1812 = vld [vmem:[%s1770 + $0xa4] sm:$0xf]
  %v1813 = vld [vmem:[%s1770 + $0xa8] sm:$0xf]
  %v1814 = vld [vmem:[%s1770 + $0xac] sm:$0xf]
  %v1815 = vld [vmem:[%s1770 + $0xb0] sm:$0xf]
  %v1816 = vld [vmem:[%s1770 + $0xb4] sm:$0xf]
  %v1817 = vld [vmem:[%s1770 + $0xb8] sm:$0xf]
  %v1818 = vld [vmem:[%s1770 + $0xbc] sm:$0xf]
  %v1867 = vunpack.c.l.b16 %v1771
  %v1868 = vunpack.c.l.b16 %v1772
  %v1869 = vunpack.c.l.b16 %v1773
  %v1870 = vunpack.c.l.b16 %v1774
  %v1871 = vunpack.c.l.b16 %v1775
  %v1872 = vunpack.c.l.b16 %v1776
  %v1873 = vunpack.c.l.b16 %v1777
  %v1874 = vunpack.c.l.b16 %v1778
  %v1875 = vunpack.c.l.b16 %v1779
  %v1876 = vunpack.c.l.b16 %v1780
  %v1877 = vunpack.c.l.b16 %v1781
  %v1878 = vunpack.c.l.b16 %v1782
  %v1879 = vunpack.c.l.b16 %v1783
  %v1880 = vunpack.c.l.b16 %v1784
  %v1881 = vunpack.c.l.b16 %v1785
  %v1882 = vunpack.c.l.b16 %v1786
  %v1883 = vunpack.c.l.b16 %v1787
  %v1884 = vunpack.c.l.b16 %v1788
  %v1885 = vunpack.c.l.b16 %v1789
  %v1886 = vunpack.c.l.b16 %v1790
  %v1887 = vunpack.c.l.b16 %v1791
  %v1888 = vunpack.c.l.b16 %v1792
  %v1889 = vunpack.c.l.b16 %v1793
  %v1890 = vunpack.c.l.b16 %v1794
  %v1891 = vunpack.c.l.b16 %v1795
  %v1892 = vunpack.c.l.b16 %v1796
  %v1893 = vunpack.c.l.b16 %v1797
  %v1894 = vunpack.c.l.b16 %v1798
  %v1895 = vunpack.c.l.b16 %v1799
  %v1896 = vunpack.c.l.b16 %v1800
  %v1897 = vunpack.c.l.b16 %v1801
  %v1898 = vunpack.c.l.b16 %v1802
  %v1899 = vunpack.c.l.b16 %v1803
  %v1900 = vunpack.c.l.b16 %v1804
  %v1901 = vunpack.c.l.b16 %v1805
  %v1902 = vunpack.c.l.b16 %v1806
  %v1903 = vunpack.c.l.b16 %v1807
  %v1904 = vunpack.c.l.b16 %v1808
  %v1905 = vunpack.c.l.b16 %v1809
  %v1906 = vunpack.c.l.b16 %v1810
  %v1907 = vunpack.c.l.b16 %v1811
  %v1908 = vunpack.c.l.b16 %v1812
  %v1909 = vunpack.c.l.b16 %v1813
  %v1910 = vunpack.c.l.b16 %v1814
  %v1911 = vunpack.c.l.b16 %v1815
  %v1912 = vunpack.c.l.b16 %v1816
  %v1913 = vunpack.c.l.b16 %v1817
  %v1914 = vunpack.c.l.b16 %v1818
  %v1915 = vpack.c.b16 %v1868, %v1867
  %v1916 = vpack.c.b16 %v1870, %v1869
  %v1917 = vpack.c.b16 %v1872, %v1871
  %v1918 = vpack.c.b16 %v1874, %v1873
  %v1919 = vpack.c.b16 %v1876, %v1875
  %v1920 = vpack.c.b16 %v1878, %v1877
  %v1921 = vpack.c.b16 %v1880, %v1879
  %v1922 = vpack.c.b16 %v1882, %v1881
  %v1923 = vpack.c.b16 %v1884, %v1883
  %v1924 = vpack.c.b16 %v1886, %v1885
  %v1925 = vpack.c.b16 %v1888, %v1887
  %v1926 = vpack.c.b16 %v1890, %v1889
  %v1927 = vpack.c.b16 %v1892, %v1891
  %v1928 = vpack.c.b16 %v1894, %v1893
  %v1929 = vpack.c.b16 %v1896, %v1895
  %v1930 = vpack.c.b16 %v1898, %v1897
  %v1931 = vpack.c.b16 %v1900, %v1899
  %v1932 = vpack.c.b16 %v1902, %v1901
  %v1933 = vpack.c.b16 %v1904, %v1903
  %v1934 = vpack.c.b16 %v1906, %v1905
  %v1935 = vpack.c.b16 %v1908, %v1907
  %v1936 = vpack.c.b16 %v1910, %v1909
  %v1937 = vpack.c.b16 %v1912, %v1911
  %v1938 = vpack.c.b16 %v1914, %v1913
  %1963 = vmatpush.bf16.msra.mxu0 %v1922
  %1964 = vmatpush.bf16.msra.mxu0 %v1921
  %1965 = vmatpush.bf16.msra.mxu0 %v1920
  %1966 = vmatpush.bf16.msra.mxu0 %v1919
  %1967 = vmatpush.bf16.msra.mxu0 %v1918
  %1968 = vmatpush.bf16.msra.mxu0 %v1917
  %1969 = vmatpush.bf16.msra.mxu0 %v1916
  %1970 = vmatpush.bf16.msra.mxu0 %v1915
  %1971 = vmatmul.bf16.gmra.mxu0 %v1687
  %v1972 = vpop.f32.mrf.mxu0
  %v1973 = vadd.f32 0.0, %v1972
  %v1974 = vpop.f32.mrf.mxu0
  %v1975 = vadd.f32 0.0, %v1974
  %1976 = vmatmul.bf16.gmra.mxu0 %v1690
  %v1977 = vpop.f32.mrf.mxu0
  %v1978 = vadd.f32 0.0, %v1977
  %v1979 = vpop.f32.mrf.mxu0
  %v1980 = vadd.f32 0.0, %v1979
  %1981 = vmatmul.bf16.gmra.mxu0 %v1693
  %v1982 = vpop.f32.mrf.mxu0
  %v1983 = vadd.f32 0.0, %v1982
  %v1984 = vpop.f32.mrf.mxu0
  %v1985 = vadd.f32 0.0, %v1984
  %1986 = vmatmul.bf16.gmra.mxu0 %v1696
  %v1987 = vpop.f32.mrf.mxu0
  %v1988 = vadd.f32 0.0, %v1987
  %v1989 = vpop.f32.mrf.mxu0
  %v1990 = vadd.f32 0.0, %v1989
  %1991 = vmatmul.bf16.gmra.mxu0 %v1699
  %v1992 = vpop.f32.mrf.mxu0
  %v1993 = vadd.f32 0.0, %v1992
  %v1994 = vpop.f32.mrf.mxu0
  %v1995 = vadd.f32 0.0, %v1994
  %1996 = vmatmul.bf16.gmra.mxu0 %v1702
  %v1997 = vpop.f32.mrf.mxu0
  %v1998 = vadd.f32 0.0, %v1997
  %v1999 = vpop.f32.mrf.mxu0
  %v2000 = vadd.f32 0.0, %v1999
  %2001 = vmatmul.bf16.gmra.mxu0 %v1705
  %v2002 = vpop.f32.mrf.mxu0
  %v2003 = vadd.f32 0.0, %v2002
  %v2004 = vpop.f32.mrf.mxu0
  %v2005 = vadd.f32 0.0, %v2004
  %2006 = vmatmul.bf16.gmra.mxu0 %v1708
  %v2007 = vpop.f32.mrf.mxu0
  %v2008 = vadd.f32 0.0, %v2007
  %v2009 = vpop.f32.mrf.mxu0
  %v2010 = vadd.f32 0.0, %v2009
  %2011 = vmatmul.bf16.gmra.mxu0 %v1711
  %v2012 = vpop.f32.mrf.mxu0
  %v2013 = vadd.f32 0.0, %v2012
  %v2014 = vpop.f32.mrf.mxu0
  %v2015 = vadd.f32 0.0, %v2014
  %2016 = vmatmul.bf16.gmra.mxu0 %v1714
  %v2017 = vpop.f32.mrf.mxu0
  %v2018 = vadd.f32 0.0, %v2017
  %v2019 = vpop.f32.mrf.mxu0
  %v2020 = vadd.f32 0.0, %v2019
  %2021 = vmatmul.bf16.gmra.mxu0 %v1717
  %v2022 = vpop.f32.mrf.mxu0
  %v2023 = vadd.f32 0.0, %v2022
  %v2024 = vpop.f32.mrf.mxu0
  %v2025 = vadd.f32 0.0, %v2024
  %2026 = vmatmul.bf16.gmra.mxu0 %v1720
  %v2027 = vpop.f32.mrf.mxu0
  %v2028 = vadd.f32 0.0, %v2027
  %v2029 = vpop.f32.mrf.mxu0
  %v2030 = vadd.f32 0.0, %v2029
  %2031 = vmatmul.bf16.gmra.mxu0 %v1729
  %v2032 = vpop.f32.mrf.mxu0
  %v2033 = vadd.f32 0.0, %v2032
  %v2034 = vpop.f32.mrf.mxu0
  %v2035 = vadd.f32 0.0, %v2034
  %2036 = vmatmul.bf16.gmra.mxu0 %v1732
  %v2037 = vpop.f32.mrf.mxu0
  %v2038 = vadd.f32 0.0, %v2037
  %v2039 = vpop.f32.mrf.mxu0
  %v2040 = vadd.f32 0.0, %v2039
  %2041 = vmatmul.bf16.gmra.mxu0 %v1735
  %v2042 = vpop.f32.mrf.mxu0
  %v2043 = vadd.f32 0.0, %v2042
  %v2044 = vpop.f32.mrf.mxu0
  %v2045 = vadd.f32 0.0, %v2044
  %2046 = vmatmul.bf16.gmra.mxu0 %v1738
  %v2047 = vpop.f32.mrf.mxu0
  %v2048 = vadd.f32 0.0, %v2047
  %v2049 = vpop.f32.mrf.mxu0
  %v2050 = vadd.f32 0.0, %v2049
  %2051 = vmatmul.bf16.gmra.mxu0 %v1741
  %v2052 = vpop.f32.mrf.mxu0
  %v2053 = vadd.f32 0.0, %v2052
  %v2054 = vpop.f32.mrf.mxu0
  %v2055 = vadd.f32 0.0, %v2054
  %2056 = vmatmul.bf16.gmra.mxu0 %v1744
  %v2057 = vpop.f32.mrf.mxu0
  %v2058 = vadd.f32 0.0, %v2057
  %v2059 = vpop.f32.mrf.mxu0
  %v2060 = vadd.f32 0.0, %v2059
  %2061 = vmatmul.bf16.gmra.mxu0 %v1747
  %v2062 = vpop.f32.mrf.mxu0
  %v2063 = vadd.f32 0.0, %v2062
  %v2064 = vpop.f32.mrf.mxu0
  %v2065 = vadd.f32 0.0, %v2064
  %2066 = vmatmul.bf16.gmra.mxu0 %v1750
  %v2067 = vpop.f32.mrf.mxu0
  %v2068 = vadd.f32 0.0, %v2067
  %v2069 = vpop.f32.mrf.mxu0
  %v2070 = vadd.f32 0.0, %v2069
  %2071 = vmatmul.bf16.gmra.mxu0 %v1753
  %v2072 = vpop.f32.mrf.mxu0
  %v2073 = vadd.f32 0.0, %v2072
  %v2074 = vpop.f32.mrf.mxu0
  %v2075 = vadd.f32 0.0, %v2074
  %2076 = vmatmul.bf16.gmra.mxu0 %v1756
  %v2077 = vpop.f32.mrf.mxu0
  %v2078 = vadd.f32 0.0, %v2077
  %v2079 = vpop.f32.mrf.mxu0
  %v2080 = vadd.f32 0.0, %v2079
  %2081 = vmatmul.bf16.gmra.mxu0 %v1759
  %v2082 = vpop.f32.mrf.mxu0
  %v2083 = vadd.f32 0.0, %v2082
  %v2084 = vpop.f32.mrf.mxu0
  %v2085 = vadd.f32 0.0, %v2084
  %2086 = vmatmul.bf16.gmra.mxu0 %v1762
  %v2087 = vpop.f32.mrf.mxu0
  %v2088 = vadd.f32 0.0, %v2087
  %v2089 = vpop.f32.mrf.mxu0
  %v2090 = vadd.f32 0.0, %v2089
  %2091 = vdwg.mxu0
  %2092 = vmatpush.bf16.msra.mxu0 %v1930
  %2093 = vmatpush.bf16.msra.mxu0 %v1929
  %2094 = vmatpush.bf16.msra.mxu0 %v1928
  %2095 = vmatpush.bf16.msra.mxu0 %v1927
  %2096 = vmatpush.bf16.msra.mxu0 %v1926
  %2097 = vmatpush.bf16.msra.mxu0 %v1925
  %2098 = vmatpush.bf16.msra.mxu0 %v1924
  %2099 = vmatpush.bf16.msra.mxu0 %v1923
  %2100 = vmatmul.bf16.gmra.mxu0 %v1690
  %v2101 = vpop.f32.mrf.mxu0
  %v2102 = vadd.f32 %v1973, %v2101
  %v2103 = vpop.f32.mrf.mxu0
  %v2104 = vadd.f32 %v1975, %v2103
  %2105 = vmatmul.bf16.gmra.mxu0 %v1693
  %v2106 = vpop.f32.mrf.mxu0
  %v2107 = vadd.f32 %v1978, %v2106
  %v2108 = vpop.f32.mrf.mxu0
  %v2109 = vadd.f32 %v1980, %v2108
  %2110 = vmatmul.bf16.gmra.mxu0 %v1696
  %v2111 = vpop.f32.mrf.mxu0
  %v2112 = vadd.f32 %v1983, %v2111
  %v2113 = vpop.f32.mrf.mxu0
  %v2114 = vadd.f32 %v1985, %v2113
  %2115 = vmatmul.bf16.gmra.mxu0 %v1699
  %v2116 = vpop.f32.mrf.mxu0
  %v2117 = vadd.f32 %v1988, %v2116
  %v2118 = vpop.f32.mrf.mxu0
  %v2119 = vadd.f32 %v1990, %v2118
  %2120 = vmatmul.bf16.gmra.mxu0 %v1702
  %v2121 = vpop.f32.mrf.mxu0
  %v2122 = vadd.f32 %v1993, %v2121
  %v2123 = vpop.f32.mrf.mxu0
  %v2124 = vadd.f32 %v1995, %v2123
  %2125 = vmatmul.bf16.gmra.mxu0 %v1705
  %v2126 = vpop.f32.mrf.mxu0
  %v2127 = vadd.f32 %v1998, %v2126
  %v2128 = vpop.f32.mrf.mxu0
  %v2129 = vadd.f32 %v2000, %v2128
  %2130 = vmatmul.bf16.gmra.mxu0 %v1708
  %v2131 = vpop.f32.mrf.mxu0
  %v2132 = vadd.f32 %v2003, %v2131
  %v2133 = vpop.f32.mrf.mxu0
  %v2134 = vadd.f32 %v2005, %v2133
  %2135 = vmatmul.bf16.gmra.mxu0 %v1711
  %v2136 = vpop.f32.mrf.mxu0
  %v2137 = vadd.f32 %v2008, %v2136
  %v2138 = vpop.f32.mrf.mxu0
  %v2139 = vadd.f32 %v2010, %v2138
  %2140 = vmatmul.bf16.gmra.mxu0 %v1714
  %v2141 = vpop.f32.mrf.mxu0
  %v2142 = vadd.f32 %v2013, %v2141
  %v2143 = vpop.f32.mrf.mxu0
  %v2144 = vadd.f32 %v2015, %v2143
  %2145 = vmatmul.bf16.gmra.mxu0 %v1717
  %v2146 = vpop.f32.mrf.mxu0
  %v2147 = vadd.f32 %v2018, %v2146
  %v2148 = vpop.f32.mrf.mxu0
  %v2149 = vadd.f32 %v2020, %v2148
  %2150 = vmatmul.bf16.gmra.mxu0 %v1720
  %v2151 = vpop.f32.mrf.mxu0
  %v2152 = vadd.f32 %v2023, %v2151
  %v2153 = vpop.f32.mrf.mxu0
  %v2154 = vadd.f32 %v2025, %v2153
  %2155 = vmatmul.bf16.gmra.mxu0 %v1723
  %v2156 = vpop.f32.mrf.mxu0
  %v2157 = vadd.f32 %v2028, %v2156
  %v2158 = vpop.f32.mrf.mxu0
  %v2159 = vadd.f32 %v2030, %v2158
  %2160 = vmatmul.bf16.gmra.mxu0 %v1732
  %v2161 = vpop.f32.mrf.mxu0
  %v2162 = vadd.f32 %v2033, %v2161
  %v2163 = vpop.f32.mrf.mxu0
  %v2164 = vadd.f32 %v2035, %v2163
  %2165 = vmatmul.bf16.gmra.mxu0 %v1735
  %v2166 = vpop.f32.mrf.mxu0
  %v2167 = vadd.f32 %v2038, %v2166
  %v2168 = vpop.f32.mrf.mxu0
  %v2169 = vadd.f32 %v2040, %v2168
  %2170 = vmatmul.bf16.gmra.mxu0 %v1738
  %v2171 = vpop.f32.mrf.mxu0
  %v2172 = vadd.f32 %v2043, %v2171
  %v2173 = vpop.f32.mrf.mxu0
  %v2174 = vadd.f32 %v2045, %v2173
  %2175 = vmatmul.bf16.gmra.mxu0 %v1741
  %v2176 = vpop.f32.mrf.mxu0
  %v2177 = vadd.f32 %v2048, %v2176
  %v2178 = vpop.f32.mrf.mxu0
  %v2179 = vadd.f32 %v2050, %v2178
  %2180 = vmatmul.bf16.gmra.mxu0 %v1744
  %v2181 = vpop.f32.mrf.mxu0
  %v2182 = vadd.f32 %v2053, %v2181
  %v2183 = vpop.f32.mrf.mxu0
  %v2184 = vadd.f32 %v2055, %v2183
  %2185 = vmatmul.bf16.gmra.mxu0 %v1747
  %v2186 = vpop.f32.mrf.mxu0
  %v2187 = vadd.f32 %v2058, %v2186
  %v2188 = vpop.f32.mrf.mxu0
  %v2189 = vadd.f32 %v2060, %v2188
  %2190 = vmatmul.bf16.gmra.mxu0 %v1750
  %v2191 = vpop.f32.mrf.mxu0
  %v2192 = vadd.f32 %v2063, %v2191
  %v2193 = vpop.f32.mrf.mxu0
  %v2194 = vadd.f32 %v2065, %v2193
  %2195 = vmatmul.bf16.gmra.mxu0 %v1753
  %v2196 = vpop.f32.mrf.mxu0
  %v2197 = vadd.f32 %v2068, %v2196
  %v2198 = vpop.f32.mrf.mxu0
  %v2199 = vadd.f32 %v2070, %v2198
  %2200 = vmatmul.bf16.gmra.mxu0 %v1756
  %v2201 = vpop.f32.mrf.mxu0
  %v2202 = vadd.f32 %v2073, %v2201
  %v2203 = vpop.f32.mrf.mxu0
  %v2204 = vadd.f32 %v2075, %v2203
  %2205 = vmatmul.bf16.gmra.mxu0 %v1759
  %v2206 = vpop.f32.mrf.mxu0
  %v2207 = vadd.f32 %v2078, %v2206
  %v2208 = vpop.f32.mrf.mxu0
  %v2209 = vadd.f32 %v2080, %v2208
  %2210 = vmatmul.bf16.gmra.mxu0 %v1762
  %v2211 = vpop.f32.mrf.mxu0
  %v2212 = vadd.f32 %v2083, %v2211
  %v2213 = vpop.f32.mrf.mxu0
  %v2214 = vadd.f32 %v2085, %v2213
  %2215 = vmatmul.bf16.gmra.mxu0 %v1765
  %v2216 = vpop.f32.mrf.mxu0
  %v2217 = vadd.f32 %v2088, %v2216
  %v2218 = vpop.f32.mrf.mxu0
  %v2219 = vadd.f32 %v2090, %v2218
  %2220 = vdwg.mxu0
  %2221 = vmatpush.bf16.msra.mxu0 %v1938
  %2222 = vmatpush.bf16.msra.mxu0 %v1937
  %2223 = vmatpush.bf16.msra.mxu0 %v1936
  %2224 = vmatpush.bf16.msra.mxu0 %v1935
  %2225 = vmatpush.bf16.msra.mxu0 %v1934
  %2226 = vmatpush.bf16.msra.mxu0 %v1933
  %2227 = vmatpush.bf16.msra.mxu0 %v1932
  %2228 = vmatpush.bf16.msra.mxu0 %v1931
  %2229 = vmatmul.bf16.gmra.mxu0 %v1693
  %v2230 = vpop.f32.mrf.mxu0
  %v2231 = vadd.f32 %v2102, %v2230
  %v2232 = vpop.f32.mrf.mxu0
  %v2233 = vadd.f32 %v2104, %v2232
  %2234 = vmatmul.bf16.gmra.mxu0 %v1696
  %v2235 = vpop.f32.mrf.mxu0
  %v2236 = vadd.f32 %v2107, %v2235
  %v2237 = vpop.f32.mrf.mxu0
  %v2238 = vadd.f32 %v2109, %v2237
  %2239 = vmatmul.bf16.gmra.mxu0 %v1699
  %v2240 = vpop.f32.mrf.mxu0
  %v2241 = vadd.f32 %v2112, %v2240
  %v2242 = vpop.f32.mrf.mxu0
  %v2243 = vadd.f32 %v2114, %v2242
  %2244 = vmatmul.bf16.gmra.mxu0 %v1702
  %v2245 = vpop.f32.mrf.mxu0
  %v2246 = vadd.f32 %v2117, %v2245
  %v2247 = vpop.f32.mrf.mxu0
  %v2248 = vadd.f32 %v2119, %v2247
  %2249 = vmatmul.bf16.gmra.mxu0 %v1705
  %v2250 = vpop.f32.mrf.mxu0
  %v2251 = vadd.f32 %v2122, %v2250
  %v2252 = vpop.f32.mrf.mxu0
  %v2253 = vadd.f32 %v2124, %v2252
  %2254 = vmatmul.bf16.gmra.mxu0 %v1708
  %v2255 = vpop.f32.mrf.mxu0
  %v2256 = vadd.f32 %v2127, %v2255
  %v2257 = vpop.f32.mrf.mxu0
  %v2258 = vadd.f32 %v2129, %v2257
  %2259 = vmatmul.bf16.gmra.mxu0 %v1711
  %v2260 = vpop.f32.mrf.mxu0
  %v2261 = vadd.f32 %v2132, %v2260
  %v2262 = vpop.f32.mrf.mxu0
  %v2263 = vadd.f32 %v2134, %v2262
  %2264 = vmatmul.bf16.gmra.mxu0 %v1714
  %v2265 = vpop.f32.mrf.mxu0
  %v2266 = vadd.f32 %v2137, %v2265
  %v2267 = vpop.f32.mrf.mxu0
  %v2268 = vadd.f32 %v2139, %v2267
  %2269 = vmatmul.bf16.gmra.mxu0 %v1717
  %v2270 = vpop.f32.mrf.mxu0
  %v2271 = vadd.f32 %v2142, %v2270
  %v2272 = vpop.f32.mrf.mxu0
  %v2273 = vadd.f32 %v2144, %v2272
  %2274 = vmatmul.bf16.gmra.mxu0 %v1720
  %v2275 = vpop.f32.mrf.mxu0
  %v2276 = vadd.f32 %v2147, %v2275
  %v2277 = vpop.f32.mrf.mxu0
  %v2278 = vadd.f32 %v2149, %v2277
  %2279 = vmatmul.bf16.gmra.mxu0 %v1723
  %v2280 = vpop.f32.mrf.mxu0
  %v2281 = vadd.f32 %v2152, %v2280
  %v2282 = vpop.f32.mrf.mxu0
  %v2283 = vadd.f32 %v2154, %v2282
  %2284 = vmatmul.bf16.gmra.mxu0 %v1726
  %v2285 = vpop.f32.mrf.mxu0
  %v2286 = vadd.f32 %v2157, %v2285
  %v2287 = vpop.f32.mrf.mxu0
  %v2288 = vadd.f32 %v2159, %v2287
  %2289 = vmatmul.bf16.gmra.mxu0 %v1735
  %v2290 = vpop.f32.mrf.mxu0
  %v2291 = vadd.f32 %v2162, %v2290
  %v2292 = vpop.f32.mrf.mxu0
  %v2293 = vadd.f32 %v2164, %v2292
  %2294 = vmatmul.bf16.gmra.mxu0 %v1738
  %v2295 = vpop.f32.mrf.mxu0
  %v2296 = vadd.f32 %v2167, %v2295
  %v2297 = vpop.f32.mrf.mxu0
  %v2298 = vadd.f32 %v2169, %v2297
  %2299 = vmatmul.bf16.gmra.mxu0 %v1741
  %v2300 = vpop.f32.mrf.mxu0
  %v2301 = vadd.f32 %v2172, %v2300
  %v2302 = vpop.f32.mrf.mxu0
  %v2303 = vadd.f32 %v2174, %v2302
  %2304 = vmatmul.bf16.gmra.mxu0 %v1744
  %v2305 = vpop.f32.mrf.mxu0
  %v2306 = vadd.f32 %v2177, %v2305
  %v2307 = vpop.f32.mrf.mxu0
  %v2308 = vadd.f32 %v2179, %v2307
  %2309 = vmatmul.bf16.gmra.mxu0 %v1747
  %v2310 = vpop.f32.mrf.mxu0
  %v2311 = vadd.f32 %v2182, %v2310
  %v2312 = vpop.f32.mrf.mxu0
  %v2313 = vadd.f32 %v2184, %v2312
  %2314 = vmatmul.bf16.gmra.mxu0 %v1750
  %v2315 = vpop.f32.mrf.mxu0
  %v2316 = vadd.f32 %v2187, %v2315
  %v2317 = vpop.f32.mrf.mxu0
  %v2318 = vadd.f32 %v2189, %v2317
  %2319 = vmatmul.bf16.gmra.mxu0 %v1753
  %v2320 = vpop.f32.mrf.mxu0
  %v2321 = vadd.f32 %v2192, %v2320
  %v2322 = vpop.f32.mrf.mxu0
  %v2323 = vadd.f32 %v2194, %v2322
  %2324 = vmatmul.bf16.gmra.mxu0 %v1756
  %v2325 = vpop.f32.mrf.mxu0
  %v2326 = vadd.f32 %v2197, %v2325
  %v2327 = vpop.f32.mrf.mxu0
  %v2328 = vadd.f32 %v2199, %v2327
  %2329 = vmatmul.bf16.gmra.mxu0 %v1759
  %v2330 = vpop.f32.mrf.mxu0
  %v2331 = vadd.f32 %v2202, %v2330
  %v2332 = vpop.f32.mrf.mxu0
  %v2333 = vadd.f32 %v2204, %v2332
  %2334 = vmatmul.bf16.gmra.mxu0 %v1762
  %v2335 = vpop.f32.mrf.mxu0
  %v2336 = vadd.f32 %v2207, %v2335
  %v2337 = vpop.f32.mrf.mxu0
  %v2338 = vadd.f32 %v2209, %v2337
  %2339 = vmatmul.bf16.gmra.mxu0 %v1765
  %v2340 = vpop.f32.mrf.mxu0
  %v2341 = vadd.f32 %v2212, %v2340
  %v2342 = vpop.f32.mrf.mxu0
  %v2343 = vadd.f32 %v2214, %v2342
  %2344 = vmatmul.bf16.gmra.mxu0 %v1768
  %v2345 = vpop.f32.mrf.mxu0
  %v2346 = vadd.f32 %v2217, %v2345
  %v2347 = vpop.f32.mrf.mxu0
  %v2348 = vadd.f32 %v2219, %v2347
  %2349 = vdwg.mxu0
  %v2350 = vadd.f32 %v1537, %v2231
  %v2351 = vadd.f32 %v1539, %v2233
  %v2352 = vadd.f32 %v1542, %v2236
  %v2353 = vadd.f32 %v1544, %v2238
  %v2354 = vadd.f32 %v1547, %v2241
  %v2355 = vadd.f32 %v1549, %v2243
  %v2356 = vadd.f32 %v1552, %v2246
  %v2357 = vadd.f32 %v1554, %v2248
  %v2358 = vadd.f32 %v1557, %v2251
  %v2359 = vadd.f32 %v1559, %v2253
  %v2360 = vadd.f32 %v1562, %v2256
  %v2361 = vadd.f32 %v1564, %v2258
  %v2362 = vadd.f32 %v1567, %v2261
  %v2363 = vadd.f32 %v1569, %v2263
  %v2364 = vadd.f32 %v1572, %v2266
  %v2365 = vadd.f32 %v1574, %v2268
  %v2366 = vadd.f32 %v1577, %v2271
  %v2367 = vadd.f32 %v1579, %v2273
  %v2368 = vadd.f32 %v1582, %v2276
  %v2369 = vadd.f32 %v1584, %v2278
  %v2370 = vadd.f32 %v1587, %v2281
  %v2371 = vadd.f32 %v1589, %v2283
  %v2372 = vadd.f32 %v1592, %v2286
  %v2373 = vadd.f32 %v1594, %v2288
  %v2374 = vadd.f32 %v1597, %v2291
  %v2375 = vadd.f32 %v1599, %v2293
  %v2376 = vadd.f32 %v1602, %v2296
  %v2377 = vadd.f32 %v1604, %v2298
  %v2378 = vadd.f32 %v1607, %v2301
  %v2379 = vadd.f32 %v1609, %v2303
  %v2380 = vadd.f32 %v1612, %v2306
  %v2381 = vadd.f32 %v1614, %v2308
  %v2382 = vadd.f32 %v1617, %v2311
  %v2383 = vadd.f32 %v1619, %v2313
  %v2384 = vadd.f32 %v1622, %v2316
  %v2385 = vadd.f32 %v1624, %v2318
  %v2386 = vadd.f32 %v1627, %v2321
  %v2387 = vadd.f32 %v1629, %v2323
  %v2388 = vadd.f32 %v1632, %v2326
  %v2389 = vadd.f32 %v1634, %v2328
  %v2390 = vadd.f32 %v1637, %v2331
  %v2391 = vadd.f32 %v1639, %v2333
  %v2392 = vadd.f32 %v1642, %v2336
  %v2393 = vadd.f32 %v1644, %v2338
  %v2394 = vadd.f32 %v1647, %v2341
  %v2395 = vadd.f32 %v1649, %v2343
  %v2396 = vadd.f32 %v1652, %v2346
  %v2397 = vadd.f32 %v1654, %v2348
  %v2398 = vlaneseq
  %v2399 = vshrl.u32 %v2398, 7
  %v2400 = vadd.s32 %v2399, 8
  %vm2401 = vcmp.lt.s32.totalorder %v2399, 12
  %vm2402 = vcmp.lt.s32.totalorder %v2400, 12
  %v2403 = vsel %vm2401, 1, 0
  %v2404 = vsel %vm2402, 1, 0
  %vm2405 = vcmp.eq.s32.totalorder %v2403, 1
  %vm2406 = vcmp.eq.s32.totalorder %v2404, 1
  %v2407 = vsel %vm2405, %v2350, 0.0
  %v2408 = vsel %vm2406, %v2351, 0.0
  %v2409 = vsel %vm2405, %v2352, 0.0
  %v2410 = vsel %vm2406, %v2353, 0.0
  %v2411 = vsel %vm2405, %v2354, 0.0
  %v2412 = vsel %vm2406, %v2355, 0.0
  %v2413 = vsel %vm2405, %v2356, 0.0
  %v2414 = vsel %vm2406, %v2357, 0.0
  %v2415 = vsel %vm2405, %v2358, 0.0
  %v2416 = vsel %vm2406, %v2359, 0.0
  %v2417 = vsel %vm2405, %v2360, 0.0
  %v2418 = vsel %vm2406, %v2361, 0.0
  %v2419 = vsel %vm2405, %v2362, 0.0
  %v2420 = vsel %vm2406, %v2363, 0.0
  %v2421 = vsel %vm2405, %v2364, 0.0
  %v2422 = vsel %vm2406, %v2365, 0.0
  %v2423 = vsel %vm2405, %v2366, 0.0
  %v2424 = vsel %vm2406, %v2367, 0.0
  %v2425 = vsel %vm2405, %v2368, 0.0
  %v2426 = vsel %vm2406, %v2369, 0.0
  %v2427 = vsel %vm2405, %v2370, 0.0
  %v2428 = vsel %vm2406, %v2371, 0.0
  %v2429 = vsel %vm2405, %v2372, 0.0
  %v2430 = vsel %vm2406, %v2373, 0.0
  %v2431 = vsel %vm2405, %v2374, 0.0
  %v2432 = vsel %vm2406, %v2375, 0.0
  %v2433 = vsel %vm2405, %v2376, 0.0
  %v2434 = vsel %vm2406, %v2377, 0.0
  %v2435 = vsel %vm2405, %v2378, 0.0
  %v2436 = vsel %vm2406, %v2379, 0.0
  %v2437 = vsel %vm2405, %v2380, 0.0
  %v2438 = vsel %vm2406, %v2381, 0.0
  %v2439 = vsel %vm2405, %v2382, 0.0
  %v2440 = vsel %vm2406, %v2383, 0.0
  %v2441 = vsel %vm2405, %v2384, 0.0
  %v2442 = vsel %vm2406, %v2385, 0.0
  %v2443 = vsel %vm2405, %v2386, 0.0
  %v2444 = vsel %vm2406, %v2387, 0.0
  %v2445 = vsel %vm2405, %v2388, 0.0
  %v2446 = vsel %vm2406, %v2389, 0.0
  %v2447 = vsel %vm2405, %v2390, 0.0
  %v2448 = vsel %vm2406, %v2391, 0.0
  %v2449 = vsel %vm2405, %v2392, 0.0
  %v2450 = vsel %vm2406, %v2393, 0.0
  %v2451 = vsel %vm2405, %v2394, 0.0
  %v2452 = vsel %vm2406, %v2395, 0.0
  %v2453 = vsel %vm2405, %v2396, 0.0
  %v2454 = vsel %vm2406, %v2397, 0.0
  %v2455 = vadd.f32 %v2407, %v2408
  %v2456 = vadd.f32 %v2455, %v2409
  %v2457 = vadd.f32 %v2456, %v2410
  %v2458 = vadd.f32 %v2457, %v2411
  %v2459 = vadd.f32 %v2458, %v2412
  %v2460 = vadd.f32 %v2459, %v2413
  %v2461 = vadd.f32 %v2460, %v2414
  %v2462 = vadd.f32 %v2461, %v2415
  %v2463 = vadd.f32 %v2462, %v2416
  %v2464 = vadd.f32 %v2463, %v2417
  %v2465 = vadd.f32 %v2464, %v2418
  %v2466 = vadd.f32 %v2465, %v2419
  %v2467 = vadd.f32 %v2466, %v2420
  %v2468 = vadd.f32 %v2467, %v2421
  %v2469 = vadd.f32 %v2468, %v2422
  %v2470 = vadd.f32 %v2469, %v2423
  %v2471 = vadd.f32 %v2470, %v2424
  %v2472 = vadd.f32 %v2471, %v2425
  %v2473 = vadd.f32 %v2472, %v2426
  %v2474 = vadd.f32 %v2473, %v2427
  %v2475 = vadd.f32 %v2474, %v2428
  %v2476 = vadd.f32 %v2475, %v2429
  %v2477 = vadd.f32 %v2476, %v2430
  %v2478 = vadd.f32 %v2477, %v2431
  %v2479 = vadd.f32 %v2478, %v2432
  %v2480 = vadd.f32 %v2479, %v2433
  %v2481 = vadd.f32 %v2480, %v2434
  %v2482 = vadd.f32 %v2481, %v2435
  %v2483 = vadd.f32 %v2482, %v2436
  %v2484 = vadd.f32 %v2483, %v2437
  %v2485 = vadd.f32 %v2484, %v2438
  %v2486 = vadd.f32 %v2485, %v2439
  %v2487 = vadd.f32 %v2486, %v2440
  %v2488 = vadd.f32 %v2487, %v2441
  %v2489 = vadd.f32 %v2488, %v2442
  %v2490 = vadd.f32 %v2489, %v2443
  %v2491 = vadd.f32 %v2490, %v2444
  %v2492 = vadd.f32 %v2491, %v2445
  %v2493 = vadd.f32 %v2492, %v2446
  %v2494 = vadd.f32 %v2493, %v2447
  %v2495 = vadd.f32 %v2494, %v2448
  %v2496 = vadd.f32 %v2495, %v2449
  %v2497 = vadd.f32 %v2496, %v2450
  %v2498 = vadd.f32 %v2497, %v2451
  %v2499 = vadd.f32 %v2498, %v2452
  %v2500 = vadd.f32 %v2499, %v2453
  %v2501 = vadd.f32 %v2500, %v2454
  %v2502 = vrot.slane %v2501, 4
  %v2503 = vadd.f32 %v2501, %v2502
  %v2504 = vrot.slane %v2503, 2
  %v2505 = vadd.f32 %v2503, %v2504
  %v2506 = vrot.slane %v2505, 1
  %v2507 = vadd.f32 %v2505, %v2506
  %v2508 = vrcp.pop 288.0
  %v2509 = vmul.f32 288.0, %v2508
  %v2510 = vsub.f32 1.0, %v2509
  %v2511 = vmul.f32 %v2508, %v2510
  %v2512 = vadd.f32 %v2508, %v2511
  %vm2513 = vweird.f32 %v2508
  %v2514 = vsel %vm2513, %v2508, %v2512
  %v2515 = vmul.f32 %v2507, %v2514
  %v2516 = vsub.f32 %v2350, %v2515
  %v2517 = vsub.f32 %v2351, %v2515
  %v2518 = vsub.f32 %v2352, %v2515
  %v2519 = vsub.f32 %v2353, %v2515
  %v2520 = vsub.f32 %v2354, %v2515
  %v2521 = vsub.f32 %v2355, %v2515
  %v2522 = vsub.f32 %v2356, %v2515
  %v2523 = vsub.f32 %v2357, %v2515
  %v2524 = vsub.f32 %v2358, %v2515
  %v2525 = vsub.f32 %v2359, %v2515
  %v2526 = vsub.f32 %v2360, %v2515
  %v2527 = vsub.f32 %v2361, %v2515
  %v2528 = vsub.f32 %v2362, %v2515
  %v2529 = vsub.f32 %v2363, %v2515
  %v2530 = vsub.f32 %v2364, %v2515
  %v2531 = vsub.f32 %v2365, %v2515
  %v2532 = vsub.f32 %v2366, %v2515
  %v2533 = vsub.f32 %v2367, %v2515
  %v2534 = vsub.f32 %v2368, %v2515
  %v2535 = vsub.f32 %v2369, %v2515
  %v2536 = vsub.f32 %v2370, %v2515
  %v2537 = vsub.f32 %v2371, %v2515
  %v2538 = vsub.f32 %v2372, %v2515
  %v2539 = vsub.f32 %v2373, %v2515
  %v2540 = vsub.f32 %v2374, %v2515
  %v2541 = vsub.f32 %v2375, %v2515
  %v2542 = vsub.f32 %v2376, %v2515
  %v2543 = vsub.f32 %v2377, %v2515
  %v2544 = vsub.f32 %v2378, %v2515
  %v2545 = vsub.f32 %v2379, %v2515
  %v2546 = vsub.f32 %v2380, %v2515
  %v2547 = vsub.f32 %v2381, %v2515
  %v2548 = vsub.f32 %v2382, %v2515
  %v2549 = vsub.f32 %v2383, %v2515
  %v2550 = vsub.f32 %v2384, %v2515
  %v2551 = vsub.f32 %v2385, %v2515
  %v2552 = vsub.f32 %v2386, %v2515
  %v2553 = vsub.f32 %v2387, %v2515
  %v2554 = vsub.f32 %v2388, %v2515
  %v2555 = vsub.f32 %v2389, %v2515
  %v2556 = vsub.f32 %v2390, %v2515
  %v2557 = vsub.f32 %v2391, %v2515
  %v2558 = vsub.f32 %v2392, %v2515
  %v2559 = vsub.f32 %v2393, %v2515
  %v2560 = vsub.f32 %v2394, %v2515
  %v2561 = vsub.f32 %v2395, %v2515
  %v2562 = vsub.f32 %v2396, %v2515
  %v2563 = vsub.f32 %v2397, %v2515
  %v2564 = vmul.f32 %v2516, %v2516
  %v2565 = vmul.f32 %v2517, %v2517
  %v2566 = vmul.f32 %v2518, %v2518
  %v2567 = vmul.f32 %v2519, %v2519
  %v2568 = vmul.f32 %v2520, %v2520
  %v2569 = vmul.f32 %v2521, %v2521
  %v2570 = vmul.f32 %v2522, %v2522
  %v2571 = vmul.f32 %v2523, %v2523
  %v2572 = vmul.f32 %v2524, %v2524
  %v2573 = vmul.f32 %v2525, %v2525
  %v2574 = vmul.f32 %v2526, %v2526
  %v2575 = vmul.f32 %v2527, %v2527
  %v2576 = vmul.f32 %v2528, %v2528
  %v2577 = vmul.f32 %v2529, %v2529
  %v2578 = vmul.f32 %v2530, %v2530
  %v2579 = vmul.f32 %v2531, %v2531
  %v2580 = vmul.f32 %v2532, %v2532
  %v2581 = vmul.f32 %v2533, %v2533
  %v2582 = vmul.f32 %v2534, %v2534
  %v2583 = vmul.f32 %v2535, %v2535
  %v2584 = vmul.f32 %v2536, %v2536
  %v2585 = vmul.f32 %v2537, %v2537
  %v2586 = vmul.f32 %v2538, %v2538
  %v2587 = vmul.f32 %v2539, %v2539
  %v2588 = vmul.f32 %v2540, %v2540
  %v2589 = vmul.f32 %v2541, %v2541
  %v2590 = vmul.f32 %v2542, %v2542
  %v2591 = vmul.f32 %v2543, %v2543
  %v2592 = vmul.f32 %v2544, %v2544
  %v2593 = vmul.f32 %v2545, %v2545
  %v2594 = vmul.f32 %v2546, %v2546
  %v2595 = vmul.f32 %v2547, %v2547
  %v2596 = vmul.f32 %v2548, %v2548
  %v2597 = vmul.f32 %v2549, %v2549
  %v2598 = vmul.f32 %v2550, %v2550
  %v2599 = vmul.f32 %v2551, %v2551
  %v2600 = vmul.f32 %v2552, %v2552
  %v2601 = vmul.f32 %v2553, %v2553
  %v2602 = vmul.f32 %v2554, %v2554
  %v2603 = vmul.f32 %v2555, %v2555
  %v2604 = vmul.f32 %v2556, %v2556
  %v2605 = vmul.f32 %v2557, %v2557
  %v2606 = vmul.f32 %v2558, %v2558
  %v2607 = vmul.f32 %v2559, %v2559
  %v2608 = vmul.f32 %v2560, %v2560
  %v2609 = vmul.f32 %v2561, %v2561
  %v2610 = vmul.f32 %v2562, %v2562
  %v2611 = vmul.f32 %v2563, %v2563
  %v2612 = vsel %vm2405, %v2564, 0.0
  %v2613 = vsel %vm2406, %v2565, 0.0
  %v2614 = vsel %vm2405, %v2566, 0.0
  %v2615 = vsel %vm2406, %v2567, 0.0
  %v2616 = vsel %vm2405, %v2568, 0.0
  %v2617 = vsel %vm2406, %v2569, 0.0
  %v2618 = vsel %vm2405, %v2570, 0.0
  %v2619 = vsel %vm2406, %v2571, 0.0
  %v2620 = vsel %vm2405, %v2572, 0.0
  %v2621 = vsel %vm2406, %v2573, 0.0
  %v2622 = vsel %vm2405, %v2574, 0.0
  %v2623 = vsel %vm2406, %v2575, 0.0
  %v2624 = vsel %vm2405, %v2576, 0.0
  %v2625 = vsel %vm2406, %v2577, 0.0
  %v2626 = vsel %vm2405, %v2578, 0.0
  %v2627 = vsel %vm2406, %v2579, 0.0
  %v2628 = vsel %vm2405, %v2580, 0.0
  %v2629 = vsel %vm2406, %v2581, 0.0
  %v2630 = vsel %vm2405, %v2582, 0.0
  %v2631 = vsel %vm2406, %v2583, 0.0
  %v2632 = vsel %vm2405, %v2584, 0.0
  %v2633 = vsel %vm2406, %v2585, 0.0
  %v2634 = vsel %vm2405, %v2586, 0.0
  %v2635 = vsel %vm2406, %v2587, 0.0
  %v2636 = vsel %vm2405, %v2588, 0.0
  %v2637 = vsel %vm2406, %v2589, 0.0
  %v2638 = vsel %vm2405, %v2590, 0.0
  %v2639 = vsel %vm2406, %v2591, 0.0
  %v2640 = vsel %vm2405, %v2592, 0.0
  %v2641 = vsel %vm2406, %v2593, 0.0
  %v2642 = vsel %vm2405, %v2594, 0.0
  %v2643 = vsel %vm2406, %v2595, 0.0
  %v2644 = vsel %vm2405, %v2596, 0.0
  %v2645 = vsel %vm2406, %v2597, 0.0
  %v2646 = vsel %vm2405, %v2598, 0.0
  %v2647 = vsel %vm2406, %v2599, 0.0
  %v2648 = vsel %vm2405, %v2600, 0.0
  %v2649 = vsel %vm2406, %v2601, 0.0
  %v2650 = vsel %vm2405, %v2602, 0.0
  %v2651 = vsel %vm2406, %v2603, 0.0
  %v2652 = vsel %vm2405, %v2604, 0.0
  %v2653 = vsel %vm2406, %v2605, 0.0
  %v2654 = vsel %vm2405, %v2606, 0.0
  %v2655 = vsel %vm2406, %v2607, 0.0
  %v2656 = vsel %vm2405, %v2608, 0.0
  %v2657 = vsel %vm2406, %v2609, 0.0
  %v2658 = vsel %vm2405, %v2610, 0.0
  %v2659 = vsel %vm2406, %v2611, 0.0
  %v2660 = vadd.f32 %v2612, %v2613
  %v2661 = vadd.f32 %v2660, %v2614
  %v2662 = vadd.f32 %v2661, %v2615
  %v2663 = vadd.f32 %v2662, %v2616
  %v2664 = vadd.f32 %v2663, %v2617
  %v2665 = vadd.f32 %v2664, %v2618
  %v2666 = vadd.f32 %v2665, %v2619
  %v2667 = vadd.f32 %v2666, %v2620
  %v2668 = vadd.f32 %v2667, %v2621
  %v2669 = vadd.f32 %v2668, %v2622
  %v2670 = vadd.f32 %v2669, %v2623
  %v2671 = vadd.f32 %v2670, %v2624
  %v2672 = vadd.f32 %v2671, %v2625
  %v2673 = vadd.f32 %v2672, %v2626
  %v2674 = vadd.f32 %v2673, %v2627
  %v2675 = vadd.f32 %v2674, %v2628
  %v2676 = vadd.f32 %v2675, %v2629
  %v2677 = vadd.f32 %v2676, %v2630
  %v2678 = vadd.f32 %v2677, %v2631
  %v2679 = vadd.f32 %v2678, %v2632
  %v2680 = vadd.f32 %v2679, %v2633
  %v2681 = vadd.f32 %v2680, %v2634
  %v2682 = vadd.f32 %v2681, %v2635
  %v2683 = vadd.f32 %v2682, %v2636
  %v2684 = vadd.f32 %v2683, %v2637
  %v2685 = vadd.f32 %v2684, %v2638
  %v2686 = vadd.f32 %v2685, %v2639
  %v2687 = vadd.f32 %v2686, %v2640
  %v2688 = vadd.f32 %v2687, %v2641
  %v2689 = vadd.f32 %v2688, %v2642
  %v2690 = vadd.f32 %v2689, %v2643
  %v2691 = vadd.f32 %v2690, %v2644
  %v2692 = vadd.f32 %v2691, %v2645
  %v2693 = vadd.f32 %v2692, %v2646
  %v2694 = vadd.f32 %v2693, %v2647
  %v2695 = vadd.f32 %v2694, %v2648
  %v2696 = vadd.f32 %v2695, %v2649
  %v2697 = vadd.f32 %v2696, %v2650
  %v2698 = vadd.f32 %v2697, %v2651
  %v2699 = vadd.f32 %v2698, %v2652
  %v2700 = vadd.f32 %v2699, %v2653
  %v2701 = vadd.f32 %v2700, %v2654
  %v2702 = vadd.f32 %v2701, %v2655
  %v2703 = vadd.f32 %v2702, %v2656
  %v2704 = vadd.f32 %v2703, %v2657
  %v2705 = vadd.f32 %v2704, %v2658
  %v2706 = vadd.f32 %v2705, %v2659
  %v2707 = vrot.slane %v2706, 4
  %v2708 = vadd.f32 %v2706, %v2707
  %v2709 = vrot.slane %v2708, 2
  %v2710 = vadd.f32 %v2708, %v2709
  %v2711 = vrot.slane %v2710, 1
  %v2712 = vadd.f32 %v2710, %v2711
  %v2713 = vmul.f32 %v2712, %v2514
  %v2714 = vld [vmem:[%s2] sm:$0x1]
  %v2715 = vld [vmem:[%s3] sm:$0x1]
  %v2716 = vadd.f32 %v2713, 1e-05
  %v2717 = vrsqrt.pop %v2716
  %v2718 = vmul.f32 %v2717, %v2716
  %v2719 = vmul.f32 %v2718, %v2717
  %v2720 = vmul.f32 0.5, %v2719
  %v2721 = vsub.f32 1.5, %v2720
  %v2722 = vmul.f32 %v2717, %v2721
  %vm2723 = vweird.f32 %v2716
  %vm2724 = vweird.f32 %v2717
  %vm2725 = vmor %vm2723, %vm2724
  %v2726 = vsel %vm2725, %v2717, %v2722
  %v2727 = vmul.f32 %v2714, %v2726
  %v2728 = vmul.f32 %v2515, %v2727
  %v2729 = vsub.f32 %v2715, %v2728
  %v2731 = vperm.slane %v2727, 0
  %v2733 = vmul.f32 %v2350, %v2731
  %v2734 = vmul.f32 %v2351, %v2731
  %v2735 = vmul.f32 %v2352, %v2731
  %v2736 = vmul.f32 %v2353, %v2731
  %v2737 = vmul.f32 %v2354, %v2731
  %v2738 = vmul.f32 %v2355, %v2731
  %v2739 = vmul.f32 %v2356, %v2731
  %v2740 = vmul.f32 %v2357, %v2731
  %v2741 = vmul.f32 %v2358, %v2731
  %v2742 = vmul.f32 %v2359, %v2731
  %v2743 = vmul.f32 %v2360, %v2731
  %v2744 = vmul.f32 %v2361, %v2731
  %v2745 = vmul.f32 %v2362, %v2731
  %v2746 = vmul.f32 %v2363, %v2731
  %v2747 = vmul.f32 %v2364, %v2731
  %v2748 = vmul.f32 %v2365, %v2731
  %v2749 = vmul.f32 %v2366, %v2731
  %v2750 = vmul.f32 %v2367, %v2731
  %v2751 = vmul.f32 %v2368, %v2731
  %v2752 = vmul.f32 %v2369, %v2731
  %v2753 = vmul.f32 %v2370, %v2731
  %v2754 = vmul.f32 %v2371, %v2731
  %v2755 = vmul.f32 %v2372, %v2731
  %v2756 = vmul.f32 %v2373, %v2731
  %v2757 = vmul.f32 %v2374, %v2731
  %v2758 = vmul.f32 %v2375, %v2731
  %v2759 = vmul.f32 %v2376, %v2731
  %v2760 = vmul.f32 %v2377, %v2731
  %v2761 = vmul.f32 %v2378, %v2731
  %v2762 = vmul.f32 %v2379, %v2731
  %v2763 = vmul.f32 %v2380, %v2731
  %v2764 = vmul.f32 %v2381, %v2731
  %v2765 = vmul.f32 %v2382, %v2731
  %v2766 = vmul.f32 %v2383, %v2731
  %v2767 = vmul.f32 %v2384, %v2731
  %v2768 = vmul.f32 %v2385, %v2731
  %v2769 = vmul.f32 %v2386, %v2731
  %v2770 = vmul.f32 %v2387, %v2731
  %v2771 = vmul.f32 %v2388, %v2731
  %v2772 = vmul.f32 %v2389, %v2731
  %v2773 = vmul.f32 %v2390, %v2731
  %v2774 = vmul.f32 %v2391, %v2731
  %v2775 = vmul.f32 %v2392, %v2731
  %v2776 = vmul.f32 %v2393, %v2731
  %v2777 = vmul.f32 %v2394, %v2731
  %v2778 = vmul.f32 %v2395, %v2731
  %v2779 = vmul.f32 %v2396, %v2731
  %v2780 = vmul.f32 %v2397, %v2731
  %v2782 = vperm.slane %v2729, 0
  %v2784 = vadd.f32 %v2733, %v2782
  %v2785 = vadd.f32 %v2734, %v2782
  %v2786 = vadd.f32 %v2735, %v2782
  %v2787 = vadd.f32 %v2736, %v2782
  %v2788 = vadd.f32 %v2737, %v2782
  %v2789 = vadd.f32 %v2738, %v2782
  %v2790 = vadd.f32 %v2739, %v2782
  %v2791 = vadd.f32 %v2740, %v2782
  %v2792 = vadd.f32 %v2741, %v2782
  %v2793 = vadd.f32 %v2742, %v2782
  %v2794 = vadd.f32 %v2743, %v2782
  %v2795 = vadd.f32 %v2744, %v2782
  %v2796 = vadd.f32 %v2745, %v2782
  %v2797 = vadd.f32 %v2746, %v2782
  %v2798 = vadd.f32 %v2747, %v2782
  %v2799 = vadd.f32 %v2748, %v2782
  %v2800 = vadd.f32 %v2749, %v2782
  %v2801 = vadd.f32 %v2750, %v2782
  %v2802 = vadd.f32 %v2751, %v2782
  %v2803 = vadd.f32 %v2752, %v2782
  %v2804 = vadd.f32 %v2753, %v2782
  %v2805 = vadd.f32 %v2754, %v2782
  %v2806 = vadd.f32 %v2755, %v2782
  %v2807 = vadd.f32 %v2756, %v2782
  %v2808 = vadd.f32 %v2757, %v2782
  %v2809 = vadd.f32 %v2758, %v2782
  %v2810 = vadd.f32 %v2759, %v2782
  %v2811 = vadd.f32 %v2760, %v2782
  %v2812 = vadd.f32 %v2761, %v2782
  %v2813 = vadd.f32 %v2762, %v2782
  %v2814 = vadd.f32 %v2763, %v2782
  %v2815 = vadd.f32 %v2764, %v2782
  %v2816 = vadd.f32 %v2765, %v2782
  %v2817 = vadd.f32 %v2766, %v2782
  %v2818 = vadd.f32 %v2767, %v2782
  %v2819 = vadd.f32 %v2768, %v2782
  %v2820 = vadd.f32 %v2769, %v2782
  %v2821 = vadd.f32 %v2770, %v2782
  %v2822 = vadd.f32 %v2771, %v2782
  %v2823 = vadd.f32 %v2772, %v2782
  %v2824 = vadd.f32 %v2773, %v2782
  %v2825 = vadd.f32 %v2774, %v2782
  %v2826 = vadd.f32 %v2775, %v2782
  %v2827 = vadd.f32 %v2776, %v2782
  %v2828 = vadd.f32 %v2777, %v2782
  %v2829 = vadd.f32 %v2778, %v2782
  %v2830 = vadd.f32 %v2779, %v2782
  %v2831 = vadd.f32 %v2780, %v2782
  %v2832 = vmax.f32 %v2784, 0.0
  %v2833 = vmax.f32 %v2785, 0.0
  %v2834 = vmax.f32 %v2786, 0.0
  %v2835 = vmax.f32 %v2787, 0.0
  %v2836 = vmax.f32 %v2788, 0.0
  %v2837 = vmax.f32 %v2789, 0.0
  %v2838 = vmax.f32 %v2790, 0.0
  %v2839 = vmax.f32 %v2791, 0.0
  %v2840 = vmax.f32 %v2792, 0.0
  %v2841 = vmax.f32 %v2793, 0.0
  %v2842 = vmax.f32 %v2794, 0.0
  %v2843 = vmax.f32 %v2795, 0.0
  %v2844 = vmax.f32 %v2796, 0.0
  %v2845 = vmax.f32 %v2797, 0.0
  %v2846 = vmax.f32 %v2798, 0.0
  %v2847 = vmax.f32 %v2799, 0.0
  %v2848 = vmax.f32 %v2800, 0.0
  %v2849 = vmax.f32 %v2801, 0.0
  %v2850 = vmax.f32 %v2802, 0.0
  %v2851 = vmax.f32 %v2803, 0.0
  %v2852 = vmax.f32 %v2804, 0.0
  %v2853 = vmax.f32 %v2805, 0.0
  %v2854 = vmax.f32 %v2806, 0.0
  %v2855 = vmax.f32 %v2807, 0.0
  %v2856 = vmax.f32 %v2808, 0.0
  %v2857 = vmax.f32 %v2809, 0.0
  %v2858 = vmax.f32 %v2810, 0.0
  %v2859 = vmax.f32 %v2811, 0.0
  %v2860 = vmax.f32 %v2812, 0.0
  %v2861 = vmax.f32 %v2813, 0.0
  %v2862 = vmax.f32 %v2814, 0.0
  %v2863 = vmax.f32 %v2815, 0.0
  %v2864 = vmax.f32 %v2816, 0.0
  %v2865 = vmax.f32 %v2817, 0.0
  %v2866 = vmax.f32 %v2818, 0.0
  %v2867 = vmax.f32 %v2819, 0.0
  %v2868 = vmax.f32 %v2820, 0.0
  %v2869 = vmax.f32 %v2821, 0.0
  %v2870 = vmax.f32 %v2822, 0.0
  %v2871 = vmax.f32 %v2823, 0.0
  %v2872 = vmax.f32 %v2824, 0.0
  %v2873 = vmax.f32 %v2825, 0.0
  %v2874 = vmax.f32 %v2826, 0.0
  %v2875 = vmax.f32 %v2827, 0.0
  %v2876 = vmax.f32 %v2828, 0.0
  %v2877 = vmax.f32 %v2829, 0.0
  %v2878 = vmax.f32 %v2830, 0.0
  %v2879 = vmax.f32 %v2831, 0.0
  %2880 = vst [vmem:[%s4] sm:$0xff] %v2832
  %2881 = vst [vmem:[%s4 + $0x8] sm:$0xff] %v2833
  %2882 = vst [vmem:[%s4 + $0x10] sm:$0xff] %v2834
  %2883 = vst [vmem:[%s4 + $0x18] sm:$0xff] %v2835
  %2884 = vst [vmem:[%s4 + $0x20] sm:$0xff] %v2836
  %2885 = vst [vmem:[%s4 + $0x28] sm:$0xff] %v2837
  %2886 = vst [vmem:[%s4 + $0x30] sm:$0xff] %v2838
  %2887 = vst [vmem:[%s4 + $0x38] sm:$0xff] %v2839
  %2888 = vst [vmem:[%s4 + $0x40] sm:$0xff] %v2840
  %2889 = vst [vmem:[%s4 + $0x48] sm:$0xff] %v2841
  %2890 = vst [vmem:[%s4 + $0x50] sm:$0xff] %v2842
  %2891 = vst [vmem:[%s4 + $0x58] sm:$0xff] %v2843
  %2892 = vst [vmem:[%s4 + $0x60] sm:$0xff] %v2844
  %2893 = vst [vmem:[%s4 + $0x68] sm:$0xff] %v2845
  %2894 = vst [vmem:[%s4 + $0x70] sm:$0xff] %v2846
  %2895 = vst [vmem:[%s4 + $0x78] sm:$0xff] %v2847
  %2896 = vst [vmem:[%s4 + $0x80] sm:$0xff] %v2848
  %2897 = vst [vmem:[%s4 + $0x88] sm:$0xff] %v2849
  %2898 = vst [vmem:[%s4 + $0x90] sm:$0xff] %v2850
  %2899 = vst [vmem:[%s4 + $0x98] sm:$0xff] %v2851
  %2900 = vst [vmem:[%s4 + $0xa0] sm:$0xff] %v2852
  %2901 = vst [vmem:[%s4 + $0xa8] sm:$0xff] %v2853
  %2902 = vst [vmem:[%s4 + $0xb0] sm:$0xff] %v2854
  %2903 = vst [vmem:[%s4 + $0xb8] sm:$0xff] %v2855
  %2904 = vst [vmem:[%s4 + $0xc0] sm:$0xff] %v2856
  %2905 = vst [vmem:[%s4 + $0xc8] sm:$0xff] %v2857
  %2906 = vst [vmem:[%s4 + $0xd0] sm:$0xff] %v2858
  %2907 = vst [vmem:[%s4 + $0xd8] sm:$0xff] %v2859
  %2908 = vst [vmem:[%s4 + $0xe0] sm:$0xff] %v2860
  %2909 = vst [vmem:[%s4 + $0xe8] sm:$0xff] %v2861
  %2910 = vst [vmem:[%s4 + $0xf0] sm:$0xff] %v2862
  %2911 = vst [vmem:[%s4 + $0xf8] sm:$0xff] %v2863
  %2912 = vst [vmem:[%s4 + $0x100] sm:$0xff] %v2864
  %2913 = vst [vmem:[%s4 + $0x108] sm:$0xff] %v2865
  %2914 = vst [vmem:[%s4 + $0x110] sm:$0xff] %v2866
  %2915 = vst [vmem:[%s4 + $0x118] sm:$0xff] %v2867
  %2916 = vst [vmem:[%s4 + $0x120] sm:$0xff] %v2868
  %2917 = vst [vmem:[%s4 + $0x128] sm:$0xff] %v2869
  %2918 = vst [vmem:[%s4 + $0x130] sm:$0xff] %v2870
  %2919 = vst [vmem:[%s4 + $0x138] sm:$0xff] %v2871
  %2920 = vst [vmem:[%s4 + $0x140] sm:$0xff] %v2872
  %2921 = vst [vmem:[%s4 + $0x148] sm:$0xff] %v2873
  %2922 = vst [vmem:[%s4 + $0x150] sm:$0xff] %v2874
  %2923 = vst [vmem:[%s4 + $0x158] sm:$0xff] %v2875
  %2924 = vst [vmem:[%s4 + $0x160] sm:$0xff] %v2876
  %2925 = vst [vmem:[%s4 + $0x168] sm:$0xff] %v2877
  %2926 = vst [vmem:[%s4 + $0x170] sm:$0xff] %v2878
  %2927 = vst [vmem:[%s4 + $0x178] sm:$0xff] %v2879
  // Predicated region
  $region18: #{double_conv_pallas.3} parent=0 // pred_check
    _
  $region19: #{double_conv_pallas.3} parent=0 // pred_check_branch
    %2929 = sbr.rel (0) target = $region21
  $region20: #{double_conv_pallas.3} parent=0 // pred_region
    _
  $region21: #{double_conv_pallas.3} parent=0 // pred_fallthru
    _
  // Predicated region
  $region22: #{double_conv_pallas.3} parent=0 // pred_check
    _
  $region23: #{double_conv_pallas.3} parent=0 // pred_check_branch
    %2931 = sbr.rel (0) target = $region25
  $region24: #{double_conv_pallas.3} parent=0 // pred_region
    _
  $region25: #{double_conv_pallas.3} parent=0 // pred_fallthru
    _

</llo_original>
